<compile_context>
chip_gen: v6e
topology: v6e:2x2x1
jax: 0.10.0
libtpu: 0.0.40
codegen_flags: <defaults>
</compile_context>

<pallas_src>
import jax
import jax.numpy as jnp
from jax import lax
from jax.experimental import pallas as pl
from jax.experimental.pallas import tpu as pltpu


def _residual_block_kernel(x_ref, w1s_ref, b1_ref, w2_ref, bout_ref,
                           o_ref, pad2_scr, rs_scr):
    # x_ref block: (1, H+4, W+2, Cin) bf16  (2-row / 1-col zero halo, resident)
    # w1s_ref:     (9*Cin, 2*Cout)    bf16  [conv1*BN1-scale | 1x1 shortcut]
    # b1_ref:      (1, Cout)          f32   folded BN1 bias
    # w2_ref:      (9*Cout, Cout)     bf16  conv2 with BN2 scale folded in
    # bout_ref:    (1, Cout)          f32   folded BN2 bias + shortcut bias
    # o_ref block: (1, TRp, W2*Cout)  f32   lane-dense pooled output rows
    # pad2_scr:    (TR+2, W+2, Cout)  bf16  conv2 input tile (with halo)
    # rs_scr:      (TRp, W, Cout)     f32   H-direction pool row sums
    Wp, Cin = x_ref.shape[2], x_ref.shape[3]
    W = Wp - 2
    W2 = W // 2
    TR = pad2_scr.shape[0] - 2          # pre-pool output rows per tile
    Cout = pad2_scr.shape[2]
    TRp = o_ref.shape[1]                # pooled rows per tile (TR == 2*TRp)
    TRm = TR + 2                        # conv1 rows per tile (incl. conv2 halo)

    t = pl.program_id(1)
    n_t = pl.num_programs(1)

    # Rows of the (resident) padded input needed by this row tile.
    row0 = t * TR
    xp = x_ref[0, pl.ds(row0, TR + 4)]                     # (TR+4, W+2, Cin) bf16

    # ---- conv1 (3x3, BN1 scale folded) + fused 1x1 shortcut ------------------
    # im2col: 9 shifted taps concatenated along lanes -> ONE wide-K matmul.
    # The shortcut input is the centre tap, so its weights sit in rows
    # 4*Cin:5*Cin of the second Cout columns of w1s (one weight push, wider N).
    taps1 = [xp[dy:dy + TRm, dx:dx + W, :]
             for dy in range(3) for dx in range(3)]
    p1 = jnp.concatenate(taps1, axis=-1).reshape(TRm * W, 9 * Cin)
    fused = jnp.dot(p1, w1s_ref[...],
                    preferred_element_type=jnp.float32)    # (TRm*W, 2*Cout)
    fused = fused.reshape(TRm, W, 2 * Cout)
    h = jnp.maximum(fused[:, :, :Cout] + b1_ref[...], 0.0)  # conv1->BN1->ReLU
    sc = fused[1:TR + 1, :, Cout:]                           # shortcut rows

    # ---- stage ReLU output (bf16) for conv2, with its 1-pixel halo -----------
    # TODO(synk): the W-offset-1 interior store is a masked, tile-crossing
    # store; an aligned store + roll/mask tap construction would move that
    # cost onto the XLU/VPU which have slack.
    pad2_scr[:, 1:W + 1, :] = h.astype(jnp.bfloat16)
    pad2_scr[:, 0:1, :] = jnp.zeros((TRm, 1, Cout), jnp.bfloat16)
    pad2_scr[:, W + 1:W + 2, :] = jnp.zeros((TRm, 1, Cout), jnp.bfloat16)

    @pl.when(t == 0)                      # image-top zero padding for conv2
    def _():
        pad2_scr[0:1, :, :] = jnp.zeros((1, Wp, Cout), jnp.bfloat16)

    @pl.when(t == n_t - 1)                # image-bottom zero padding for conv2
    def _():
        pad2_scr[TR + 1:TR + 2, :, :] = jnp.zeros((1, Wp, Cout), jnp.bfloat16)

    # ---- conv2 (3x3, BN2 scale folded) ---------------------------------------
    hp = pad2_scr[...]                                      # (TR+2, W+2, Cout)
    taps2 = [hp[dy:dy + TR, dx:dx + W, :]
             for dy in range(3) for dx in range(3)]
    p2 = jnp.concatenate(taps2, axis=-1).reshape(TR * W, 9 * Cout)
    a2 = jnp.dot(p2, w2_ref[...],
                 preferred_element_type=jnp.float32)        # (TR*W, Cout) f32

    # ---- residual add (+ folded BN2 bias + shortcut bias) + ReLU -------------
    y = jnp.maximum(a2 + sc.reshape(TR * W, Cout) + bout_ref[...], 0.0)

    # ---- AvgPool2d(2) ---------------------------------------------------------
    yr = y.reshape(TRp, 2, W, Cout)                  # free leading-dim reshape
    rs_scr[...] = yr[:, 0, :, :] + yr[:, 1, :, :]    # H-direction pool
    pooled = (rs_scr[:, pl.ds(0, W2, stride=2), :]   # W-direction, stride-2 reads
              + rs_scr[:, pl.ds(1, W2, stride=2), :])
    # Lane-dense store: flatten (W2, Cout) onto the lane axis.
    o_ref[...] = (0.25 * pooled).reshape(1, TRp, W2 * Cout).astype(o_ref.dtype)


def residual_block_forward(x_nchw, params):
    """x_nchw: (N, Cin, H, W). Returns (N, Cout, H//2, W//2)."""
    (w1, b1, w2, b2, ws, bs,
     g1, be1, m1, v1, g2, be2, m2, v2, eps) = params
    N, Cin, H, W = x_nchw.shape
    Cout = w1.shape[-1]                  # w1 is HWIO: (3, 3, Cin, Cout)
    assert H % 2 == 0 and W % 2 == 0, "AvgPool2d(2) needs even H and W"
    H2, W2 = H // 2, W // 2

    # Pooled-row tile: multiple-of-8 tiles keep the output store aligned;
    # fall back to a single row tile when H2 does not split that way.
    TRp = 8 if (H2 % 8 == 0 and H2 > 8) else H2
    n_t = H2 // TRp
    TR = 2 * TRp

    # NHWC, bf16 activations (halves HBM->VMEM DMA; the MXU consumes bf16
    # anyway), 2-row / 1-col zero halo so every row tile reads a plain window.
    # TODO(synk): the transpose+pad are extra HBM copies; a full model should
    # keep activations NHWC end-to-end and fuse the halo into the producer.
    x = jnp.transpose(x_nchw, (0, 2, 3, 1)).astype(jnp.bfloat16)
    xpad = jnp.pad(x, ((0, 0), (2, 2), (1, 1), (0, 0)))

    # Fold eval-mode BatchNorm into per-channel scale/bias; fold the scale
    # directly into the conv weights (trace-time, free).
    s1 = g1 / jnp.sqrt(v1 + eps)
    bias1 = (b1 - m1) * s1 + be1
    s2 = g2 / jnp.sqrt(v2 + eps)
    bias2 = (b2 - m2) * s2 + be2

    # conv1 weights (BN1 scale folded) | zero-padded 1x1 shortcut weights.
    # Flattened-K row order matches the in-kernel tap order t = dy*3 + dx.
    w1f = (w1 * s1[None, None, None, :]).reshape(9 * Cin, Cout)
    ws_pad = jnp.zeros((9 * Cin, Cout), jnp.float32)
    ws_pad = ws_pad.at[4 * Cin:5 * Cin].set(ws.reshape(Cin, Cout))
    w1s = jnp.concatenate([w1f, ws_pad], axis=1).astype(jnp.bfloat16)
    w2f = (w2 * s2[None, None, None, :]).reshape(9 * Cout, Cout).astype(jnp.bfloat16)

    b1_row = bias1.reshape(1, Cout).astype(jnp.float32)
    bout_row = (bias2 + bs).reshape(1, Cout).astype(jnp.float32)

    # Rough per-step VMEM footprint -> explicit scoped-VMEM bound (v7x-safe).
    est = (2 * (H + 4) * (W + 2) * Cin * 2           # double-buffered input block
           + 2 * TRp * W2 * Cout * 4                 # double-buffered output block
           + 2 * (9 * Cin * 2 * Cout + 9 * Cout * Cout) * 2
           + (TR + 2) * (W + 2) * Cout * 2 + TRp * W * Cout * 4
           + (TR + 2) * W * 9 * Cin * 2 + TR * W * 9 * Cout * 2
           + (TR + 2) * W * 2 * Cout * 4 + 2 * TR * W * Cout * 4)
    vmem_limit = int(min(64 * 1024 * 1024, max(32 * 1024 * 1024, 2 * est)))

    out_flat = pl.pallas_call(
        _residual_block_kernel,
        out_shape=jax.ShapeDtypeStruct((N, H2, W2 * Cout), jnp.float32),
        grid=(N, n_t),
        in_specs=[
            # Full padded image stays resident across the row-tile axis.
            pl.BlockSpec((1, H + 4, W + 2, Cin), lambda n, t: (n, 0, 0, 0)),
            pl.BlockSpec((9 * Cin, 2 * Cout), lambda n, t: (0, 0)),
            pl.BlockSpec((1, Cout), lambda n, t: (0, 0)),
            pl.BlockSpec((9 * Cout, Cout), lambda n, t: (0, 0)),
            pl.BlockSpec((1, Cout), lambda n, t: (0, 0)),
        ],
        out_specs=pl.BlockSpec((1, TRp, W2 * Cout), lambda n, t: (n, t, 0)),
        scratch_shapes=[
            pltpu.VMEM((TR + 2, W + 2, Cout), jnp.bfloat16),  # conv2 input tile
            pltpu.VMEM((TRp, W, Cout), jnp.float32),          # pool row sums
        ],
        compiler_params=pltpu.CompilerParams(
            dimension_semantics=("parallel", "arbitrary"),
            vmem_limit_bytes=vmem_limit),
    )(xpad, w1s, b1_row, w2f, bout_row)

    out_nhwc = out_flat.reshape(N, H2, W2, Cout)
    return jnp.transpose(out_nhwc, (0, 3, 1, 2))


def ref_forward(x_nchw, params):
    """Pure-JAX reference matching PyTorch semantics (eval-mode BN)."""
    (w1, b1, w2, b2, ws, bs,
     g1, be1, m1, v1, g2, be2, m2, v2, eps) = params

    def conv(x, w_hwio, b, pad):
        w_oihw = jnp.transpose(w_hwio, (3, 2, 0, 1))
        y = lax.conv_general_dilated(
            x, w_oihw, window_strides=(1, 1), padding=pad,
            dimension_numbers=("NCHW", "OIHW", "NCHW"),
            precision=lax.Precision.HIGHEST)
        return y + b.reshape(1, -1, 1, 1)

    def bn(x, g, be, m, v):
        inv = 1.0 / jnp.sqrt(v.reshape(1, -1, 1, 1) + eps)
        return (x - m.reshape(1, -1, 1, 1)) * inv * g.reshape(1, -1, 1, 1) \
            + be.reshape(1, -1, 1, 1)

    shortcut = conv(x_nchw, ws, bs, [(0, 0), (0, 0)])
    out = conv(x_nchw, w1, b1, [(1, 1), (1, 1)])
    out = jax.nn.relu(bn(out, g1, be1, m1, v1))
    out = conv(out, w2, b2, [(1, 1), (1, 1)])
    out = bn(out, g2, be2, m2, v2)
    out = jax.nn.relu(out + shortcut)
    N, C, H, W = out.shape
    return out.reshape(N, C, H // 2, 2, W // 2, 2).mean(axis=(3, 5))


def make_params(key, cin, cout):
    ks = jax.random.split(key, 14)
    w1 = 0.1 * jax.random.normal(ks[0], (3, 3, cin, cout), jnp.float32)
    b1 = 0.1 * jax.random.normal(ks[1], (cout,), jnp.float32)
    w2 = 0.1 * jax.random.normal(ks[2], (3, 3, cout, cout), jnp.float32)
    b2 = 0.1 * jax.random.normal(ks[3], (cout,), jnp.float32)
    ws = 0.1 * jax.random.normal(ks[4], (1, 1, cin, cout), jnp.float32)
    bs = 0.1 * jax.random.normal(ks[5], (cout,), jnp.float32)
    g1 = 1.0 + 0.1 * jax.random.normal(ks[6], (cout,), jnp.float32)
    be1 = 0.1 * jax.random.normal(ks[7], (cout,), jnp.float32)
    m1 = 0.1 * jax.random.normal(ks[8], (cout,), jnp.float32)
    v1 = jax.random.uniform(ks[9], (cout,), jnp.float32, 0.5, 1.5)
    g2 = 1.0 + 0.1 * jax.random.normal(ks[10], (cout,), jnp.float32)
    be2 = 0.1 * jax.random.normal(ks[11], (cout,), jnp.float32)
    m2 = 0.1 * jax.random.normal(ks[12], (cout,), jnp.float32)
    v2 = jax.random.uniform(ks[13], (cout,), jnp.float32, 0.5, 1.5)
    eps = jnp.float32(1e-5)
    return (w1, b1, w2, b2, ws, bs, g1, be1, m1, v1, g2, be2, m2, v2, eps)


if __name__ == "__main__":
    key = jax.random.PRNGKey(0)
    k_x, k_p = jax.random.split(key)

    # Small shapes; H=W=32 exercises the multi-row-tile path (grid = (2, 2))
    # and gives a 128-lane (lane-dense, aligned) output store.
    N, Cin, Cout, H, W = 2, 4, 8, 32, 32
    x = jax.random.normal(k_x, (N, Cin, H, W), jnp.float32)
    params = make_params(k_p, Cin, Cout)

    out = jax.jit(residual_block_forward)(x, params)
    out = jax.block_until_ready(out)

    ref = ref_forward(x, params)
    assert out.shape == (N, Cout, H // 2, W // 2), out.shape
    err = float(jnp.max(jnp.abs(out - ref)))
    assert jnp.allclose(out, ref, rtol=2e-2, atol=2e-2), err

    print("KERNEL_OK")
</pallas_src>

<mosaic_0001>
module attributes {stable_mosaic.version = 11 : i64} {
  func.func @_residual_block_kernel(%arg0: i32, %arg1: i32, %arg2: memref<1x36x34x4xbf16, #tpu.memory_space<vmem>>, %arg3: memref<36x16xbf16, #tpu.memory_space<vmem>>, %arg4: memref<1x8xf32, #tpu.memory_space<vmem>>, %arg5: memref<72x8xbf16, #tpu.memory_space<vmem>>, %arg6: memref<1x8xf32, #tpu.memory_space<vmem>>, %arg7: memref<1x8x128xf32, #tpu.memory_space<vmem>>, %arg8: memref<18x34x8xbf16, #tpu.memory_space<vmem>>, %arg9: memref<8x32x8xf32, #tpu.memory_space<vmem>>) attributes {dimension_semantics = [#tpu.dimension_semantics<parallel>, #tpu.dimension_semantics<arbitrary>], iteration_bounds = array<i64: 2, 2>, scalar_prefetch = 0 : i64, scratch_operands = 2 : i64, tpu.core_type = #tpu.core_type<tc>, window_params = [{transform_indices = @transform_0, window_bounds = array<i64: 1, 36, 34, 4>}, {pipeline_mode = #tpu.pipeline_mode<synchronous>, transform_indices = @transform_1, window_bounds = array<i64: 36, 16>}, {pipeline_mode = #tpu.pipeline_mode<synchronous>, transform_indices = @transform_2, window_bounds = array<i64: 1, 8>}, {pipeline_mode = #tpu.pipeline_mode<synchronous>, transform_indices = @transform_3, window_bounds = array<i64: 72, 8>}, {pipeline_mode = #tpu.pipeline_mode<synchronous>, transform_indices = @transform_4, window_bounds = array<i64: 1, 8>}, {transform_indices = @transform_5, window_bounds = array<i64: 1, 8, 128>}]} {
    %c16_i32 = arith.constant 16 : i32
    %0 = arith.muli %arg1, %c16_i32 : i32
    %c0 = arith.constant 0 : index
    %1 = arith.index_cast %0 : i32 to index
    %c0_0 = arith.constant 0 : index
    %c0_1 = arith.constant 0 : index
    %2 = vector.load %arg2[%c0, %1, %c0_0, %c0_1] : memref<1x36x34x4xbf16, #tpu.memory_space<vmem>>, vector<1x20x34x4xbf16>
    %3 = vector.shape_cast %2 : vector<1x20x34x4xbf16> to vector<20x34x4xbf16>
    %4 = vector.extract_strided_slice %3 {offsets = [0, 0, 0], sizes = [18, 32, 4], strides = [1, 1, 1]} : vector<20x34x4xbf16> to vector<18x32x4xbf16>
    %5 = vector.extract_strided_slice %3 {offsets = [0, 1, 0], sizes = [18, 32, 4], strides = [1, 1, 1]} : vector<20x34x4xbf16> to vector<18x32x4xbf16>
    %6 = vector.extract_strided_slice %3 {offsets = [0, 2, 0], sizes = [18, 32, 4], strides = [1, 1, 1]} : vector<20x34x4xbf16> to vector<18x32x4xbf16>
    %7 = vector.extract_strided_slice %3 {offsets = [1, 0, 0], sizes = [18, 32, 4], strides = [1, 1, 1]} : vector<20x34x4xbf16> to vector<18x32x4xbf16>
    %8 = vector.extract_strided_slice %3 {offsets = [1, 1, 0], sizes = [18, 32, 4], strides = [1, 1, 1]} : vector<20x34x4xbf16> to vector<18x32x4xbf16>
    %9 = vector.extract_strided_slice %3 {offsets = [1, 2, 0], sizes = [18, 32, 4], strides = [1, 1, 1]} : vector<20x34x4xbf16> to vector<18x32x4xbf16>
    %10 = vector.extract_strided_slice %3 {offsets = [2, 0, 0], sizes = [18, 32, 4], strides = [1, 1, 1]} : vector<20x34x4xbf16> to vector<18x32x4xbf16>
    %11 = vector.extract_strided_slice %3 {offsets = [2, 1, 0], sizes = [18, 32, 4], strides = [1, 1, 1]} : vector<20x34x4xbf16> to vector<18x32x4xbf16>
    %12 = vector.extract_strided_slice %3 {offsets = [2, 2, 0], sizes = [18, 32, 4], strides = [1, 1, 1]} : vector<20x34x4xbf16> to vector<18x32x4xbf16>
    %13 = tpu.concatenate %4, %5, %6, %7, %8, %9, %10, %11, %12 in 2 : vector<18x32x4xbf16>, vector<18x32x4xbf16>, vector<18x32x4xbf16>, vector<18x32x4xbf16>, vector<18x32x4xbf16>, vector<18x32x4xbf16>, vector<18x32x4xbf16>, vector<18x32x4xbf16>, vector<18x32x4xbf16> -> vector<18x32x36xbf16>
    %14 = vector.shape_cast %13 : vector<18x32x36xbf16> to vector<576x36xbf16>
    %c0_2 = arith.constant 0 : index
    %c0_3 = arith.constant 0 : index
    %15 = vector.load %arg3[%c0_2, %c0_3] : memref<36x16xbf16, #tpu.memory_space<vmem>>, vector<36x16xbf16>
    %cst = arith.constant dense<0.000000e+00> : vector<576x16xf32>
    %16 = tpu.matmul %14, %15, %cst {dimension_numbers = #tpu.dot_dimension_numbers<[1], [0], [0], [1], [0, 0, 1, 1], [], []>} : vector<576x36xbf16>, vector<36x16xbf16>, vector<576x16xf32> -> vector<576x16xf32>
    %17 = vector.shape_cast %16 : vector<576x16xf32> to vector<18x32x16xf32>
    %18 = vector.extract_strided_slice %17 {offsets = [0, 0, 0], sizes = [18, 32, 8], strides = [1, 1, 1]} : vector<18x32x16xf32> to vector<18x32x8xf32>
    %c0_4 = arith.constant 0 : index
    %c0_5 = arith.constant 0 : index
    %19 = vector.load %arg4[%c0_4, %c0_5] : memref<1x8xf32, #tpu.memory_space<vmem>>, vector<1x8xf32>
    %20 = vector.shape_cast %19 : vector<1x8xf32> to vector<1x1x8xf32>
    %21 = vector.broadcast %20 : vector<1x1x8xf32> to vector<18x32x8xf32>
    %22 = arith.addf %18, %21 : vector<18x32x8xf32>
    %cst_6 = arith.constant 0.000000e+00 : f32
    %23 = vector.broadcast %cst_6 : f32 to vector<18x32x8xf32>
    %24 = arith.maximumf %22, %23 : vector<18x32x8xf32>
    %25 = vector.extract_strided_slice %17 {offsets = [1, 0, 8], sizes = [16, 32, 8], strides = [1, 1, 1]} : vector<18x32x16xf32> to vector<16x32x8xf32>
    %26 = arith.truncf %24 : vector<18x32x8xf32> to vector<18x32x8xbf16>
    %c0_7 = arith.constant 0 : index
    %c1 = arith.constant 1 : index
    %c0_8 = arith.constant 0 : index
    %27 = vector.load %arg8[%c0_7, %c1, %c0_8] : memref<18x34x8xbf16, #tpu.memory_space<vmem>>, vector<18x32x8xbf16>
    tpu.vector_store %arg8[%c0_7, %c1, %c0_8], %26 {strides = array<i32>} : memref<18x34x8xbf16, #tpu.memory_space<vmem>>, vector<18x32x8xbf16>,
    %cst_9 = arith.constant 0.000000e+00 : bf16
    %28 = vector.broadcast %cst_9 : bf16 to vector<18x1x8xbf16>
    %c0_10 = arith.constant 0 : index
    %c0_11 = arith.constant 0 : index
    %c0_12 = arith.constant 0 : index
    %29 = vector.load %arg8[%c0_10, %c0_11, %c0_12] : memref<18x34x8xbf16, #tpu.memory_space<vmem>>, vector<18x1x8xbf16>
    tpu.vector_store %arg8[%c0_10, %c0_11, %c0_12], %28 {strides = array<i32>} : memref<18x34x8xbf16, #tpu.memory_space<vmem>>, vector<18x1x8xbf16>,
    %cst_13 = arith.constant 0.000000e+00 : bf16
    %30 = vector.broadcast %cst_13 : bf16 to vector<18x1x8xbf16>
    %c0_14 = arith.constant 0 : index
    %c33 = arith.constant 33 : index
    %c0_15 = arith.constant 0 : index
    %31 = vector.load %arg8[%c0_14, %c33, %c0_15] : memref<18x34x8xbf16, #tpu.memory_space<vmem>>, vector<18x1x8xbf16>
    tpu.vector_store %arg8[%c0_14, %c33, %c0_15], %30 {strides = array<i32>} : memref<18x34x8xbf16, #tpu.memory_space<vmem>>, vector<18x1x8xbf16>,
    %c0_i32 = arith.constant 0 : i32
    %32 = arith.cmpi eq, %arg1, %c0_i32 : i32
    %33 = arith.extui %32 : i1 to i32
    %c0_i32_16 = arith.constant 0 : i32
    %34 = arith.cmpi ne, %33, %c0_i32_16 : i32
    scf.if %34 {
      %cst_40 = arith.constant 0.000000e+00 : bf16
      %73 = vector.broadcast %cst_40 : bf16 to vector<1x34x8xbf16>
      %c0_41 = arith.constant 0 : index
      %c0_42 = arith.constant 0 : index
      %c0_43 = arith.constant 0 : index
      %74 = vector.load %arg8[%c0_41, %c0_42, %c0_43] : memref<18x34x8xbf16, #tpu.memory_space<vmem>>, vector<1x34x8xbf16>
      tpu.vector_store %arg8[%c0_41, %c0_42, %c0_43], %73 {strides = array<i32>} : memref<18x34x8xbf16, #tpu.memory_space<vmem>>, vector<1x34x8xbf16>,
    } else {
    }
    %c1_i32 = arith.constant 1 : i32
    %35 = arith.cmpi eq, %arg1, %c1_i32 : i32
    %36 = arith.extui %35 : i1 to i32
    %c0_i32_17 = arith.constant 0 : i32
    %37 = arith.cmpi ne, %36, %c0_i32_17 : i32
    scf.if %37 {
      %cst_40 = arith.constant 0.000000e+00 : bf16
      %73 = vector.broadcast %cst_40 : bf16 to vector<1x34x8xbf16>
      %c17 = arith.constant 17 : index
      %c0_41 = arith.constant 0 : index
      %c0_42 = arith.constant 0 : index
      %74 = vector.load %arg8[%c17, %c0_41, %c0_42] : memref<18x34x8xbf16, #tpu.memory_space<vmem>>, vector<1x34x8xbf16>
      tpu.vector_store %arg8[%c17, %c0_41, %c0_42], %73 {strides = array<i32>} : memref<18x34x8xbf16, #tpu.memory_space<vmem>>, vector<1x34x8xbf16>,
    } else {
    }
    %c0_18 = arith.constant 0 : index
    %c0_19 = arith.constant 0 : index
    %c0_20 = arith.constant 0 : index
    %38 = vector.load %arg8[%c0_18, %c0_19, %c0_20] : memref<18x34x8xbf16, #tpu.memory_space<vmem>>, vector<18x34x8xbf16>
    %39 = vector.extract_strided_slice %38 {offsets = [0, 0, 0], sizes = [16, 32, 8], strides = [1, 1, 1]} : vector<18x34x8xbf16> to vector<16x32x8xbf16>
    %40 = vector.extract_strided_slice %38 {offsets = [0, 1, 0], sizes = [16, 32, 8], strides = [1, 1, 1]} : vector<18x34x8xbf16> to vector<16x32x8xbf16>
    %41 = vector.extract_strided_slice %38 {offsets = [0, 2, 0], sizes = [16, 32, 8], strides = [1, 1, 1]} : vector<18x34x8xbf16> to vector<16x32x8xbf16>
    %42 = vector.extract_strided_slice %38 {offsets = [1, 0, 0], sizes = [16, 32, 8], strides = [1, 1, 1]} : vector<18x34x8xbf16> to vector<16x32x8xbf16>
    %43 = vector.extract_strided_slice %38 {offsets = [1, 1, 0], sizes = [16, 32, 8], strides = [1, 1, 1]} : vector<18x34x8xbf16> to vector<16x32x8xbf16>
    %44 = vector.extract_strided_slice %38 {offsets = [1, 2, 0], sizes = [16, 32, 8], strides = [1, 1, 1]} : vector<18x34x8xbf16> to vector<16x32x8xbf16>
    %45 = vector.extract_strided_slice %38 {offsets = [2, 0, 0], sizes = [16, 32, 8], strides = [1, 1, 1]} : vector<18x34x8xbf16> to vector<16x32x8xbf16>
    %46 = vector.extract_strided_slice %38 {offsets = [2, 1, 0], sizes = [16, 32, 8], strides = [1, 1, 1]} : vector<18x34x8xbf16> to vector<16x32x8xbf16>
    %47 = vector.extract_strided_slice %38 {offsets = [2, 2, 0], sizes = [16, 32, 8], strides = [1, 1, 1]} : vector<18x34x8xbf16> to vector<16x32x8xbf16>
    %48 = tpu.concatenate %39, %40, %41, %42, %43, %44, %45, %46, %47 in 2 : vector<16x32x8xbf16>, vector<16x32x8xbf16>, vector<16x32x8xbf16>, vector<16x32x8xbf16>, vector<16x32x8xbf16>, vector<16x32x8xbf16>, vector<16x32x8xbf16>, vector<16x32x8xbf16>, vector<16x32x8xbf16> -> vector<16x32x72xbf16>
    %49 = vector.shape_cast %48 : vector<16x32x72xbf16> to vector<512x72xbf16>
    %c0_21 = arith.constant 0 : index
    %c0_22 = arith.constant 0 : index
    %50 = vector.load %arg5[%c0_21, %c0_22] : memref<72x8xbf16, #tpu.memory_space<vmem>>, vector<72x8xbf16>
    %cst_23 = arith.constant dense<0.000000e+00> : vector<512x8xf32>
    %51 = tpu.matmul %49, %50, %cst_23 {dimension_numbers = #tpu.dot_dimension_numbers<[1], [0], [0], [1], [0, 0, 1, 1], [], []>} : vector<512x72xbf16>, vector<72x8xbf16>, vector<512x8xf32> -> vector<512x8xf32>
    %52 = vector.shape_cast %25 : vector<16x32x8xf32> to vector<512x8xf32>
    %53 = arith.addf %51, %52 : vector<512x8xf32>
    %c0_24 = arith.constant 0 : index
    %c0_25 = arith.constant 0 : index
    %54 = vector.load %arg6[%c0_24, %c0_25] : memref<1x8xf32, #tpu.memory_space<vmem>>, vector<1x8xf32>
    %55 = vector.broadcast %54 : vector<1x8xf32> to vector<512x8xf32>
    %56 = arith.addf %53, %55 : vector<512x8xf32>
    %cst_26 = arith.constant 0.000000e+00 : f32
    %57 = vector.broadcast %cst_26 : f32 to vector<512x8xf32>
    %58 = arith.maximumf %56, %57 : vector<512x8xf32>
    %59 = vector.shape_cast %58 : vector<512x8xf32> to vector<8x2x32x8xf32>
    %60 = vector.extract_strided_slice %59 {offsets = [0, 0, 0, 0], sizes = [8, 1, 32, 8], strides = [1, 1, 1, 1]} : vector<8x2x32x8xf32> to vector<8x1x32x8xf32>
    %61 = vector.shape_cast %60 : vector<8x1x32x8xf32> to vector<8x32x8xf32>
    %62 = vector.extract_strided_slice %59 {offsets = [0, 1, 0, 0], sizes = [8, 1, 32, 8], strides = [1, 1, 1, 1]} : vector<8x2x32x8xf32> to vector<8x1x32x8xf32>
    %63 = vector.shape_cast %62 : vector<8x1x32x8xf32> to vector<8x32x8xf32>
    %64 = arith.addf %61, %63 : vector<8x32x8xf32>
    %c0_27 = arith.constant 0 : index
    %c0_28 = arith.constant 0 : index
    %c0_29 = arith.constant 0 : index
    %65 = vector.load %arg9[%c0_27, %c0_28, %c0_29] : memref<8x32x8xf32, #tpu.memory_space<vmem>>, vector<8x32x8xf32>
    tpu.vector_store %arg9[%c0_27, %c0_28, %c0_29], %64 {strides = array<i32>} : memref<8x32x8xf32, #tpu.memory_space<vmem>>, vector<8x32x8xf32>,
    %c0_30 = arith.constant 0 : index
    %c0_31 = arith.constant 0 : index
    %c0_32 = arith.constant 0 : index
    %66 = tpu.strided_load %arg9[%c0_30, %c0_31, %c0_32] {strides = array<i32: 1, 2, 1>} : memref<8x32x8xf32, #tpu.memory_space<vmem>>, vector<8x16x8xf32>
    %c0_33 = arith.constant 0 : index
    %c1_34 = arith.constant 1 : index
    %c0_35 = arith.constant 0 : index
    %67 = tpu.strided_load %arg9[%c0_33, %c1_34, %c0_35] {strides = array<i32: 1, 2, 1>} : memref<8x32x8xf32, #tpu.memory_space<vmem>>, vector<8x16x8xf32>
    %68 = arith.addf %66, %67 : vector<8x16x8xf32>
    %cst_36 = arith.constant 2.500000e-01 : f32
    %69 = vector.broadcast %cst_36 : f32 to vector<8x16x8xf32>
    %70 = arith.mulf %69, %68 : vector<8x16x8xf32>
    %71 = vector.shape_cast %70 : vector<8x16x8xf32> to vector<1x8x128xf32>
    %c0_37 = arith.constant 0 : index
    %c0_38 = arith.constant 0 : index
    %c0_39 = arith.constant 0 : index
    %72 = vector.load %arg7[%c0_37, %c0_38, %c0_39] : memref<1x8x128xf32, #tpu.memory_space<vmem>>, vector<1x8x128xf32>
    tpu.vector_store %arg7[%c0_37, %c0_38, %c0_39], %71 {strides = array<i32>} : memref<1x8x128xf32, #tpu.memory_space<vmem>>, vector<1x8x128xf32>,
    return
  }
  func.func @transform_0(%arg0: i32, %arg1: i32) -> (i32, i32, i32, i32) {
    %c0_i32 = arith.constant 0 : i32
    %c0_i32_0 = arith.constant 0 : i32
    %c0_i32_1 = arith.constant 0 : i32
    %c0_i32_2 = arith.constant 0 : i32
    return %arg0, %c0_i32, %c0_i32_0, %c0_i32_1 : i32, i32, i32, i32
  }
  func.func @transform_1(%arg0: i32, %arg1: i32) -> (i32, i32) {
    %c0_i32 = arith.constant 0 : i32
    %c0_i32_0 = arith.constant 0 : i32
    %c0_i32_1 = arith.constant 0 : i32
    return %c0_i32, %c0_i32_0 : i32, i32
  }
  func.func @transform_2(%arg0: i32, %arg1: i32) -> (i32, i32) {
    %c0_i32 = arith.constant 0 : i32
    %c0_i32_0 = arith.constant 0 : i32
    %c0_i32_1 = arith.constant 0 : i32
    return %c0_i32, %c0_i32_0 : i32, i32
  }
  func.func @transform_3(%arg0: i32, %arg1: i32) -> (i32, i32) {
    %c0_i32 = arith.constant 0 : i32
    %c0_i32_0 = arith.constant 0 : i32
    %c0_i32_1 = arith.constant 0 : i32
    return %c0_i32, %c0_i32_0 : i32, i32
  }
  func.func @transform_4(%arg0: i32, %arg1: i32) -> (i32, i32) {
    %c0_i32 = arith.constant 0 : i32
    %c0_i32_0 = arith.constant 0 : i32
    %c0_i32_1 = arith.constant 0 : i32
    return %c0_i32, %c0_i32_0 : i32, i32
  }
  func.func @transform_5(%arg0: i32, %arg1: i32) -> (i32, i32, i32) {
    %c0_i32 = arith.constant 0 : i32
    %c0_i32_0 = arith.constant 0 : i32
    return %arg0, %arg1, %c0_i32 : i32, i32, i32
  }
}

</mosaic_0001>

<llo_original>
// kernel: residual_block_forward.1
$region0: #{residual_block_forward.1}
  #allocation0 [shape = 'u32[]', space=smem, size = 0x4, offset = 0x4, fixed_abs, tag = 'smem constant byte address 0x4 - core index']
  #allocation1 [shape = 'u32[144,128]{1,0:T(1,128)}', space=vmem, size = 0x12000, scoped, tag = 'internal scratch']
  #allocation2 [shape = 'bf16[18,34,8]{2,1,0:T(8,128)(2,1)}', space=vmem, size = 0x2d000, scoped, tag = 'scratch operand']
  #allocation3 [shape = 'f32[8,32,8]{2,1,0:T(8,128)}', space=vmem, size = 0x20000, scoped, tag = 'scratch operand']
  %s0 = inlined_call_operand.vmem [shape: bf16[2,36,34,4], index: 0, kind: input, shape index: {}]
  %s1 = inlined_call_operand.vmem [shape: bf16[36,16], index: 1, kind: input, shape index: {}]
  %s2 = inlined_call_operand.vmem [shape: f32[1,8], index: 2, kind: input, shape index: {}]
  %s3 = inlined_call_operand.vmem [shape: bf16[72,8], index: 3, kind: input, shape index: {}]
  %s4 = inlined_call_operand.vmem [shape: f32[1,8], index: 4, kind: input, shape index: {}]
  %s5 = inlined_call_operand.vmem [shape: f32[2,16,128], index: 5, kind: output, shape index: {}]
  %s6 = sld [smem:[#allocation0]]
  $region61: #{residual_block_forward.1} parent=0
    _
  %s8 = ssub.s32 1, %s6
  %s9 = scalar_select 0, %s8, %s6
  loop: start=0, step=1, limit=6
  $region2: #{residual_block_forward.1} parent=0 // loop_pre_header
    _
  $region3: #{residual_block_forward.1} parent=0 // loop_header
    %s11 = sphi 0, %s15
    %p12 = scmp.ge.s32.totalorder %s11, 6
    %s18 = sphi 0, %s30
    %s19 = sphi 0, %s26
    %s20 = sphi 0, %s18
    %s21 = sphi 0, %s19
    %s22 = sphi 0, %s20
    %s23 = sphi 0, %s21
    %s33 = sphi 0, %s35
    %s36 = sphi 0, %s33
    %s37 = sphi 0, %s36
    %s53 = sphi 0, %s37
    %s57 = sphi 0, %s57
    %s59 = sphi 0, %s57
    %s60 = sphi 0, %s59
    %s74 = sphi 0, %s60
    %s78 = sphi 0, %s78
    %s80 = sphi 0, %s78
    %s81 = sphi 0, %s80
    %s95 = sphi 0, %s81
    %s99 = sphi 0, %s99
    %s101 = sphi 0, %s99
    %s102 = sphi 0, %s101
    %s116 = sphi 0, %s102
    %s120 = sphi 0, %s120
    %s122 = sphi 0, %s120
    %s123 = sphi 0, %s122
    %s137 = sphi 0, %s123
    %s145 = sphi 0, %s147
    %s148 = sphi 0, %s145
    %s149 = sphi 0, %s148
    %s165 = sphi 0, %s149
  $region4: #{residual_block_forward.1} parent=0 // loop_header_branch
    %14 = sbr.rel (%p12) target = $region8
  $region5: #{residual_block_forward.1} parent=0 // loop_body
    %s16 = ssub.s32 %s11, 1
    %s17 = ssub.s32 %s11, 2
    %s24 = sadd.s32 1, %s19
    %p25 = scmp.ge.s32.totalorder %s24, 2
    %s26 = scalar_select %p25, 0, %s24
    %s27 = sadd.s32 1, %s18
    %s28 = scalar_select %p25, %s27, %s18
    %p29 = scmp.ge.s32.totalorder %s28, 2
    %s30 = scalar_select %p29, 0, %s28
    %s31 = ssub.s32 %s18, %s30
    %p32 = scmp.eq.s32.totalorder %s31, 0
    %s34 = sadd.s32 %s33, 1
    %s35 = scalar_select %p32, %s33, %s34
    %p38 = pneg %p32
    %p39 = scmp.eq.s32.totalorder %s11, 3
    %p40 = por %p38, %p39
    %p41 = scmp.ne.s32.totalorder %s33, %s36
    %p42 = scmp.eq.s32.totalorder %s11, 0
    %p43 = por %p41, %p42
    %p44 = scmp.ne.s32.totalorder %s33, %s36
    %p45 = scmp.eq.s32.totalorder %s16, 3
    %p46 = por %p44, %p45
    %p47 = scmp.ne.s32.totalorder %s36, %s37
    %p48 = scmp.eq.s32.totalorder %s16, 0
    %p49 = por %p47, %p48
    %p50 = scmp.ne.s32.totalorder %s36, %s37
    %p51 = scmp.eq.s32.totalorder %s17, 3
    %p52 = por %p50, %p51
    %p54 = scmp.ne.s32.totalorder %s37, %s53
    %p55 = scmp.eq.s32.totalorder %s17, 0
    %p56 = por %p54, %p55
    %s58 = sadd.s32 %s57, 1
    %p61 = scmp.eq.s32.totalorder %s11, 3
    %p62 = scmp.ne.s32.totalorder %s57, %s59
    %p63 = scmp.eq.s32.totalorder %s11, 0
    %p64 = por %p62, %p63
    %p65 = scmp.ne.s32.totalorder %s57, %s59
    %p66 = scmp.eq.s32.totalorder %s16, 3
    %p67 = por %p65, %p66
    %p68 = scmp.ne.s32.totalorder %s59, %s60
    %p69 = scmp.eq.s32.totalorder %s16, 0
    %p70 = por %p68, %p69
    %p71 = scmp.ne.s32.totalorder %s59, %s60
    %p72 = scmp.eq.s32.totalorder %s17, 3
    %p73 = por %p71, %p72
    %p75 = scmp.ne.s32.totalorder %s60, %s74
    %p76 = scmp.eq.s32.totalorder %s17, 0
    %p77 = por %p75, %p76
    %s79 = sadd.s32 %s78, 1
    %p82 = scmp.eq.s32.totalorder %s11, 3
    %p83 = scmp.ne.s32.totalorder %s78, %s80
    %p84 = scmp.eq.s32.totalorder %s11, 0
    %p85 = por %p83, %p84
    %p86 = scmp.ne.s32.totalorder %s78, %s80
    %p87 = scmp.eq.s32.totalorder %s16, 3
    %p88 = por %p86, %p87
    %p89 = scmp.ne.s32.totalorder %s80, %s81
    %p90 = scmp.eq.s32.totalorder %s16, 0
    %p91 = por %p89, %p90
    %p92 = scmp.ne.s32.totalorder %s80, %s81
    %p93 = scmp.eq.s32.totalorder %s17, 3
    %p94 = por %p92, %p93
    %p96 = scmp.ne.s32.totalorder %s81, %s95
    %p97 = scmp.eq.s32.totalorder %s17, 0
    %p98 = por %p96, %p97
    %s100 = sadd.s32 %s99, 1
    %p103 = scmp.eq.s32.totalorder %s11, 3
    %p104 = scmp.ne.s32.totalorder %s99, %s101
    %p105 = scmp.eq.s32.totalorder %s11, 0
    %p106 = por %p104, %p105
    %p107 = scmp.ne.s32.totalorder %s99, %s101
    %p108 = scmp.eq.s32.totalorder %s16, 3
    %p109 = por %p107, %p108
    %p110 = scmp.ne.s32.totalorder %s101, %s102
    %p111 = scmp.eq.s32.totalorder %s16, 0
    %p112 = por %p110, %p111
    %p113 = scmp.ne.s32.totalorder %s101, %s102
    %p114 = scmp.eq.s32.totalorder %s17, 3
    %p115 = por %p113, %p114
    %p117 = scmp.ne.s32.totalorder %s102, %s116
    %p118 = scmp.eq.s32.totalorder %s17, 0
    %p119 = por %p117, %p118
    %s121 = sadd.s32 %s120, 1
    %p124 = scmp.eq.s32.totalorder %s11, 3
    %p125 = scmp.ne.s32.totalorder %s120, %s122
    %p126 = scmp.eq.s32.totalorder %s11, 0
    %p127 = por %p125, %p126
    %p128 = scmp.ne.s32.totalorder %s120, %s122
    %p129 = scmp.eq.s32.totalorder %s16, 3
    %p130 = por %p128, %p129
    %p131 = scmp.ne.s32.totalorder %s122, %s123
    %p132 = scmp.eq.s32.totalorder %s16, 0
    %p133 = por %p131, %p132
    %p134 = scmp.ne.s32.totalorder %s122, %s123
    %p135 = scmp.eq.s32.totalorder %s17, 3
    %p136 = por %p134, %p135
    %p138 = scmp.ne.s32.totalorder %s123, %s137
    %p139 = scmp.eq.s32.totalorder %s17, 0
    %p140 = por %p138, %p139
    %s141 = ssub.s32 %s18, %s30
    %s142 = ssub.s32 %s19, %s26
    %s143 = sor.u32 %s141, %s142
    %p144 = scmp.eq.s32.totalorder %s143, 0
    %s146 = sadd.s32 %s145, 1
    %s147 = scalar_select %p144, %s145, %s146
    %p150 = pneg %p144
    %p151 = scmp.eq.s32.totalorder %s11, 3
    %p152 = por %p150, %p151
    %p153 = scmp.ne.s32.totalorder %s145, %s148
    %p154 = scmp.eq.s32.totalorder %s11, 0
    %p155 = por %p153, %p154
    %p156 = scmp.ne.s32.totalorder %s145, %s148
    %p157 = scmp.eq.s32.totalorder %s16, 3
    %p158 = por %p156, %p157
    %p159 = scmp.ne.s32.totalorder %s148, %s149
    %p160 = scmp.eq.s32.totalorder %s16, 0
    %p161 = por %p159, %p160
    %p162 = scmp.ne.s32.totalorder %s148, %s149
    %p163 = scmp.eq.s32.totalorder %s17, 3
    %p164 = por %p162, %p163
    %p166 = scmp.ne.s32.totalorder %s149, %s165
    %p167 = scmp.eq.s32.totalorder %s17, 0
    %p168 = por %p166, %p167
    %p169 = scmp.le.s32.totalorder 1, %s11
    %p170 = scmp.lt.s32.totalorder %s11, 5
    %p171 = pnand %p169, %p170
    %p172 = pneg %p171
    // Predicated region
    $region9: #{residual_block_forward.1} parent=5 // pred_check
      _
    $region10: #{residual_block_forward.1} parent=5 // pred_check_branch
      %174 = sbr.rel (%p171) target = $region12
    $region11: #{residual_block_forward.1} parent=5 // pred_region
      %s175 = ssub.s32 %s11, 1
      // Predicated region
      $region13: #{residual_block_forward.1} parent=11 // pred_check
        %p176 = pneg %p70
      $region14: #{residual_block_forward.1} parent=11 // pred_check_branch
        %178 = sbr.rel (%p176) target = $region16
      $region15: #{residual_block_forward.1} parent=11 // pred_region
        _
      $region16: #{residual_block_forward.1} parent=11 // pred_fallthru
        _
      // Predicated region
      $region17: #{residual_block_forward.1} parent=11 // pred_check
        %p179 = pneg %p91
      $region18: #{residual_block_forward.1} parent=11 // pred_check_branch
        %181 = sbr.rel (%p179) target = $region20
      $region19: #{residual_block_forward.1} parent=11 // pred_region
        _
      $region20: #{residual_block_forward.1} parent=11 // pred_fallthru
        _
      // Predicated region
      $region21: #{residual_block_forward.1} parent=11 // pred_check
        %p182 = pneg %p112
      $region22: #{residual_block_forward.1} parent=11 // pred_check_branch
        %184 = sbr.rel (%p182) target = $region24
      $region23: #{residual_block_forward.1} parent=11 // pred_region
        _
      $region24: #{residual_block_forward.1} parent=11 // pred_fallthru
        _
      // Predicated region
      $region25: #{residual_block_forward.1} parent=11 // pred_check
        %p185 = pneg %p133
      $region26: #{residual_block_forward.1} parent=11 // pred_check_branch
        %187 = sbr.rel (%p185) target = $region28
      $region27: #{residual_block_forward.1} parent=11 // pred_region
        _
      $region28: #{residual_block_forward.1} parent=11 // pred_fallthru
        _
    $region12: #{residual_block_forward.1} parent=5 // pred_fallthru
      _
    %p188 = scmp.lt.s32.totalorder %s11, 4
    // Predicated region
    $region29: #{residual_block_forward.1} parent=5 // pred_check
      %p189 = pneg %p188
    $region30: #{residual_block_forward.1} parent=5 // pred_check_branch
      %191 = sbr.rel (%p189) target = $region32
    $region31: #{residual_block_forward.1} parent=5 // pred_region
      // Predicated region
      $region33: #{residual_block_forward.1} parent=31 // pred_check
        %p192 = pneg %p43
      $region34: #{residual_block_forward.1} parent=31 // pred_check_branch
        %194 = sbr.rel (%p192) target = $region36
      $region35: #{residual_block_forward.1} parent=31 // pred_region
        %p195 = scmp.lt.s32.totalorder %s18, 1
        %s196 = scalar_select %p195, %s18, 1
        %s197 = smul.addr %s196, 180
        %s198 = smul.addr %s197, 4
        %s199 = scalar_lea.vmem %s0, %s198
      $region36: #{residual_block_forward.1} parent=31 // pred_fallthru
        _
    $region32: #{residual_block_forward.1} parent=5 // pred_fallthru
      _
    %p200 = scmp.le.s32.totalorder 1, %s11
    %p201 = scmp.lt.s32.totalorder %s11, 5
    %p202 = pnand %p200, %p201
    %p203 = pneg %p202
    // Predicated region
    $region37: #{residual_block_forward.1} parent=5 // pred_check
      _
    $region38: #{residual_block_forward.1} parent=5 // pred_check_branch
      %205 = sbr.rel (%p202) target = $region40
    $region39: #{residual_block_forward.1} parent=5 // pred_region
      %s206 = ssub.s32 %s11, 1
      %p207 = scmp.lt.s32.totalorder %s20, 1
      %s208 = scalar_select %p207, %s20, 1
      %s209 = smul.addr %s208, 180
      %s210 = smul.addr %s209, 4
      %s211 = scalar_lea.vmem %s0, %s210
      %p212 = pneg %p49
      %p213 = pneg %p46
      %p214 = pneg %p70
      %p215 = pneg %p67
      %p216 = pneg %p91
      %p217 = pneg %p88
      %p218 = pneg %p112
      %p219 = pneg %p109
      %p220 = pneg %p133
      %p221 = pneg %p130
      %p222 = pneg %p161
      %p223 = pneg %p158
      %p224 = scmp.lt.s32.totalorder %s20, 1
      %s225 = scalar_select %p224, %s20, 1
      %p226 = scmp.lt.s32.totalorder %s21, 1
      %s227 = scalar_select %p226, %s21, 1
      %s228 = smul.addr %s225, 2
      %s229 = sadd.s32 %s227, %s228
      %s230 = smul.addr %s229, 8
      %s231 = scalar_lea.vmem %s5, %s230
      %p232 = scmp.lt.s32.totalorder %s20, 1
      %s233 = scalar_select %p232, %s20, 1
      %s234 = smul.addr %s233, 180
      %s235 = smul.addr %s234, 4
      %s236 = scalar_lea.vmem %s0, %s235
      %p237 = scmp.lt.s32.totalorder %s20, 1
      %s238 = scalar_select %p237, %s20, 1
      %p239 = scmp.lt.s32.totalorder %s21, 1
      %s240 = scalar_select %p239, %s21, 1
      %s241 = smul.addr %s238, 2
      %s242 = sadd.s32 %s240, %s241
      %s243 = smul.addr %s242, 8
      %s244 = scalar_lea.vmem %s5, %s243
      %s246 = smul.u32 %s21, 16
      %s247 = smul.u32 %s246, 5
      %s248 = smul.addr %s247, 4
      %s249 = scalar_lea.vmem %s236, %s248
      %v250 = vld [vmem:[%s249] sm:$0xf]
      %v251 = vld [vmem:[%s249 + $0x4] sm:$0xf]
      %v252 = vld [vmem:[%s249 + $0x8] sm:$0xf]
      %v253 = vld [vmem:[%s249 + $0xc] sm:$0xf]
      %v254 = vld [vmem:[%s249 + $0x10] sm:$0x1]
      %v255 = vld [vmem:[%s249 + $0x14] sm:$0xf]
      %v256 = vld [vmem:[%s249 + $0x18] sm:$0xf]
      %v257 = vld [vmem:[%s249 + $0x1c] sm:$0xf]
      %v258 = vld [vmem:[%s249 + $0x20] sm:$0xf]
      %v259 = vld [vmem:[%s249 + $0x24] sm:$0x1]
      %v260 = vld [vmem:[%s249 + $0x28] sm:$0xf]
      %v261 = vld [vmem:[%s249 + $0x2c] sm:$0xf]
      %v262 = vld [vmem:[%s249 + $0x30] sm:$0xf]
      %v263 = vld [vmem:[%s249 + $0x34] sm:$0xf]
      %v264 = vld [vmem:[%s249 + $0x38] sm:$0x1]
      %v265 = vld [vmem:[%s249 + $0x3c] sm:$0xf]
      %v266 = vld [vmem:[%s249 + $0x40] sm:$0xf]
      %v267 = vld [vmem:[%s249 + $0x44] sm:$0xf]
      %v268 = vld [vmem:[%s249 + $0x48] sm:$0xf]
      %v269 = vld [vmem:[%s249 + $0x4c] sm:$0x1]
      %v270 = vld [vmem:[%s249 + $0x50] sm:$0xf]
      %v271 = vld [vmem:[%s249 + $0x54] sm:$0xf]
      %v272 = vld [vmem:[%s249 + $0x58] sm:$0xf]
      %v273 = vld [vmem:[%s249 + $0x5c] sm:$0xf]
      %v274 = vld [vmem:[%s249 + $0x60] sm:$0x1]
      %v275 = vld [vmem:[%s249 + $0x64] sm:$0xf]
      %v276 = vld [vmem:[%s249 + $0x68] sm:$0xf]
      %v277 = vld [vmem:[%s249 + $0x6c] sm:$0xf]
      %v278 = vld [vmem:[%s249 + $0x70] sm:$0xf]
      %v279 = vld [vmem:[%s249 + $0x74] sm:$0x1]
      %v280 = vld [vmem:[%s249 + $0x78] sm:$0xf]
      %v281 = vld [vmem:[%s249 + $0x7c] sm:$0xf]
      %v282 = vld [vmem:[%s249 + $0x80] sm:$0xf]
      %v283 = vld [vmem:[%s249 + $0x84] sm:$0xf]
      %v284 = vld [vmem:[%s249 + $0x88] sm:$0x1]
      %v285 = vld [vmem:[%s249 + $0x8c] sm:$0xf]
      %v286 = vld [vmem:[%s249 + $0x90] sm:$0xf]
      %v287 = vld [vmem:[%s249 + $0x94] sm:$0xf]
      %v288 = vld [vmem:[%s249 + $0x98] sm:$0xf]
      %v289 = vld [vmem:[%s249 + $0x9c] sm:$0x1]
      %v290 = vld [vmem:[%s249 + $0xa0] sm:$0xf]
      %v291 = vld [vmem:[%s249 + $0xa4] sm:$0xf]
      %v292 = vld [vmem:[%s249 + $0xa8] sm:$0xf]
      %v293 = vld [vmem:[%s249 + $0xac] sm:$0xf]
      %v294 = vld [vmem:[%s249 + $0xb0] sm:$0x1]
      %v295 = vld [vmem:[%s249 + $0xb4] sm:$0xf]
      %v296 = vld [vmem:[%s249 + $0xb8] sm:$0xf]
      %v297 = vld [vmem:[%s249 + $0xbc] sm:$0xf]
      %v298 = vld [vmem:[%s249 + $0xc0] sm:$0xf]
      %v299 = vld [vmem:[%s249 + $0xc4] sm:$0x1]
      %v300 = vld [vmem:[%s249 + $0xc8] sm:$0xf]
      %v301 = vld [vmem:[%s249 + $0xcc] sm:$0xf]
      %v302 = vld [vmem:[%s249 + $0xd0] sm:$0xf]
      %v303 = vld [vmem:[%s249 + $0xd4] sm:$0xf]
      %v304 = vld [vmem:[%s249 + $0xd8] sm:$0x1]
      %v305 = vld [vmem:[%s249 + $0xdc] sm:$0xf]
      %v306 = vld [vmem:[%s249 + $0xe0] sm:$0xf]
      %v307 = vld [vmem:[%s249 + $0xe4] sm:$0xf]
      %v308 = vld [vmem:[%s249 + $0xe8] sm:$0xf]
      %v309 = vld [vmem:[%s249 + $0xec] sm:$0x1]
      %v310 = vld [vmem:[%s249 + $0xf0] sm:$0xf]
      %v311 = vld [vmem:[%s249 + $0xf4] sm:$0xf]
      %v312 = vld [vmem:[%s249 + $0xf8] sm:$0xf]
      %v313 = vld [vmem:[%s249 + $0xfc] sm:$0xf]
      %v314 = vld [vmem:[%s249 + $0x100] sm:$0x1]
      %v315 = vld [vmem:[%s249 + $0x104] sm:$0xf]
      %v316 = vld [vmem:[%s249 + $0x108] sm:$0xf]
      %v317 = vld [vmem:[%s249 + $0x10c] sm:$0xf]
      %v318 = vld [vmem:[%s249 + $0x110] sm:$0xf]
      %v319 = vld [vmem:[%s249 + $0x114] sm:$0x1]
      %v320 = vld [vmem:[%s249 + $0x118] sm:$0xf]
      %v321 = vld [vmem:[%s249 + $0x11c] sm:$0xf]
      %v322 = vld [vmem:[%s249 + $0x120] sm:$0xf]
      %v323 = vld [vmem:[%s249 + $0x124] sm:$0xf]
      %v324 = vld [vmem:[%s249 + $0x128] sm:$0x1]
      %v325 = vld [vmem:[%s249 + $0x12c] sm:$0xf]
      %v326 = vld [vmem:[%s249 + $0x130] sm:$0xf]
      %v327 = vld [vmem:[%s249 + $0x134] sm:$0xf]
      %v328 = vld [vmem:[%s249 + $0x138] sm:$0xf]
      %v329 = vld [vmem:[%s249 + $0x13c] sm:$0x1]
      %v330 = vld [vmem:[%s249 + $0x140] sm:$0xf]
      %v331 = vld [vmem:[%s249 + $0x144] sm:$0xf]
      %v332 = vld [vmem:[%s249 + $0x148] sm:$0xf]
      %v333 = vld [vmem:[%s249 + $0x14c] sm:$0xf]
      %v334 = vld [vmem:[%s249 + $0x150] sm:$0x1]
      %v335 = vld [vmem:[%s249 + $0x154] sm:$0xf]
      %v336 = vld [vmem:[%s249 + $0x158] sm:$0xf]
      %v337 = vld [vmem:[%s249 + $0x15c] sm:$0xf]
      %v338 = vld [vmem:[%s249 + $0x160] sm:$0xf]
      %v339 = vld [vmem:[%s249 + $0x164] sm:$0x1]
      %v340 = vld [vmem:[%s249 + $0x168] sm:$0xf]
      %v341 = vld [vmem:[%s249 + $0x16c] sm:$0xf]
      %v342 = vld [vmem:[%s249 + $0x170] sm:$0xf]
      %v343 = vld [vmem:[%s249 + $0x174] sm:$0xf]
      %v344 = vld [vmem:[%s249 + $0x178] sm:$0x1]
      %v345 = vld [vmem:[%s249 + $0x17c] sm:$0xf]
      %v346 = vld [vmem:[%s249 + $0x180] sm:$0xf]
      %v347 = vld [vmem:[%s249 + $0x184] sm:$0xf]
      %v348 = vld [vmem:[%s249 + $0x188] sm:$0xf]
      %v349 = vld [vmem:[%s249 + $0x18c] sm:$0x1]
      %v422 = vunpack.c.l.b16 %v250
      %v423 = vunpack.c.l.b16 %v251
      %v424 = vunpack.c.l.b16 %v252
      %v425 = vunpack.c.l.b16 %v253
      %v426 = vunpack.c.l.b16 %v255
      %v427 = vunpack.c.l.b16 %v256
      %v428 = vunpack.c.l.b16 %v257
      %v429 = vunpack.c.l.b16 %v258
      %v430 = vunpack.c.l.b16 %v260
      %v431 = vunpack.c.l.b16 %v261
      %v432 = vunpack.c.l.b16 %v262
      %v433 = vunpack.c.l.b16 %v263
      %v434 = vunpack.c.l.b16 %v265
      %v435 = vunpack.c.l.b16 %v266
      %v436 = vunpack.c.l.b16 %v267
      %v437 = vunpack.c.l.b16 %v268
      %v438 = vunpack.c.l.b16 %v270
      %v439 = vunpack.c.l.b16 %v271
      %v440 = vunpack.c.l.b16 %v272
      %v441 = vunpack.c.l.b16 %v273
      %v442 = vunpack.c.l.b16 %v275
      %v443 = vunpack.c.l.b16 %v276
      %v444 = vunpack.c.l.b16 %v277
      %v445 = vunpack.c.l.b16 %v278
      %v446 = vunpack.c.l.b16 %v280
      %v447 = vunpack.c.l.b16 %v281
      %v448 = vunpack.c.l.b16 %v282
      %v449 = vunpack.c.l.b16 %v283
      %v450 = vunpack.c.l.b16 %v285
      %v451 = vunpack.c.l.b16 %v286
      %v452 = vunpack.c.l.b16 %v287
      %v453 = vunpack.c.l.b16 %v288
      %v454 = vunpack.c.l.b16 %v290
      %v455 = vunpack.c.l.b16 %v291
      %v456 = vunpack.c.l.b16 %v292
      %v457 = vunpack.c.l.b16 %v293
      %v458 = vunpack.c.l.b16 %v295
      %v459 = vunpack.c.l.b16 %v296
      %v460 = vunpack.c.l.b16 %v297
      %v461 = vunpack.c.l.b16 %v298
      %v462 = vunpack.c.l.b16 %v300
      %v463 = vunpack.c.l.b16 %v301
      %v464 = vunpack.c.l.b16 %v302
      %v465 = vunpack.c.l.b16 %v303
      %v466 = vunpack.c.l.b16 %v305
      %v467 = vunpack.c.l.b16 %v306
      %v468 = vunpack.c.l.b16 %v307
      %v469 = vunpack.c.l.b16 %v308
      %v470 = vunpack.c.l.b16 %v310
      %v471 = vunpack.c.l.b16 %v311
      %v472 = vunpack.c.l.b16 %v312
      %v473 = vunpack.c.l.b16 %v313
      %v474 = vunpack.c.l.b16 %v315
      %v475 = vunpack.c.l.b16 %v316
      %v476 = vunpack.c.l.b16 %v317
      %v477 = vunpack.c.l.b16 %v318
      %v478 = vunpack.c.l.b16 %v320
      %v479 = vunpack.c.l.b16 %v321
      %v480 = vunpack.c.l.b16 %v322
      %v481 = vunpack.c.l.b16 %v323
      %v482 = vunpack.c.l.b16 %v325
      %v483 = vunpack.c.l.b16 %v326
      %v484 = vunpack.c.l.b16 %v327
      %v485 = vunpack.c.l.b16 %v328
      %v486 = vunpack.c.l.b16 %v330
      %v487 = vunpack.c.l.b16 %v331
      %v488 = vunpack.c.l.b16 %v332
      %v489 = vunpack.c.l.b16 %v333
      %v490 = vunpack.c.l.b16 %v335
      %v491 = vunpack.c.l.b16 %v336
      %v492 = vunpack.c.l.b16 %v337
      %v493 = vunpack.c.l.b16 %v338
      %v494 = vpack.c.b16 %v423, %v422
      %v495 = vpack.c.b16 %v425, %v424
      %v496 = vpack.c.b16 %v427, %v426
      %v497 = vpack.c.b16 %v429, %v428
      %v498 = vpack.c.b16 %v431, %v430
      %v499 = vpack.c.b16 %v433, %v432
      %v500 = vpack.c.b16 %v435, %v434
      %v501 = vpack.c.b16 %v437, %v436
      %v502 = vpack.c.b16 %v439, %v438
      %v503 = vpack.c.b16 %v441, %v440
      %v504 = vpack.c.b16 %v443, %v442
      %v505 = vpack.c.b16 %v445, %v444
      %v506 = vpack.c.b16 %v447, %v446
      %v507 = vpack.c.b16 %v449, %v448
      %v508 = vpack.c.b16 %v451, %v450
      %v509 = vpack.c.b16 %v453, %v452
      %v510 = vpack.c.b16 %v455, %v454
      %v511 = vpack.c.b16 %v457, %v456
      %v512 = vpack.c.b16 %v459, %v458
      %v513 = vpack.c.b16 %v461, %v460
      %v514 = vpack.c.b16 %v463, %v462
      %v515 = vpack.c.b16 %v465, %v464
      %v516 = vpack.c.b16 %v467, %v466
      %v517 = vpack.c.b16 %v469, %v468
      %v518 = vpack.c.b16 %v471, %v470
      %v519 = vpack.c.b16 %v473, %v472
      %v520 = vpack.c.b16 %v475, %v474
      %v521 = vpack.c.b16 %v477, %v476
      %v522 = vpack.c.b16 %v479, %v478
      %v523 = vpack.c.b16 %v481, %v480
      %v524 = vpack.c.b16 %v483, %v482
      %v525 = vpack.c.b16 %v485, %v484
      %v526 = vpack.c.b16 %v487, %v486
      %v527 = vpack.c.b16 %v489, %v488
      %v528 = vpack.c.b16 %v491, %v490
      %v529 = vpack.c.b16 %v493, %v492
      %v548 = vunpack.c.l.b16 %v254
      %v549 = vunpack.c.l.b16 %v259
      %v550 = vunpack.c.l.b16 %v264
      %v551 = vunpack.c.l.b16 %v269
      %v552 = vunpack.c.l.b16 %v274
      %v553 = vunpack.c.l.b16 %v279
      %v554 = vunpack.c.l.b16 %v284
      %v555 = vunpack.c.l.b16 %v289
      %v556 = vunpack.c.l.b16 %v294
      %v557 = vunpack.c.l.b16 %v299
      %v558 = vunpack.c.l.b16 %v304
      %v559 = vunpack.c.l.b16 %v309
      %v560 = vunpack.c.l.b16 %v314
      %v561 = vunpack.c.l.b16 %v319
      %v562 = vunpack.c.l.b16 %v324
      %v563 = vunpack.c.l.b16 %v329
      %v564 = vunpack.c.l.b16 %v334
      %v565 = vunpack.c.l.b16 %v339
      %v566 = vpack.c.b16 %v548, %v548
      %v567 = vpack.c.b16 %v549, %v549
      %v568 = vpack.c.b16 %v550, %v550
      %v569 = vpack.c.b16 %v551, %v551
      %v570 = vpack.c.b16 %v552, %v552
      %v571 = vpack.c.b16 %v553, %v553
      %v572 = vpack.c.b16 %v554, %v554
      %v573 = vpack.c.b16 %v555, %v555
      %v574 = vpack.c.b16 %v556, %v556
      %v575 = vpack.c.b16 %v557, %v557
      %v576 = vpack.c.b16 %v558, %v558
      %v577 = vpack.c.b16 %v559, %v559
      %v578 = vpack.c.b16 %v560, %v560
      %v579 = vpack.c.b16 %v561, %v561
      %v580 = vpack.c.b16 %v562, %v562
      %v581 = vpack.c.b16 %v563, %v563
      %v582 = vpack.c.b16 %v564, %v564
      %v583 = vpack.c.b16 %v565, %v565
      %vm584 = vsmask.f32 7424
      %v586 = vshrl.u32 %v494, 16
      %v588 = vshll.u32 %v494, 16
      %v590 = vrot.slane %v588, 1
      %v591 = vor.u32 %v586, %v590
      %v593 = vshll.u32 %v495, 16
      %v595 = vrot.slane %v593, 1
      %v596 = vsel %vm584, %v591, %v595
      %v597 = vshrl.u32 %v495, 16
      %v599 = vor.u32 %v597, %v595
      %v601 = vshll.u32 %v566, 16
      %v603 = vrot.slane %v601, 1
      %v604 = vsel %vm584, %v599, %v603
      %v606 = vshrl.u32 %v496, 16
      %v608 = vshll.u32 %v496, 16
      %v610 = vrot.slane %v608, 1
      %v611 = vor.u32 %v606, %v610
      %v613 = vshll.u32 %v497, 16
      %v615 = vrot.slane %v613, 1
      %v616 = vsel %vm584, %v611, %v615
      %v617 = vshrl.u32 %v497, 16
      %v619 = vor.u32 %v617, %v615
      %v621 = vshll.u32 %v567, 16
      %v623 = vrot.slane %v621, 1
      %v624 = vsel %vm584, %v619, %v623
      %v626 = vshrl.u32 %v498, 16
      %v628 = vshll.u32 %v498, 16
      %v630 = vrot.slane %v628, 1
      %v631 = vor.u32 %v626, %v630
      %v633 = vshll.u32 %v499, 16
      %v635 = vrot.slane %v633, 1
      %v636 = vsel %vm584, %v631, %v635
      %v637 = vshrl.u32 %v499, 16
      %v639 = vor.u32 %v637, %v635
      %v641 = vshll.u32 %v568, 16
      %v643 = vrot.slane %v641, 1
      %v644 = vsel %vm584, %v639, %v643
      %v646 = vshrl.u32 %v500, 16
      %v648 = vshll.u32 %v500, 16
      %v650 = vrot.slane %v648, 1
      %v651 = vor.u32 %v646, %v650
      %v653 = vshll.u32 %v501, 16
      %v655 = vrot.slane %v653, 1
      %v656 = vsel %vm584, %v651, %v655
      %v657 = vshrl.u32 %v501, 16
      %v659 = vor.u32 %v657, %v655
      %v661 = vshll.u32 %v569, 16
      %v663 = vrot.slane %v661, 1
      %v664 = vsel %vm584, %v659, %v663
      %v666 = vshrl.u32 %v502, 16
      %v668 = vshll.u32 %v502, 16
      %v670 = vrot.slane %v668, 1
      %v671 = vor.u32 %v666, %v670
      %v673 = vshll.u32 %v503, 16
      %v675 = vrot.slane %v673, 1
      %v676 = vsel %vm584, %v671, %v675
      %v677 = vshrl.u32 %v503, 16
      %v679 = vor.u32 %v677, %v675
      %v681 = vshll.u32 %v570, 16
      %v683 = vrot.slane %v681, 1
      %v684 = vsel %vm584, %v679, %v683
      %v686 = vshrl.u32 %v504, 16
      %v688 = vshll.u32 %v504, 16
      %v690 = vrot.slane %v688, 1
      %v691 = vor.u32 %v686, %v690
      %v693 = vshll.u32 %v505, 16
      %v695 = vrot.slane %v693, 1
      %v696 = vsel %vm584, %v691, %v695
      %v697 = vshrl.u32 %v505, 16
      %v699 = vor.u32 %v697, %v695
      %v701 = vshll.u32 %v571, 16
      %v703 = vrot.slane %v701, 1
      %v704 = vsel %vm584, %v699, %v703
      %v706 = vshrl.u32 %v506, 16
      %v708 = vshll.u32 %v506, 16
      %v710 = vrot.slane %v708, 1
      %v711 = vor.u32 %v706, %v710
      %v713 = vshll.u32 %v507, 16
      %v715 = vrot.slane %v713, 1
      %v716 = vsel %vm584, %v711, %v715
      %v717 = vshrl.u32 %v507, 16
      %v719 = vor.u32 %v717, %v715
      %v721 = vshll.u32 %v572, 16
      %v723 = vrot.slane %v721, 1
      %v724 = vsel %vm584, %v719, %v723
      %v726 = vshrl.u32 %v508, 16
      %v728 = vshll.u32 %v508, 16
      %v730 = vrot.slane %v728, 1
      %v731 = vor.u32 %v726, %v730
      %v733 = vshll.u32 %v509, 16
      %v735 = vrot.slane %v733, 1
      %v736 = vsel %vm584, %v731, %v735
      %v737 = vshrl.u32 %v509, 16
      %v739 = vor.u32 %v737, %v735
      %v741 = vshll.u32 %v573, 16
      %v743 = vrot.slane %v741, 1
      %v744 = vsel %vm584, %v739, %v743
      %v746 = vshrl.u32 %v510, 16
      %v748 = vshll.u32 %v510, 16
      %v750 = vrot.slane %v748, 1
      %v751 = vor.u32 %v746, %v750
      %v753 = vshll.u32 %v511, 16
      %v755 = vrot.slane %v753, 1
      %v756 = vsel %vm584, %v751, %v755
      %v757 = vshrl.u32 %v511, 16
      %v759 = vor.u32 %v757, %v755
      %v761 = vshll.u32 %v574, 16
      %v763 = vrot.slane %v761, 1
      %v764 = vsel %vm584, %v759, %v763
      %v766 = vshrl.u32 %v512, 16
      %v768 = vshll.u32 %v512, 16
      %v770 = vrot.slane %v768, 1
      %v771 = vor.u32 %v766, %v770
      %v773 = vshll.u32 %v513, 16
      %v775 = vrot.slane %v773, 1
      %v776 = vsel %vm584, %v771, %v775
      %v777 = vshrl.u32 %v513, 16
      %v779 = vor.u32 %v777, %v775
      %v781 = vshll.u32 %v575, 16
      %v783 = vrot.slane %v781, 1
      %v784 = vsel %vm584, %v779, %v783
      %v786 = vshrl.u32 %v514, 16
      %v788 = vshll.u32 %v514, 16
      %v790 = vrot.slane %v788, 1
      %v791 = vor.u32 %v786, %v790
      %v793 = vshll.u32 %v515, 16
      %v795 = vrot.slane %v793, 1
      %v796 = vsel %vm584, %v791, %v795
      %v797 = vshrl.u32 %v515, 16
      %v799 = vor.u32 %v797, %v795
      %v801 = vshll.u32 %v576, 16
      %v803 = vrot.slane %v801, 1
      %v804 = vsel %vm584, %v799, %v803
      %v806 = vshrl.u32 %v516, 16
      %v808 = vshll.u32 %v516, 16
      %v810 = vrot.slane %v808, 1
      %v811 = vor.u32 %v806, %v810
      %v813 = vshll.u32 %v517, 16
      %v815 = vrot.slane %v813, 1
      %v816 = vsel %vm584, %v811, %v815
      %v817 = vshrl.u32 %v517, 16
      %v819 = vor.u32 %v817, %v815
      %v821 = vshll.u32 %v577, 16
      %v823 = vrot.slane %v821, 1
      %v824 = vsel %vm584, %v819, %v823
      %v826 = vshrl.u32 %v518, 16
      %v828 = vshll.u32 %v518, 16
      %v830 = vrot.slane %v828, 1
      %v831 = vor.u32 %v826, %v830
      %v833 = vshll.u32 %v519, 16
      %v835 = vrot.slane %v833, 1
      %v836 = vsel %vm584, %v831, %v835
      %v837 = vshrl.u32 %v519, 16
      %v839 = vor.u32 %v837, %v835
      %v841 = vshll.u32 %v578, 16
      %v843 = vrot.slane %v841, 1
      %v844 = vsel %vm584, %v839, %v843
      %v846 = vshrl.u32 %v520, 16
      %v848 = vshll.u32 %v520, 16
      %v850 = vrot.slane %v848, 1
      %v851 = vor.u32 %v846, %v850
      %v853 = vshll.u32 %v521, 16
      %v855 = vrot.slane %v853, 1
      %v856 = vsel %vm584, %v851, %v855
      %v857 = vshrl.u32 %v521, 16
      %v859 = vor.u32 %v857, %v855
      %v861 = vshll.u32 %v579, 16
      %v863 = vrot.slane %v861, 1
      %v864 = vsel %vm584, %v859, %v863
      %v866 = vshrl.u32 %v522, 16
      %v868 = vshll.u32 %v522, 16
      %v870 = vrot.slane %v868, 1
      %v871 = vor.u32 %v866, %v870
      %v873 = vshll.u32 %v523, 16
      %v875 = vrot.slane %v873, 1
      %v876 = vsel %vm584, %v871, %v875
      %v877 = vshrl.u32 %v523, 16
      %v879 = vor.u32 %v877, %v875
      %v881 = vshll.u32 %v580, 16
      %v883 = vrot.slane %v881, 1
      %v884 = vsel %vm584, %v879, %v883
      %v886 = vshrl.u32 %v524, 16
      %v888 = vshll.u32 %v524, 16
      %v890 = vrot.slane %v888, 1
      %v891 = vor.u32 %v886, %v890
      %v893 = vshll.u32 %v525, 16
      %v895 = vrot.slane %v893, 1
      %v896 = vsel %vm584, %v891, %v895
      %v897 = vshrl.u32 %v525, 16
      %v899 = vor.u32 %v897, %v895
      %v901 = vshll.u32 %v581, 16
      %v903 = vrot.slane %v901, 1
      %v904 = vsel %vm584, %v899, %v903
      %v906 = vshrl.u32 %v526, 16
      %v908 = vshll.u32 %v526, 16
      %v910 = vrot.slane %v908, 1
      %v911 = vor.u32 %v906, %v910
      %v913 = vshll.u32 %v527, 16
      %v915 = vrot.slane %v913, 1
      %v916 = vsel %vm584, %v911, %v915
      %v917 = vshrl.u32 %v527, 16
      %v919 = vor.u32 %v917, %v915
      %v921 = vshll.u32 %v582, 16
      %v923 = vrot.slane %v921, 1
      %v924 = vsel %vm584, %v919, %v923
      %v926 = vshrl.u32 %v528, 16
      %v928 = vshll.u32 %v528, 16
      %v930 = vrot.slane %v928, 1
      %v931 = vor.u32 %v926, %v930
      %v933 = vshll.u32 %v529, 16
      %v935 = vrot.slane %v933, 1
      %v936 = vsel %vm584, %v931, %v935
      %v937 = vshrl.u32 %v529, 16
      %v939 = vor.u32 %v937, %v935
      %v941 = vshll.u32 %v583, 16
      %v943 = vrot.slane %v941, 1
      %v944 = vsel %vm584, %v939, %v943
      %945 = vrot.lane.b32.xlu0 %v596, 4
      %v946 = vpop.permute.xlu0 %945
      %947 = vrot.lane.b32.xlu0 %v604, 4
      %v948 = vpop.permute.xlu0 %947
      %949 = vrot.lane.b32.xlu0 %v616, 4
      %v950 = vpop.permute.xlu0 %949
      %951 = vrot.lane.b32.xlu0 %v624, 4
      %v952 = vpop.permute.xlu0 %951
      %953 = vrot.lane.b32.xlu0 %v636, 4
      %v954 = vpop.permute.xlu0 %953
      %955 = vrot.lane.b32.xlu0 %v644, 4
      %v956 = vpop.permute.xlu0 %955
      %957 = vrot.lane.b32.xlu0 %v656, 4
      %v958 = vpop.permute.xlu0 %957
      %959 = vrot.lane.b32.xlu0 %v664, 4
      %v960 = vpop.permute.xlu0 %959
      %961 = vrot.lane.b32.xlu0 %v676, 4
      %v962 = vpop.permute.xlu0 %961
      %963 = vrot.lane.b32.xlu0 %v684, 4
      %v964 = vpop.permute.xlu0 %963
      %965 = vrot.lane.b32.xlu0 %v696, 4
      %v966 = vpop.permute.xlu0 %965
      %967 = vrot.lane.b32.xlu0 %v704, 4
      %v968 = vpop.permute.xlu0 %967
      %969 = vrot.lane.b32.xlu0 %v716, 4
      %v970 = vpop.permute.xlu0 %969
      %971 = vrot.lane.b32.xlu0 %v724, 4
      %v972 = vpop.permute.xlu0 %971
      %973 = vrot.lane.b32.xlu0 %v736, 4
      %v974 = vpop.permute.xlu0 %973
      %975 = vrot.lane.b32.xlu0 %v744, 4
      %v976 = vpop.permute.xlu0 %975
      %977 = vrot.lane.b32.xlu0 %v756, 4
      %v978 = vpop.permute.xlu0 %977
      %979 = vrot.lane.b32.xlu0 %v764, 4
      %v980 = vpop.permute.xlu0 %979
      %981 = vrot.lane.b32.xlu0 %v776, 4
      %v982 = vpop.permute.xlu0 %981
      %983 = vrot.lane.b32.xlu0 %v784, 4
      %v984 = vpop.permute.xlu0 %983
      %985 = vrot.lane.b32.xlu0 %v796, 4
      %v986 = vpop.permute.xlu0 %985
      %987 = vrot.lane.b32.xlu0 %v804, 4
      %v988 = vpop.permute.xlu0 %987
      %989 = vrot.lane.b32.xlu0 %v816, 4
      %v990 = vpop.permute.xlu0 %989
      %991 = vrot.lane.b32.xlu0 %v824, 4
      %v992 = vpop.permute.xlu0 %991
      %993 = vrot.lane.b32.xlu0 %v836, 4
      %v994 = vpop.permute.xlu0 %993
      %995 = vrot.lane.b32.xlu0 %v844, 4
      %v996 = vpop.permute.xlu0 %995
      %997 = vrot.lane.b32.xlu0 %v856, 4
      %v998 = vpop.permute.xlu0 %997
      %999 = vrot.lane.b32.xlu0 %v864, 4
      %v1000 = vpop.permute.xlu0 %999
      %1001 = vrot.lane.b32.xlu0 %v876, 4
      %v1002 = vpop.permute.xlu0 %1001
      %1003 = vrot.lane.b32.xlu0 %v884, 4
      %v1004 = vpop.permute.xlu0 %1003
      %1005 = vrot.lane.b32.xlu0 %v896, 4
      %v1006 = vpop.permute.xlu0 %1005
      %1007 = vrot.lane.b32.xlu0 %v904, 4
      %v1008 = vpop.permute.xlu0 %1007
      %1009 = vrot.lane.b32.xlu0 %v916, 4
      %v1010 = vpop.permute.xlu0 %1009
      %1011 = vrot.lane.b32.xlu0 %v924, 4
      %v1012 = vpop.permute.xlu0 %1011
      %1013 = vrot.lane.b32.xlu0 %v936, 4
      %v1014 = vpop.permute.xlu0 %1013
      %1015 = vrot.lane.b32.xlu0 %v944, 4
      %v1016 = vpop.permute.xlu0 %1015
      %vm1017 = vcmask 1046528
      %v1018 = vrot.slane %v494, 1
      %v1019 = vrot.slane %v495, 1
      %v1020 = vsel %vm1017, %v1018, %v1019
      %v1021 = vrot.slane %v566, 1
      %v1022 = vsel %vm1017, %v1019, %v1021
      %v1023 = vrot.slane %v496, 1
      %v1024 = vrot.slane %v497, 1
      %v1025 = vsel %vm1017, %v1023, %v1024
      %v1026 = vrot.slane %v567, 1
      %v1027 = vsel %vm1017, %v1024, %v1026
      %v1028 = vrot.slane %v498, 1
      %v1029 = vrot.slane %v499, 1
      %v1030 = vsel %vm1017, %v1028, %v1029
      %v1031 = vrot.slane %v568, 1
      %v1032 = vsel %vm1017, %v1029, %v1031
      %v1033 = vrot.slane %v500, 1
      %v1034 = vrot.slane %v501, 1
      %v1035 = vsel %vm1017, %v1033, %v1034
      %v1036 = vrot.slane %v569, 1
      %v1037 = vsel %vm1017, %v1034, %v1036
      %v1038 = vrot.slane %v502, 1
      %v1039 = vrot.slane %v503, 1
      %v1040 = vsel %vm1017, %v1038, %v1039
      %v1041 = vrot.slane %v570, 1
      %v1042 = vsel %vm1017, %v1039, %v1041
      %v1043 = vrot.slane %v504, 1
      %v1044 = vrot.slane %v505, 1
      %v1045 = vsel %vm1017, %v1043, %v1044
      %v1046 = vrot.slane %v571, 1
      %v1047 = vsel %vm1017, %v1044, %v1046
      %v1048 = vrot.slane %v506, 1
      %v1049 = vrot.slane %v507, 1
      %v1050 = vsel %vm1017, %v1048, %v1049
      %v1051 = vrot.slane %v572, 1
      %v1052 = vsel %vm1017, %v1049, %v1051
      %v1053 = vrot.slane %v508, 1
      %v1054 = vrot.slane %v509, 1
      %v1055 = vsel %vm1017, %v1053, %v1054
      %v1056 = vrot.slane %v573, 1
      %v1057 = vsel %vm1017, %v1054, %v1056
      %v1058 = vrot.slane %v510, 1
      %v1059 = vrot.slane %v511, 1
      %v1060 = vsel %vm1017, %v1058, %v1059
      %v1061 = vrot.slane %v574, 1
      %v1062 = vsel %vm1017, %v1059, %v1061
      %v1063 = vrot.slane %v512, 1
      %v1064 = vrot.slane %v513, 1
      %v1065 = vsel %vm1017, %v1063, %v1064
      %v1066 = vrot.slane %v575, 1
      %v1067 = vsel %vm1017, %v1064, %v1066
      %v1068 = vrot.slane %v514, 1
      %v1069 = vrot.slane %v515, 1
      %v1070 = vsel %vm1017, %v1068, %v1069
      %v1071 = vrot.slane %v576, 1
      %v1072 = vsel %vm1017, %v1069, %v1071
      %v1073 = vrot.slane %v516, 1
      %v1074 = vrot.slane %v517, 1
      %v1075 = vsel %vm1017, %v1073, %v1074
      %v1076 = vrot.slane %v577, 1
      %v1077 = vsel %vm1017, %v1074, %v1076
      %v1078 = vrot.slane %v518, 1
      %v1079 = vrot.slane %v519, 1
      %v1080 = vsel %vm1017, %v1078, %v1079
      %v1081 = vrot.slane %v578, 1
      %v1082 = vsel %vm1017, %v1079, %v1081
      %v1083 = vrot.slane %v520, 1
      %v1084 = vrot.slane %v521, 1
      %v1085 = vsel %vm1017, %v1083, %v1084
      %v1086 = vrot.slane %v579, 1
      %v1087 = vsel %vm1017, %v1084, %v1086
      %v1088 = vrot.slane %v522, 1
      %v1089 = vrot.slane %v523, 1
      %v1090 = vsel %vm1017, %v1088, %v1089
      %v1091 = vrot.slane %v580, 1
      %v1092 = vsel %vm1017, %v1089, %v1091
      %v1093 = vrot.slane %v524, 1
      %v1094 = vrot.slane %v525, 1
      %v1095 = vsel %vm1017, %v1093, %v1094
      %v1096 = vrot.slane %v581, 1
      %v1097 = vsel %vm1017, %v1094, %v1096
      %v1098 = vrot.slane %v526, 1
      %v1099 = vrot.slane %v527, 1
      %v1100 = vsel %vm1017, %v1098, %v1099
      %v1101 = vrot.slane %v582, 1
      %v1102 = vsel %vm1017, %v1099, %v1101
      %v1103 = vrot.slane %v528, 1
      %v1104 = vrot.slane %v529, 1
      %v1105 = vsel %vm1017, %v1103, %v1104
      %v1106 = vrot.slane %v583, 1
      %v1107 = vsel %vm1017, %v1104, %v1106
      %1108 = vrot.lane.b32.xlu0 %v1020, 8
      %v1109 = vpop.permute.xlu0 %1108
      %1110 = vrot.lane.b32.xlu0 %v1022, 8
      %v1111 = vpop.permute.xlu0 %1110
      %1112 = vrot.lane.b32.xlu0 %v1025, 8
      %v1113 = vpop.permute.xlu0 %1112
      %1114 = vrot.lane.b32.xlu0 %v1027, 8
      %v1115 = vpop.permute.xlu0 %1114
      %1116 = vrot.lane.b32.xlu0 %v1030, 8
      %v1117 = vpop.permute.xlu0 %1116
      %1118 = vrot.lane.b32.xlu0 %v1032, 8
      %v1119 = vpop.permute.xlu0 %1118
      %1120 = vrot.lane.b32.xlu0 %v1035, 8
      %v1121 = vpop.permute.xlu0 %1120
      %1122 = vrot.lane.b32.xlu0 %v1037, 8
      %v1123 = vpop.permute.xlu0 %1122
      %1124 = vrot.lane.b32.xlu0 %v1040, 8
      %v1125 = vpop.permute.xlu0 %1124
      %1126 = vrot.lane.b32.xlu0 %v1042, 8
      %v1127 = vpop.permute.xlu0 %1126
      %1128 = vrot.lane.b32.xlu0 %v1045, 8
      %v1129 = vpop.permute.xlu0 %1128
      %1130 = vrot.lane.b32.xlu0 %v1047, 8
      %v1131 = vpop.permute.xlu0 %1130
      %1132 = vrot.lane.b32.xlu0 %v1050, 8
      %v1133 = vpop.permute.xlu0 %1132
      %1134 = vrot.lane.b32.xlu0 %v1052, 8
      %v1135 = vpop.permute.xlu0 %1134
      %1136 = vrot.lane.b32.xlu0 %v1055, 8
      %v1137 = vpop.permute.xlu0 %1136
      %1138 = vrot.lane.b32.xlu0 %v1057, 8
      %v1139 = vpop.permute.xlu0 %1138
      %1140 = vrot.lane.b32.xlu0 %v1060, 8
      %v1141 = vpop.permute.xlu0 %1140
      %1142 = vrot.lane.b32.xlu0 %v1062, 8
      %v1143 = vpop.permute.xlu0 %1142
      %1144 = vrot.lane.b32.xlu0 %v1065, 8
      %v1145 = vpop.permute.xlu0 %1144
      %1146 = vrot.lane.b32.xlu0 %v1067, 8
      %v1147 = vpop.permute.xlu0 %1146
      %1148 = vrot.lane.b32.xlu0 %v1070, 8
      %v1149 = vpop.permute.xlu0 %1148
      %1150 = vrot.lane.b32.xlu0 %v1072, 8
      %v1151 = vpop.permute.xlu0 %1150
      %1152 = vrot.lane.b32.xlu0 %v1075, 8
      %v1153 = vpop.permute.xlu0 %1152
      %1154 = vrot.lane.b32.xlu0 %v1077, 8
      %v1155 = vpop.permute.xlu0 %1154
      %1156 = vrot.lane.b32.xlu0 %v1080, 8
      %v1157 = vpop.permute.xlu0 %1156
      %1158 = vrot.lane.b32.xlu0 %v1082, 8
      %v1159 = vpop.permute.xlu0 %1158
      %1160 = vrot.lane.b32.xlu0 %v1085, 8
      %v1161 = vpop.permute.xlu0 %1160
      %1162 = vrot.lane.b32.xlu0 %v1087, 8
      %v1163 = vpop.permute.xlu0 %1162
      %1164 = vrot.lane.b32.xlu0 %v1090, 8
      %v1165 = vpop.permute.xlu0 %1164
      %1166 = vrot.lane.b32.xlu0 %v1092, 8
      %v1167 = vpop.permute.xlu0 %1166
      %1168 = vrot.lane.b32.xlu0 %v1095, 8
      %v1169 = vpop.permute.xlu0 %1168
      %1170 = vrot.lane.b32.xlu0 %v1097, 8
      %v1171 = vpop.permute.xlu0 %1170
      %1172 = vrot.lane.b32.xlu0 %v1100, 8
      %v1173 = vpop.permute.xlu0 %1172
      %1174 = vrot.lane.b32.xlu0 %v1102, 8
      %v1175 = vpop.permute.xlu0 %1174
      %1176 = vrot.lane.b32.xlu0 %v1105, 8
      %v1177 = vpop.permute.xlu0 %1176
      %1178 = vrot.lane.b32.xlu0 %v1107, 8
      %v1179 = vpop.permute.xlu0 %1178
      %v1184 = vunpack.c.l.b16 %v340
      %v1185 = vunpack.c.l.b16 %v341
      %v1186 = vunpack.c.l.b16 %v342
      %v1187 = vunpack.c.l.b16 %v343
      %v1188 = vpack.c.b16 %v1185, %v1184
      %v1189 = vpack.c.b16 %v1187, %v1186
      %1190 = vrot.lane.b32.xlu0 %v496, 12
      %v1191 = vpop.permute.xlu0 %1190
      %1192 = vrot.lane.b32.xlu0 %v497, 12
      %v1193 = vpop.permute.xlu0 %1192
      %1194 = vrot.lane.b32.xlu0 %v498, 12
      %v1195 = vpop.permute.xlu0 %1194
      %1196 = vrot.lane.b32.xlu0 %v499, 12
      %v1197 = vpop.permute.xlu0 %1196
      %1198 = vrot.lane.b32.xlu0 %v500, 12
      %v1199 = vpop.permute.xlu0 %1198
      %1200 = vrot.lane.b32.xlu0 %v501, 12
      %v1201 = vpop.permute.xlu0 %1200
      %1202 = vrot.lane.b32.xlu0 %v502, 12
      %v1203 = vpop.permute.xlu0 %1202
      %1204 = vrot.lane.b32.xlu0 %v503, 12
      %v1205 = vpop.permute.xlu0 %1204
      %1206 = vrot.lane.b32.xlu0 %v504, 12
      %v1207 = vpop.permute.xlu0 %1206
      %1208 = vrot.lane.b32.xlu0 %v505, 12
      %v1209 = vpop.permute.xlu0 %1208
      %1210 = vrot.lane.b32.xlu0 %v506, 12
      %v1211 = vpop.permute.xlu0 %1210
      %1212 = vrot.lane.b32.xlu0 %v507, 12
      %v1213 = vpop.permute.xlu0 %1212
      %1214 = vrot.lane.b32.xlu0 %v508, 12
      %v1215 = vpop.permute.xlu0 %1214
      %1216 = vrot.lane.b32.xlu0 %v509, 12
      %v1217 = vpop.permute.xlu0 %1216
      %1218 = vrot.lane.b32.xlu0 %v510, 12
      %v1219 = vpop.permute.xlu0 %1218
      %1220 = vrot.lane.b32.xlu0 %v511, 12
      %v1221 = vpop.permute.xlu0 %1220
      %1222 = vrot.lane.b32.xlu0 %v512, 12
      %v1223 = vpop.permute.xlu0 %1222
      %1224 = vrot.lane.b32.xlu0 %v513, 12
      %v1225 = vpop.permute.xlu0 %1224
      %1226 = vrot.lane.b32.xlu0 %v514, 12
      %v1227 = vpop.permute.xlu0 %1226
      %1228 = vrot.lane.b32.xlu0 %v515, 12
      %v1229 = vpop.permute.xlu0 %1228
      %1230 = vrot.lane.b32.xlu0 %v516, 12
      %v1231 = vpop.permute.xlu0 %1230
      %1232 = vrot.lane.b32.xlu0 %v517, 12
      %v1233 = vpop.permute.xlu0 %1232
      %1234 = vrot.lane.b32.xlu0 %v518, 12
      %v1235 = vpop.permute.xlu0 %1234
      %1236 = vrot.lane.b32.xlu0 %v519, 12
      %v1237 = vpop.permute.xlu0 %1236
      %1238 = vrot.lane.b32.xlu0 %v520, 12
      %v1239 = vpop.permute.xlu0 %1238
      %1240 = vrot.lane.b32.xlu0 %v521, 12
      %v1241 = vpop.permute.xlu0 %1240
      %1242 = vrot.lane.b32.xlu0 %v522, 12
      %v1243 = vpop.permute.xlu0 %1242
      %1244 = vrot.lane.b32.xlu0 %v523, 12
      %v1245 = vpop.permute.xlu0 %1244
      %1246 = vrot.lane.b32.xlu0 %v524, 12
      %v1247 = vpop.permute.xlu0 %1246
      %1248 = vrot.lane.b32.xlu0 %v525, 12
      %v1249 = vpop.permute.xlu0 %1248
      %1250 = vrot.lane.b32.xlu0 %v526, 12
      %v1251 = vpop.permute.xlu0 %1250
      %1252 = vrot.lane.b32.xlu0 %v527, 12
      %v1253 = vpop.permute.xlu0 %1252
      %1254 = vrot.lane.b32.xlu0 %v528, 12
      %v1255 = vpop.permute.xlu0 %1254
      %1256 = vrot.lane.b32.xlu0 %v529, 12
      %v1257 = vpop.permute.xlu0 %1256
      %1258 = vrot.lane.b32.xlu0 %v1188, 12
      %v1259 = vpop.permute.xlu0 %1258
      %1260 = vrot.lane.b32.xlu0 %v1189, 12
      %v1261 = vpop.permute.xlu0 %1260
      %v1263 = vunpack.c.l.b16 %v344
      %v1264 = vpack.c.b16 %v1263, %v1263
      %v1266 = vshrl.u32 %v1188, 16
      %v1268 = vshll.u32 %v1188, 16
      %v1270 = vrot.slane %v1268, 1
      %v1271 = vor.u32 %v1266, %v1270
      %v1273 = vshll.u32 %v1189, 16
      %v1275 = vrot.slane %v1273, 1
      %v1276 = vsel %vm584, %v1271, %v1275
      %v1277 = vshrl.u32 %v1189, 16
      %v1279 = vor.u32 %v1277, %v1275
      %v1281 = vshll.u32 %v1264, 16
      %v1283 = vrot.slane %v1281, 1
      %v1284 = vsel %vm584, %v1279, %v1283
      %1285 = vrot.lane.b32.xlu0 %v616, 16
      %v1286 = vpop.permute.xlu0 %1285
      %1287 = vrot.lane.b32.xlu0 %v624, 16
      %v1288 = vpop.permute.xlu0 %1287
      %1289 = vrot.lane.b32.xlu0 %v636, 16
      %v1290 = vpop.permute.xlu0 %1289
      %1291 = vrot.lane.b32.xlu0 %v644, 16
      %v1292 = vpop.permute.xlu0 %1291
      %1293 = vrot.lane.b32.xlu0 %v656, 16
      %v1294 = vpop.permute.xlu0 %1293
      %1295 = vrot.lane.b32.xlu0 %v664, 16
      %v1296 = vpop.permute.xlu0 %1295
      %1297 = vrot.lane.b32.xlu0 %v676, 16
      %v1298 = vpop.permute.xlu0 %1297
      %1299 = vrot.lane.b32.xlu0 %v684, 16
      %v1300 = vpop.permute.xlu0 %1299
      %1301 = vrot.lane.b32.xlu0 %v696, 16
      %v1302 = vpop.permute.xlu0 %1301
      %1303 = vrot.lane.b32.xlu0 %v704, 16
      %v1304 = vpop.permute.xlu0 %1303
      %1305 = vrot.lane.b32.xlu0 %v716, 16
      %v1306 = vpop.permute.xlu0 %1305
      %1307 = vrot.lane.b32.xlu0 %v724, 16
      %v1308 = vpop.permute.xlu0 %1307
      %1309 = vrot.lane.b32.xlu0 %v736, 16
      %v1310 = vpop.permute.xlu0 %1309
      %1311 = vrot.lane.b32.xlu0 %v744, 16
      %v1312 = vpop.permute.xlu0 %1311
      %1313 = vrot.lane.b32.xlu0 %v756, 16
      %v1314 = vpop.permute.xlu0 %1313
      %1315 = vrot.lane.b32.xlu0 %v764, 16
      %v1316 = vpop.permute.xlu0 %1315
      %1317 = vrot.lane.b32.xlu0 %v776, 16
      %v1318 = vpop.permute.xlu0 %1317
      %1319 = vrot.lane.b32.xlu0 %v784, 16
      %v1320 = vpop.permute.xlu0 %1319
      %1321 = vrot.lane.b32.xlu0 %v796, 16
      %v1322 = vpop.permute.xlu0 %1321
      %1323 = vrot.lane.b32.xlu0 %v804, 16
      %v1324 = vpop.permute.xlu0 %1323
      %1325 = vrot.lane.b32.xlu0 %v816, 16
      %v1326 = vpop.permute.xlu0 %1325
      %1327 = vrot.lane.b32.xlu0 %v824, 16
      %v1328 = vpop.permute.xlu0 %1327
      %1329 = vrot.lane.b32.xlu0 %v836, 16
      %v1330 = vpop.permute.xlu0 %1329
      %1331 = vrot.lane.b32.xlu0 %v844, 16
      %v1332 = vpop.permute.xlu0 %1331
      %1333 = vrot.lane.b32.xlu0 %v856, 16
      %v1334 = vpop.permute.xlu0 %1333
      %1335 = vrot.lane.b32.xlu0 %v864, 16
      %v1336 = vpop.permute.xlu0 %1335
      %1337 = vrot.lane.b32.xlu0 %v876, 16
      %v1338 = vpop.permute.xlu0 %1337
      %1339 = vrot.lane.b32.xlu0 %v884, 16
      %v1340 = vpop.permute.xlu0 %1339
      %1341 = vrot.lane.b32.xlu0 %v896, 16
      %v1342 = vpop.permute.xlu0 %1341
      %1343 = vrot.lane.b32.xlu0 %v904, 16
      %v1344 = vpop.permute.xlu0 %1343
      %1345 = vrot.lane.b32.xlu0 %v916, 16
      %v1346 = vpop.permute.xlu0 %1345
      %1347 = vrot.lane.b32.xlu0 %v924, 16
      %v1348 = vpop.permute.xlu0 %1347
      %1349 = vrot.lane.b32.xlu0 %v936, 16
      %v1350 = vpop.permute.xlu0 %1349
      %1351 = vrot.lane.b32.xlu0 %v944, 16
      %v1352 = vpop.permute.xlu0 %1351
      %1353 = vrot.lane.b32.xlu0 %v1276, 16
      %v1354 = vpop.permute.xlu0 %1353
      %1355 = vrot.lane.b32.xlu0 %v1284, 16
      %v1356 = vpop.permute.xlu0 %1355
      %v1357 = vrot.slane %v1188, 1
      %v1358 = vrot.slane %v1189, 1
      %v1359 = vsel %vm1017, %v1357, %v1358
      %v1360 = vrot.slane %v1264, 1
      %v1361 = vsel %vm1017, %v1358, %v1360
      %1362 = vrot.lane.b32.xlu0 %v1025, 20
      %v1363 = vpop.permute.xlu0 %1362
      %1364 = vrot.lane.b32.xlu0 %v1027, 20
      %v1365 = vpop.permute.xlu0 %1364
      %1366 = vrot.lane.b32.xlu0 %v1030, 20
      %v1367 = vpop.permute.xlu0 %1366
      %1368 = vrot.lane.b32.xlu0 %v1032, 20
      %v1369 = vpop.permute.xlu0 %1368
      %1370 = vrot.lane.b32.xlu0 %v1035, 20
      %v1371 = vpop.permute.xlu0 %1370
      %1372 = vrot.lane.b32.xlu0 %v1037, 20
      %v1373 = vpop.permute.xlu0 %1372
      %1374 = vrot.lane.b32.xlu0 %v1040, 20
      %v1375 = vpop.permute.xlu0 %1374
      %1376 = vrot.lane.b32.xlu0 %v1042, 20
      %v1377 = vpop.permute.xlu0 %1376
      %1378 = vrot.lane.b32.xlu0 %v1045, 20
      %v1379 = vpop.permute.xlu0 %1378
      %1380 = vrot.lane.b32.xlu0 %v1047, 20
      %v1381 = vpop.permute.xlu0 %1380
      %1382 = vrot.lane.b32.xlu0 %v1050, 20
      %v1383 = vpop.permute.xlu0 %1382
      %1384 = vrot.lane.b32.xlu0 %v1052, 20
      %v1385 = vpop.permute.xlu0 %1384
      %1386 = vrot.lane.b32.xlu0 %v1055, 20
      %v1387 = vpop.permute.xlu0 %1386
      %1388 = vrot.lane.b32.xlu0 %v1057, 20
      %v1389 = vpop.permute.xlu0 %1388
      %1390 = vrot.lane.b32.xlu0 %v1060, 20
      %v1391 = vpop.permute.xlu0 %1390
      %1392 = vrot.lane.b32.xlu0 %v1062, 20
      %v1393 = vpop.permute.xlu0 %1392
      %1394 = vrot.lane.b32.xlu0 %v1065, 20
      %v1395 = vpop.permute.xlu0 %1394
      %1396 = vrot.lane.b32.xlu0 %v1067, 20
      %v1397 = vpop.permute.xlu0 %1396
      %1398 = vrot.lane.b32.xlu0 %v1070, 20
      %v1399 = vpop.permute.xlu0 %1398
      %1400 = vrot.lane.b32.xlu0 %v1072, 20
      %v1401 = vpop.permute.xlu0 %1400
      %1402 = vrot.lane.b32.xlu0 %v1075, 20
      %v1403 = vpop.permute.xlu0 %1402
      %1404 = vrot.lane.b32.xlu0 %v1077, 20
      %v1405 = vpop.permute.xlu0 %1404
      %1406 = vrot.lane.b32.xlu0 %v1080, 20
      %v1407 = vpop.permute.xlu0 %1406
      %1408 = vrot.lane.b32.xlu0 %v1082, 20
      %v1409 = vpop.permute.xlu0 %1408
      %1410 = vrot.lane.b32.xlu0 %v1085, 20
      %v1411 = vpop.permute.xlu0 %1410
      %1412 = vrot.lane.b32.xlu0 %v1087, 20
      %v1413 = vpop.permute.xlu0 %1412
      %1414 = vrot.lane.b32.xlu0 %v1090, 20
      %v1415 = vpop.permute.xlu0 %1414
      %1416 = vrot.lane.b32.xlu0 %v1092, 20
      %v1417 = vpop.permute.xlu0 %1416
      %1418 = vrot.lane.b32.xlu0 %v1095, 20
      %v1419 = vpop.permute.xlu0 %1418
      %1420 = vrot.lane.b32.xlu0 %v1097, 20
      %v1421 = vpop.permute.xlu0 %1420
      %1422 = vrot.lane.b32.xlu0 %v1100, 20
      %v1423 = vpop.permute.xlu0 %1422
      %1424 = vrot.lane.b32.xlu0 %v1102, 20
      %v1425 = vpop.permute.xlu0 %1424
      %1426 = vrot.lane.b32.xlu0 %v1105, 20
      %v1427 = vpop.permute.xlu0 %1426
      %1428 = vrot.lane.b32.xlu0 %v1107, 20
      %v1429 = vpop.permute.xlu0 %1428
      %1430 = vrot.lane.b32.xlu0 %v1359, 20
      %v1431 = vpop.permute.xlu0 %1430
      %1432 = vrot.lane.b32.xlu0 %v1361, 20
      %v1433 = vpop.permute.xlu0 %1432
      %v1438 = vunpack.c.l.b16 %v345
      %v1439 = vunpack.c.l.b16 %v346
      %v1440 = vunpack.c.l.b16 %v347
      %v1441 = vunpack.c.l.b16 %v348
      %v1442 = vpack.c.b16 %v1439, %v1438
      %v1443 = vpack.c.b16 %v1441, %v1440
      %1444 = vrot.lane.b32.xlu0 %v498, 24
      %v1445 = vpop.permute.xlu0 %1444
      %1446 = vrot.lane.b32.xlu0 %v499, 24
      %v1447 = vpop.permute.xlu0 %1446
      %1448 = vrot.lane.b32.xlu0 %v500, 24
      %v1449 = vpop.permute.xlu0 %1448
      %1450 = vrot.lane.b32.xlu0 %v501, 24
      %v1451 = vpop.permute.xlu0 %1450
      %1452 = vrot.lane.b32.xlu0 %v502, 24
      %v1453 = vpop.permute.xlu0 %1452
      %1454 = vrot.lane.b32.xlu0 %v503, 24
      %v1455 = vpop.permute.xlu0 %1454
      %1456 = vrot.lane.b32.xlu0 %v504, 24
      %v1457 = vpop.permute.xlu0 %1456
      %1458 = vrot.lane.b32.xlu0 %v505, 24
      %v1459 = vpop.permute.xlu0 %1458
      %1460 = vrot.lane.b32.xlu0 %v506, 24
      %v1461 = vpop.permute.xlu0 %1460
      %1462 = vrot.lane.b32.xlu0 %v507, 24
      %v1463 = vpop.permute.xlu0 %1462
      %1464 = vrot.lane.b32.xlu0 %v508, 24
      %v1465 = vpop.permute.xlu0 %1464
      %1466 = vrot.lane.b32.xlu0 %v509, 24
      %v1467 = vpop.permute.xlu0 %1466
      %1468 = vrot.lane.b32.xlu0 %v510, 24
      %v1469 = vpop.permute.xlu0 %1468
      %1470 = vrot.lane.b32.xlu0 %v511, 24
      %v1471 = vpop.permute.xlu0 %1470
      %1472 = vrot.lane.b32.xlu0 %v512, 24
      %v1473 = vpop.permute.xlu0 %1472
      %1474 = vrot.lane.b32.xlu0 %v513, 24
      %v1475 = vpop.permute.xlu0 %1474
      %1476 = vrot.lane.b32.xlu0 %v514, 24
      %v1477 = vpop.permute.xlu0 %1476
      %1478 = vrot.lane.b32.xlu0 %v515, 24
      %v1479 = vpop.permute.xlu0 %1478
      %1480 = vrot.lane.b32.xlu0 %v516, 24
      %v1481 = vpop.permute.xlu0 %1480
      %1482 = vrot.lane.b32.xlu0 %v517, 24
      %v1483 = vpop.permute.xlu0 %1482
      %1484 = vrot.lane.b32.xlu0 %v518, 24
      %v1485 = vpop.permute.xlu0 %1484
      %1486 = vrot.lane.b32.xlu0 %v519, 24
      %v1487 = vpop.permute.xlu0 %1486
      %1488 = vrot.lane.b32.xlu0 %v520, 24
      %v1489 = vpop.permute.xlu0 %1488
      %1490 = vrot.lane.b32.xlu0 %v521, 24
      %v1491 = vpop.permute.xlu0 %1490
      %1492 = vrot.lane.b32.xlu0 %v522, 24
      %v1493 = vpop.permute.xlu0 %1492
      %1494 = vrot.lane.b32.xlu0 %v523, 24
      %v1495 = vpop.permute.xlu0 %1494
      %1496 = vrot.lane.b32.xlu0 %v524, 24
      %v1497 = vpop.permute.xlu0 %1496
      %1498 = vrot.lane.b32.xlu0 %v525, 24
      %v1499 = vpop.permute.xlu0 %1498
      %1500 = vrot.lane.b32.xlu0 %v526, 24
      %v1501 = vpop.permute.xlu0 %1500
      %1502 = vrot.lane.b32.xlu0 %v527, 24
      %v1503 = vpop.permute.xlu0 %1502
      %1504 = vrot.lane.b32.xlu0 %v528, 24
      %v1505 = vpop.permute.xlu0 %1504
      %1506 = vrot.lane.b32.xlu0 %v529, 24
      %v1507 = vpop.permute.xlu0 %1506
      %1508 = vrot.lane.b32.xlu0 %v1188, 24
      %v1509 = vpop.permute.xlu0 %1508
      %1510 = vrot.lane.b32.xlu0 %v1189, 24
      %v1511 = vpop.permute.xlu0 %1510
      %1512 = vrot.lane.b32.xlu0 %v1442, 24
      %v1513 = vpop.permute.xlu0 %1512
      %1514 = vrot.lane.b32.xlu0 %v1443, 24
      %v1515 = vpop.permute.xlu0 %1514
      %v1517 = vunpack.c.l.b16 %v349
      %v1518 = vpack.c.b16 %v1517, %v1517
      %v1520 = vshrl.u32 %v1442, 16
      %v1522 = vshll.u32 %v1442, 16
      %v1524 = vrot.slane %v1522, 1
      %v1525 = vor.u32 %v1520, %v1524
      %v1527 = vshll.u32 %v1443, 16
      %v1529 = vrot.slane %v1527, 1
      %v1530 = vsel %vm584, %v1525, %v1529
      %v1531 = vshrl.u32 %v1443, 16
      %v1533 = vor.u32 %v1531, %v1529
      %v1535 = vshll.u32 %v1518, 16
      %v1537 = vrot.slane %v1535, 1
      %v1538 = vsel %vm584, %v1533, %v1537
      %1539 = vrot.lane.b32.xlu0 %v636, 28
      %v1540 = vpop.permute.xlu0 %1539
      %1541 = vrot.lane.b32.xlu0 %v644, 28
      %v1542 = vpop.permute.xlu0 %1541
      %1543 = vrot.lane.b32.xlu0 %v656, 28
      %v1544 = vpop.permute.xlu0 %1543
      %1545 = vrot.lane.b32.xlu0 %v664, 28
      %v1546 = vpop.permute.xlu0 %1545
      %1547 = vrot.lane.b32.xlu0 %v676, 28
      %v1548 = vpop.permute.xlu0 %1547
      %1549 = vrot.lane.b32.xlu0 %v684, 28
      %v1550 = vpop.permute.xlu0 %1549
      %1551 = vrot.lane.b32.xlu0 %v696, 28
      %v1552 = vpop.permute.xlu0 %1551
      %1553 = vrot.lane.b32.xlu0 %v704, 28
      %v1554 = vpop.permute.xlu0 %1553
      %1555 = vrot.lane.b32.xlu0 %v716, 28
      %v1556 = vpop.permute.xlu0 %1555
      %1557 = vrot.lane.b32.xlu0 %v724, 28
      %v1558 = vpop.permute.xlu0 %1557
      %1559 = vrot.lane.b32.xlu0 %v736, 28
      %v1560 = vpop.permute.xlu0 %1559
      %1561 = vrot.lane.b32.xlu0 %v744, 28
      %v1562 = vpop.permute.xlu0 %1561
      %1563 = vrot.lane.b32.xlu0 %v756, 28
      %v1564 = vpop.permute.xlu0 %1563
      %1565 = vrot.lane.b32.xlu0 %v764, 28
      %v1566 = vpop.permute.xlu0 %1565
      %1567 = vrot.lane.b32.xlu0 %v776, 28
      %v1568 = vpop.permute.xlu0 %1567
      %1569 = vrot.lane.b32.xlu0 %v784, 28
      %v1570 = vpop.permute.xlu0 %1569
      %1571 = vrot.lane.b32.xlu0 %v796, 28
      %v1572 = vpop.permute.xlu0 %1571
      %1573 = vrot.lane.b32.xlu0 %v804, 28
      %v1574 = vpop.permute.xlu0 %1573
      %1575 = vrot.lane.b32.xlu0 %v816, 28
      %v1576 = vpop.permute.xlu0 %1575
      %1577 = vrot.lane.b32.xlu0 %v824, 28
      %v1578 = vpop.permute.xlu0 %1577
      %1579 = vrot.lane.b32.xlu0 %v836, 28
      %v1580 = vpop.permute.xlu0 %1579
      %1581 = vrot.lane.b32.xlu0 %v844, 28
      %v1582 = vpop.permute.xlu0 %1581
      %1583 = vrot.lane.b32.xlu0 %v856, 28
      %v1584 = vpop.permute.xlu0 %1583
      %1585 = vrot.lane.b32.xlu0 %v864, 28
      %v1586 = vpop.permute.xlu0 %1585
      %1587 = vrot.lane.b32.xlu0 %v876, 28
      %v1588 = vpop.permute.xlu0 %1587
      %1589 = vrot.lane.b32.xlu0 %v884, 28
      %v1590 = vpop.permute.xlu0 %1589
      %1591 = vrot.lane.b32.xlu0 %v896, 28
      %v1592 = vpop.permute.xlu0 %1591
      %1593 = vrot.lane.b32.xlu0 %v904, 28
      %v1594 = vpop.permute.xlu0 %1593
      %1595 = vrot.lane.b32.xlu0 %v916, 28
      %v1596 = vpop.permute.xlu0 %1595
      %1597 = vrot.lane.b32.xlu0 %v924, 28
      %v1598 = vpop.permute.xlu0 %1597
      %1599 = vrot.lane.b32.xlu0 %v936, 28
      %v1600 = vpop.permute.xlu0 %1599
      %1601 = vrot.lane.b32.xlu0 %v944, 28
      %v1602 = vpop.permute.xlu0 %1601
      %1603 = vrot.lane.b32.xlu0 %v1276, 28
      %v1604 = vpop.permute.xlu0 %1603
      %1605 = vrot.lane.b32.xlu0 %v1284, 28
      %v1606 = vpop.permute.xlu0 %1605
      %1607 = vrot.lane.b32.xlu0 %v1530, 28
      %v1608 = vpop.permute.xlu0 %1607
      %1609 = vrot.lane.b32.xlu0 %v1538, 28
      %v1610 = vpop.permute.xlu0 %1609
      %v1611 = vrot.slane %v1442, 1
      %v1612 = vrot.slane %v1443, 1
      %v1613 = vsel %vm1017, %v1611, %v1612
      %v1614 = vrot.slane %v1518, 1
      %v1615 = vsel %vm1017, %v1612, %v1614
      %1616 = vrot.lane.b32.xlu0 %v1030, 32
      %v1617 = vpop.permute.xlu0 %1616
      %1618 = vrot.lane.b32.xlu0 %v1032, 32
      %v1619 = vpop.permute.xlu0 %1618
      %1620 = vrot.lane.b32.xlu0 %v1035, 32
      %v1621 = vpop.permute.xlu0 %1620
      %1622 = vrot.lane.b32.xlu0 %v1037, 32
      %v1623 = vpop.permute.xlu0 %1622
      %1624 = vrot.lane.b32.xlu0 %v1040, 32
      %v1625 = vpop.permute.xlu0 %1624
      %1626 = vrot.lane.b32.xlu0 %v1042, 32
      %v1627 = vpop.permute.xlu0 %1626
      %1628 = vrot.lane.b32.xlu0 %v1045, 32
      %v1629 = vpop.permute.xlu0 %1628
      %1630 = vrot.lane.b32.xlu0 %v1047, 32
      %v1631 = vpop.permute.xlu0 %1630
      %1632 = vrot.lane.b32.xlu0 %v1050, 32
      %v1633 = vpop.permute.xlu0 %1632
      %1634 = vrot.lane.b32.xlu0 %v1052, 32
      %v1635 = vpop.permute.xlu0 %1634
      %1636 = vrot.lane.b32.xlu0 %v1055, 32
      %v1637 = vpop.permute.xlu0 %1636
      %1638 = vrot.lane.b32.xlu0 %v1057, 32
      %v1639 = vpop.permute.xlu0 %1638
      %1640 = vrot.lane.b32.xlu0 %v1060, 32
      %v1641 = vpop.permute.xlu0 %1640
      %1642 = vrot.lane.b32.xlu0 %v1062, 32
      %v1643 = vpop.permute.xlu0 %1642
      %1644 = vrot.lane.b32.xlu0 %v1065, 32
      %v1645 = vpop.permute.xlu0 %1644
      %1646 = vrot.lane.b32.xlu0 %v1067, 32
      %v1647 = vpop.permute.xlu0 %1646
      %1648 = vrot.lane.b32.xlu0 %v1070, 32
      %v1649 = vpop.permute.xlu0 %1648
      %1650 = vrot.lane.b32.xlu0 %v1072, 32
      %v1651 = vpop.permute.xlu0 %1650
      %1652 = vrot.lane.b32.xlu0 %v1075, 32
      %v1653 = vpop.permute.xlu0 %1652
      %1654 = vrot.lane.b32.xlu0 %v1077, 32
      %v1655 = vpop.permute.xlu0 %1654
      %1656 = vrot.lane.b32.xlu0 %v1080, 32
      %v1657 = vpop.permute.xlu0 %1656
      %1658 = vrot.lane.b32.xlu0 %v1082, 32
      %v1659 = vpop.permute.xlu0 %1658
      %1660 = vrot.lane.b32.xlu0 %v1085, 32
      %v1661 = vpop.permute.xlu0 %1660
      %1662 = vrot.lane.b32.xlu0 %v1087, 32
      %v1663 = vpop.permute.xlu0 %1662
      %1664 = vrot.lane.b32.xlu0 %v1090, 32
      %v1665 = vpop.permute.xlu0 %1664
      %1666 = vrot.lane.b32.xlu0 %v1092, 32
      %v1667 = vpop.permute.xlu0 %1666
      %1668 = vrot.lane.b32.xlu0 %v1095, 32
      %v1669 = vpop.permute.xlu0 %1668
      %1670 = vrot.lane.b32.xlu0 %v1097, 32
      %v1671 = vpop.permute.xlu0 %1670
      %1672 = vrot.lane.b32.xlu0 %v1100, 32
      %v1673 = vpop.permute.xlu0 %1672
      %1674 = vrot.lane.b32.xlu0 %v1102, 32
      %v1675 = vpop.permute.xlu0 %1674
      %1676 = vrot.lane.b32.xlu0 %v1105, 32
      %v1677 = vpop.permute.xlu0 %1676
      %1678 = vrot.lane.b32.xlu0 %v1107, 32
      %v1679 = vpop.permute.xlu0 %1678
      %1680 = vrot.lane.b32.xlu0 %v1359, 32
      %v1681 = vpop.permute.xlu0 %1680
      %1682 = vrot.lane.b32.xlu0 %v1361, 32
      %v1683 = vpop.permute.xlu0 %1682
      %1684 = vrot.lane.b32.xlu0 %v1613, 32
      %v1685 = vpop.permute.xlu0 %1684
      %1686 = vrot.lane.b32.xlu0 %v1615, 32
      %v1687 = vpop.permute.xlu0 %1686
      %vm1688 = vcmask 31744
      %v1690 = vsel %vm1688, %v494, %v946
      %v1692 = vsel %vm1688, %v495, %v948
      %v1694 = vsel %vm1688, %v496, %v950
      %v1696 = vsel %vm1688, %v497, %v952
      %v1698 = vsel %vm1688, %v498, %v954
      %v1700 = vsel %vm1688, %v499, %v956
      %v1702 = vsel %vm1688, %v500, %v958
      %v1704 = vsel %vm1688, %v501, %v960
      %v1706 = vsel %vm1688, %v502, %v962
      %v1708 = vsel %vm1688, %v503, %v964
      %v1710 = vsel %vm1688, %v504, %v966
      %v1712 = vsel %vm1688, %v505, %v968
      %v1714 = vsel %vm1688, %v506, %v970
      %v1716 = vsel %vm1688, %v507, %v972
      %v1718 = vsel %vm1688, %v508, %v974
      %v1720 = vsel %vm1688, %v509, %v976
      %v1722 = vsel %vm1688, %v510, %v978
      %v1724 = vsel %vm1688, %v511, %v980
      %v1726 = vsel %vm1688, %v512, %v982
      %v1728 = vsel %vm1688, %v513, %v984
      %v1730 = vsel %vm1688, %v514, %v986
      %v1732 = vsel %vm1688, %v515, %v988
      %v1734 = vsel %vm1688, %v516, %v990
      %v1736 = vsel %vm1688, %v517, %v992
      %v1738 = vsel %vm1688, %v518, %v994
      %v1740 = vsel %vm1688, %v519, %v996
      %v1742 = vsel %vm1688, %v520, %v998
      %v1744 = vsel %vm1688, %v521, %v1000
      %v1746 = vsel %vm1688, %v522, %v1002
      %v1748 = vsel %vm1688, %v523, %v1004
      %v1750 = vsel %vm1688, %v524, %v1006
      %v1752 = vsel %vm1688, %v525, %v1008
      %v1754 = vsel %vm1688, %v526, %v1010
      %v1756 = vsel %vm1688, %v527, %v1012
      %v1758 = vsel %vm1688, %v528, %v1014
      %v1760 = vsel %vm1688, %v529, %v1016
      %vm1761 = vcmask 64512
      %v1763 = vsel %vm1761, %v1690, %v1109
      %v1765 = vsel %vm1761, %v1692, %v1111
      %v1767 = vsel %vm1761, %v1694, %v1113
      %v1769 = vsel %vm1761, %v1696, %v1115
      %v1771 = vsel %vm1761, %v1698, %v1117
      %v1773 = vsel %vm1761, %v1700, %v1119
      %v1775 = vsel %vm1761, %v1702, %v1121
      %v1777 = vsel %vm1761, %v1704, %v1123
      %v1779 = vsel %vm1761, %v1706, %v1125
      %v1781 = vsel %vm1761, %v1708, %v1127
      %v1783 = vsel %vm1761, %v1710, %v1129
      %v1785 = vsel %vm1761, %v1712, %v1131
      %v1787 = vsel %vm1761, %v1714, %v1133
      %v1789 = vsel %vm1761, %v1716, %v1135
      %v1791 = vsel %vm1761, %v1718, %v1137
      %v1793 = vsel %vm1761, %v1720, %v1139
      %v1795 = vsel %vm1761, %v1722, %v1141
      %v1797 = vsel %vm1761, %v1724, %v1143
      %v1799 = vsel %vm1761, %v1726, %v1145
      %v1801 = vsel %vm1761, %v1728, %v1147
      %v1803 = vsel %vm1761, %v1730, %v1149
      %v1805 = vsel %vm1761, %v1732, %v1151
      %v1807 = vsel %vm1761, %v1734, %v1153
      %v1809 = vsel %vm1761, %v1736, %v1155
      %v1811 = vsel %vm1761, %v1738, %v1157
      %v1813 = vsel %vm1761, %v1740, %v1159
      %v1815 = vsel %vm1761, %v1742, %v1161
      %v1817 = vsel %vm1761, %v1744, %v1163
      %v1819 = vsel %vm1761, %v1746, %v1165
      %v1821 = vsel %vm1761, %v1748, %v1167
      %v1823 = vsel %vm1761, %v1750, %v1169
      %v1825 = vsel %vm1761, %v1752, %v1171
      %v1827 = vsel %vm1761, %v1754, %v1173
      %v1829 = vsel %vm1761, %v1756, %v1175
      %v1831 = vsel %vm1761, %v1758, %v1177
      %v1833 = vsel %vm1761, %v1760, %v1179
      %vm1834 = vcmask 97280
      %v1836 = vsel %vm1834, %v1763, %v1191
      %v1838 = vsel %vm1834, %v1765, %v1193
      %v1840 = vsel %vm1834, %v1767, %v1195
      %v1842 = vsel %vm1834, %v1769, %v1197
      %v1844 = vsel %vm1834, %v1771, %v1199
      %v1846 = vsel %vm1834, %v1773, %v1201
      %v1848 = vsel %vm1834, %v1775, %v1203
      %v1850 = vsel %vm1834, %v1777, %v1205
      %v1852 = vsel %vm1834, %v1779, %v1207
      %v1854 = vsel %vm1834, %v1781, %v1209
      %v1856 = vsel %vm1834, %v1783, %v1211
      %v1858 = vsel %vm1834, %v1785, %v1213
      %v1860 = vsel %vm1834, %v1787, %v1215
      %v1862 = vsel %vm1834, %v1789, %v1217
      %v1864 = vsel %vm1834, %v1791, %v1219
      %v1866 = vsel %vm1834, %v1793, %v1221
      %v1868 = vsel %vm1834, %v1795, %v1223
      %v1870 = vsel %vm1834, %v1797, %v1225
      %v1872 = vsel %vm1834, %v1799, %v1227
      %v1874 = vsel %vm1834, %v1801, %v1229
      %v1876 = vsel %vm1834, %v1803, %v1231
      %v1878 = vsel %vm1834, %v1805, %v1233
      %v1880 = vsel %vm1834, %v1807, %v1235
      %v1882 = vsel %vm1834, %v1809, %v1237
      %v1884 = vsel %vm1834, %v1811, %v1239
      %v1886 = vsel %vm1834, %v1813, %v1241
      %v1888 = vsel %vm1834, %v1815, %v1243
      %v1890 = vsel %vm1834, %v1817, %v1245
      %v1892 = vsel %vm1834, %v1819, %v1247
      %v1894 = vsel %vm1834, %v1821, %v1249
      %v1896 = vsel %vm1834, %v1823, %v1251
      %v1898 = vsel %vm1834, %v1825, %v1253
      %v1900 = vsel %vm1834, %v1827, %v1255
      %v1902 = vsel %vm1834, %v1829, %v1257
      %v1904 = vsel %vm1834, %v1831, %v1259
      %v1906 = vsel %vm1834, %v1833, %v1261
      %vm1907 = vcmask 130048
      %v1909 = vsel %vm1907, %v1836, %v1286
      %v1911 = vsel %vm1907, %v1838, %v1288
      %v1913 = vsel %vm1907, %v1840, %v1290
      %v1915 = vsel %vm1907, %v1842, %v1292
      %v1917 = vsel %vm1907, %v1844, %v1294
      %v1919 = vsel %vm1907, %v1846, %v1296
      %v1921 = vsel %vm1907, %v1848, %v1298
      %v1923 = vsel %vm1907, %v1850, %v1300
      %v1925 = vsel %vm1907, %v1852, %v1302
      %v1927 = vsel %vm1907, %v1854, %v1304
      %v1929 = vsel %vm1907, %v1856, %v1306
      %v1931 = vsel %vm1907, %v1858, %v1308
      %v1933 = vsel %vm1907, %v1860, %v1310
      %v1935 = vsel %vm1907, %v1862, %v1312
      %v1937 = vsel %vm1907, %v1864, %v1314
      %v1939 = vsel %vm1907, %v1866, %v1316
      %v1941 = vsel %vm1907, %v1868, %v1318
      %v1943 = vsel %vm1907, %v1870, %v1320
      %v1945 = vsel %vm1907, %v1872, %v1322
      %v1947 = vsel %vm1907, %v1874, %v1324
      %v1949 = vsel %vm1907, %v1876, %v1326
      %v1951 = vsel %vm1907, %v1878, %v1328
      %v1953 = vsel %vm1907, %v1880, %v1330
      %v1955 = vsel %vm1907, %v1882, %v1332
      %v1957 = vsel %vm1907, %v1884, %v1334
      %v1959 = vsel %vm1907, %v1886, %v1336
      %v1961 = vsel %vm1907, %v1888, %v1338
      %v1963 = vsel %vm1907, %v1890, %v1340
      %v1965 = vsel %vm1907, %v1892, %v1342
      %v1967 = vsel %vm1907, %v1894, %v1344
      %v1969 = vsel %vm1907, %v1896, %v1346
      %v1971 = vsel %vm1907, %v1898, %v1348
      %v1973 = vsel %vm1907, %v1900, %v1350
      %v1975 = vsel %vm1907, %v1902, %v1352
      %v1977 = vsel %vm1907, %v1904, %v1354
      %v1979 = vsel %vm1907, %v1906, %v1356
      %vm1980 = vcmask 162816
      %v1982 = vsel %vm1980, %v1909, %v1363
      %v1984 = vsel %vm1980, %v1911, %v1365
      %v1986 = vsel %vm1980, %v1913, %v1367
      %v1988 = vsel %vm1980, %v1915, %v1369
      %v1990 = vsel %vm1980, %v1917, %v1371
      %v1992 = vsel %vm1980, %v1919, %v1373
      %v1994 = vsel %vm1980, %v1921, %v1375
      %v1996 = vsel %vm1980, %v1923, %v1377
      %v1998 = vsel %vm1980, %v1925, %v1379
      %v2000 = vsel %vm1980, %v1927, %v1381
      %v2002 = vsel %vm1980, %v1929, %v1383
      %v2004 = vsel %vm1980, %v1931, %v1385
      %v2006 = vsel %vm1980, %v1933, %v1387
      %v2008 = vsel %vm1980, %v1935, %v1389
      %v2010 = vsel %vm1980, %v1937, %v1391
      %v2012 = vsel %vm1980, %v1939, %v1393
      %v2014 = vsel %vm1980, %v1941, %v1395
      %v2016 = vsel %vm1980, %v1943, %v1397
      %v2018 = vsel %vm1980, %v1945, %v1399
      %v2020 = vsel %vm1980, %v1947, %v1401
      %v2022 = vsel %vm1980, %v1949, %v1403
      %v2024 = vsel %vm1980, %v1951, %v1405
      %v2026 = vsel %vm1980, %v1953, %v1407
      %v2028 = vsel %vm1980, %v1955, %v1409
      %v2030 = vsel %vm1980, %v1957, %v1411
      %v2032 = vsel %vm1980, %v1959, %v1413
      %v2034 = vsel %vm1980, %v1961, %v1415
      %v2036 = vsel %vm1980, %v1963, %v1417
      %v2038 = vsel %vm1980, %v1965, %v1419
      %v2040 = vsel %vm1980, %v1967, %v1421
      %v2042 = vsel %vm1980, %v1969, %v1423
      %v2044 = vsel %vm1980, %v1971, %v1425
      %v2046 = vsel %vm1980, %v1973, %v1427
      %v2048 = vsel %vm1980, %v1975, %v1429
      %v2050 = vsel %vm1980, %v1977, %v1431
      %v2052 = vsel %vm1980, %v1979, %v1433
      %vm2053 = vcmask 195584
      %v2055 = vsel %vm2053, %v1982, %v1445
      %v2057 = vsel %vm2053, %v1984, %v1447
      %v2059 = vsel %vm2053, %v1986, %v1449
      %v2061 = vsel %vm2053, %v1988, %v1451
      %v2063 = vsel %vm2053, %v1990, %v1453
      %v2065 = vsel %vm2053, %v1992, %v1455
      %v2067 = vsel %vm2053, %v1994, %v1457
      %v2069 = vsel %vm2053, %v1996, %v1459
      %v2071 = vsel %vm2053, %v1998, %v1461
      %v2073 = vsel %vm2053, %v2000, %v1463
      %v2075 = vsel %vm2053, %v2002, %v1465
      %v2077 = vsel %vm2053, %v2004, %v1467
      %v2079 = vsel %vm2053, %v2006, %v1469
      %v2081 = vsel %vm2053, %v2008, %v1471
      %v2083 = vsel %vm2053, %v2010, %v1473
      %v2085 = vsel %vm2053, %v2012, %v1475
      %v2087 = vsel %vm2053, %v2014, %v1477
      %v2089 = vsel %vm2053, %v2016, %v1479
      %v2091 = vsel %vm2053, %v2018, %v1481
      %v2093 = vsel %vm2053, %v2020, %v1483
      %v2095 = vsel %vm2053, %v2022, %v1485
      %v2097 = vsel %vm2053, %v2024, %v1487
      %v2099 = vsel %vm2053, %v2026, %v1489
      %v2101 = vsel %vm2053, %v2028, %v1491
      %v2103 = vsel %vm2053, %v2030, %v1493
      %v2105 = vsel %vm2053, %v2032, %v1495
      %v2107 = vsel %vm2053, %v2034, %v1497
      %v2109 = vsel %vm2053, %v2036, %v1499
      %v2111 = vsel %vm2053, %v2038, %v1501
      %v2113 = vsel %vm2053, %v2040, %v1503
      %v2115 = vsel %vm2053, %v2042, %v1505
      %v2117 = vsel %vm2053, %v2044, %v1507
      %v2119 = vsel %vm2053, %v2046, %v1509
      %v2121 = vsel %vm2053, %v2048, %v1511
      %v2123 = vsel %vm2053, %v2050, %v1513
      %v2125 = vsel %vm2053, %v2052, %v1515
      %vm2126 = vcmask 228352
      %v2128 = vsel %vm2126, %v2055, %v1540
      %v2130 = vsel %vm2126, %v2057, %v1542
      %v2132 = vsel %vm2126, %v2059, %v1544
      %v2134 = vsel %vm2126, %v2061, %v1546
      %v2136 = vsel %vm2126, %v2063, %v1548
      %v2138 = vsel %vm2126, %v2065, %v1550
      %v2140 = vsel %vm2126, %v2067, %v1552
      %v2142 = vsel %vm2126, %v2069, %v1554
      %v2144 = vsel %vm2126, %v2071, %v1556
      %v2146 = vsel %vm2126, %v2073, %v1558
      %v2148 = vsel %vm2126, %v2075, %v1560
      %v2150 = vsel %vm2126, %v2077, %v1562
      %v2152 = vsel %vm2126, %v2079, %v1564
      %v2154 = vsel %vm2126, %v2081, %v1566
      %v2156 = vsel %vm2126, %v2083, %v1568
      %v2158 = vsel %vm2126, %v2085, %v1570
      %v2160 = vsel %vm2126, %v2087, %v1572
      %v2162 = vsel %vm2126, %v2089, %v1574
      %v2164 = vsel %vm2126, %v2091, %v1576
      %v2166 = vsel %vm2126, %v2093, %v1578
      %v2168 = vsel %vm2126, %v2095, %v1580
      %v2170 = vsel %vm2126, %v2097, %v1582
      %v2172 = vsel %vm2126, %v2099, %v1584
      %v2174 = vsel %vm2126, %v2101, %v1586
      %v2176 = vsel %vm2126, %v2103, %v1588
      %v2178 = vsel %vm2126, %v2105, %v1590
      %v2180 = vsel %vm2126, %v2107, %v1592
      %v2182 = vsel %vm2126, %v2109, %v1594
      %v2184 = vsel %vm2126, %v2111, %v1596
      %v2186 = vsel %vm2126, %v2113, %v1598
      %v2188 = vsel %vm2126, %v2115, %v1600
      %v2190 = vsel %vm2126, %v2117, %v1602
      %v2192 = vsel %vm2126, %v2119, %v1604
      %v2194 = vsel %vm2126, %v2121, %v1606
      %v2196 = vsel %vm2126, %v2123, %v1608
      %v2198 = vsel %vm2126, %v2125, %v1610
      %vm2199 = vcmask 261120
      %v2201 = vsel %vm2199, %v2128, %v1617
      %v2203 = vsel %vm2199, %v2130, %v1619
      %v2205 = vsel %vm2199, %v2132, %v1621
      %v2207 = vsel %vm2199, %v2134, %v1623
      %v2209 = vsel %vm2199, %v2136, %v1625
      %v2211 = vsel %vm2199, %v2138, %v1627
      %v2213 = vsel %vm2199, %v2140, %v1629
      %v2215 = vsel %vm2199, %v2142, %v1631
      %v2217 = vsel %vm2199, %v2144, %v1633
      %v2219 = vsel %vm2199, %v2146, %v1635
      %v2221 = vsel %vm2199, %v2148, %v1637
      %v2223 = vsel %vm2199, %v2150, %v1639
      %v2225 = vsel %vm2199, %v2152, %v1641
      %v2227 = vsel %vm2199, %v2154, %v1643
      %v2229 = vsel %vm2199, %v2156, %v1645
      %v2231 = vsel %vm2199, %v2158, %v1647
      %v2233 = vsel %vm2199, %v2160, %v1649
      %v2235 = vsel %vm2199, %v2162, %v1651
      %v2237 = vsel %vm2199, %v2164, %v1653
      %v2239 = vsel %vm2199, %v2166, %v1655
      %v2241 = vsel %vm2199, %v2168, %v1657
      %v2243 = vsel %vm2199, %v2170, %v1659
      %v2245 = vsel %vm2199, %v2172, %v1661
      %v2247 = vsel %vm2199, %v2174, %v1663
      %v2249 = vsel %vm2199, %v2176, %v1665
      %v2251 = vsel %vm2199, %v2178, %v1667
      %v2253 = vsel %vm2199, %v2180, %v1669
      %v2255 = vsel %vm2199, %v2182, %v1671
      %v2257 = vsel %vm2199, %v2184, %v1673
      %v2259 = vsel %vm2199, %v2186, %v1675
      %v2261 = vsel %vm2199, %v2188, %v1677
      %v2263 = vsel %vm2199, %v2190, %v1679
      %v2265 = vsel %vm2199, %v2192, %v1681
      %v2267 = vsel %vm2199, %v2194, %v1683
      %v2269 = vsel %vm2199, %v2196, %v1685
      %v2271 = vsel %vm2199, %v2198, %v1687
      %v2272 = vld [vmem:[%s1] sm:$0xf]
      %v2273 = vld [vmem:[%s1 + $0x4] sm:$0xf]
      %v2274 = vld [vmem:[%s1 + $0x8] sm:$0xf]
      %v2275 = vld [vmem:[%s1 + $0xc] sm:$0xf]
      %v2276 = vld [vmem:[%s1 + $0x10] sm:$0x3]
      %v2282 = vunpack.c.l.b16 %v2272
      %v2283 = vunpack.c.l.b16 %v2273
      %v2284 = vunpack.c.l.b16 %v2274
      %v2285 = vunpack.c.l.b16 %v2275
      %v2286 = vunpack.c.l.b16 %v2276
      %v2287 = vpack.c.b16 %v2283, %v2282
      %v2288 = vpack.c.b16 %v2285, %v2284
      %v2289 = vpack.c.b16 %v2286, %v2286
      %vm2292 = vcmask 293888
      %v2293 = vsel %vm2292, %v2201, 0
      %v2295 = vsel %vm2292, %v2203, 0
      %v2297 = vsel %vm2292, %v2205, 0
      %v2299 = vsel %vm2292, %v2207, 0
      %v2301 = vsel %vm2292, %v2209, 0
      %v2303 = vsel %vm2292, %v2211, 0
      %v2305 = vsel %vm2292, %v2213, 0
      %v2307 = vsel %vm2292, %v2215, 0
      %v2309 = vsel %vm2292, %v2217, 0
      %v2311 = vsel %vm2292, %v2219, 0
      %v2313 = vsel %vm2292, %v2221, 0
      %v2315 = vsel %vm2292, %v2223, 0
      %v2317 = vsel %vm2292, %v2225, 0
      %v2319 = vsel %vm2292, %v2227, 0
      %v2321 = vsel %vm2292, %v2229, 0
      %v2323 = vsel %vm2292, %v2231, 0
      %v2325 = vsel %vm2292, %v2233, 0
      %v2327 = vsel %vm2292, %v2235, 0
      %v2329 = vsel %vm2292, %v2237, 0
      %v2331 = vsel %vm2292, %v2239, 0
      %v2333 = vsel %vm2292, %v2241, 0
      %v2335 = vsel %vm2292, %v2243, 0
      %v2337 = vsel %vm2292, %v2245, 0
      %v2339 = vsel %vm2292, %v2247, 0
      %v2341 = vsel %vm2292, %v2249, 0
      %v2343 = vsel %vm2292, %v2251, 0
      %v2345 = vsel %vm2292, %v2253, 0
      %v2347 = vsel %vm2292, %v2255, 0
      %v2349 = vsel %vm2292, %v2257, 0
      %v2351 = vsel %vm2292, %v2259, 0
      %v2353 = vsel %vm2292, %v2261, 0
      %v2355 = vsel %vm2292, %v2263, 0
      %v2357 = vsel %vm2292, %v2265, 0
      %v2359 = vsel %vm2292, %v2267, 0
      %v2361 = vsel %vm2292, %v2269, 0
      %v2363 = vsel %vm2292, %v2271, 0
      %vm2365 = vcmask 1041408
      %v2367 = vsel %vm2365, %v2289, 0
      %2369 = vmatprep.subr.bf16.mxu0 0
      %2370 = vmatpush1.bf16.msra.mxu0 0
      %2371 = vmatprep.subr.bf16.mxu0 0
      %2372 = vmatpush1.bf16.msra.mxu0 0
      %2373 = vmatprep.subr.bf16.mxu0 0
      %2374 = vmatpush1.bf16.msra.mxu0 0
      %2375 = vmatprep.subr.bf16.mxu0 0
      %2376 = vmatpush1.bf16.msra.mxu0 0
      %2377 = vmatprep.subr.bf16.mxu0 0
      %2378 = vmatpush1.bf16.msra.mxu0 0
      %2379 = vmatprep.subr.bf16.mxu0 0
      %2380 = vmatpush1.bf16.msra.mxu0 %v2367
      %2381 = vmatprep.subr.bf16.mxu0 0
      %2382 = vmatpush1.bf16.msra.mxu0 %v2288
      %2383 = vmatprep.subr.bf16.mxu0 0
      %2384 = vmatpush1.bf16.msra.mxu0 %v2287
      %2385 = vmatprep.subr.bf16.mxu0 0
      %2386 = vmatpush2.bf16.msra.mxu0 0
      %2387 = vmatprep.subr.bf16.mxu0 0
      %2388 = vmatpush2.bf16.msra.mxu0 0
      %2389 = vmatprep.subr.bf16.mxu0 0
      %2390 = vmatpush2.bf16.msra.mxu0 0
      %2391 = vmatprep.subr.bf16.mxu0 0
      %2392 = vmatpush2.bf16.msra.mxu0 0
      %2393 = vmatprep.subr.bf16.mxu0 0
      %2394 = vmatpush2.bf16.msra.mxu0 0
      %2395 = vmatprep.subr.bf16.mxu0 0
      %2396 = vmatpush2.bf16.msra.mxu0 0
      %2397 = vmatprep.subr.bf16.mxu0 0
      %2398 = vmatpush2.bf16.msra.mxu0 0
      %2399 = vmatprep.subr.bf16.mxu0 0
      %2400 = vmatpush2.bf16.msra.mxu0 0
      %2401 = vmatprep.mubr.bf16.mxu0 0
      %2402 = vmatmul.mubr.bf16.gmra.mxu0 %v2293
      %v2403 = vpop.f32.mrf.mxu0
      %v2404 = vadd.f32 0.0, %v2403
      %v2405 = vpop.f32.mrf.mxu0
      %v2406 = vpop.f32.mrf.mxu0
      %v2407 = vadd.f32 0.0, %v2406
      %v2408 = vpop.f32.mrf.mxu0
      %2409 = vmatprep.mubr.bf16.mxu0 0
      %2410 = vmatmul.mubr.bf16.gmra.mxu0 %v2295
      %v2411 = vpop.f32.mrf.mxu0
      %v2412 = vadd.f32 0.0, %v2411
      %v2413 = vpop.f32.mrf.mxu0
      %v2414 = vpop.f32.mrf.mxu0
      %v2415 = vadd.f32 0.0, %v2414
      %v2416 = vpop.f32.mrf.mxu0
      %2417 = vmatprep.mubr.bf16.mxu0 0
      %2418 = vmatmul.mubr.bf16.gmra.mxu0 %v2297
      %v2419 = vpop.f32.mrf.mxu0
      %v2420 = vadd.f32 0.0, %v2419
      %v2421 = vpop.f32.mrf.mxu0
      %v2422 = vpop.f32.mrf.mxu0
      %v2423 = vadd.f32 0.0, %v2422
      %v2424 = vpop.f32.mrf.mxu0
      %2425 = vmatprep.mubr.bf16.mxu0 0
      %2426 = vmatmul.mubr.bf16.gmra.mxu0 %v2299
      %v2427 = vpop.f32.mrf.mxu0
      %v2428 = vadd.f32 0.0, %v2427
      %v2429 = vpop.f32.mrf.mxu0
      %v2430 = vpop.f32.mrf.mxu0
      %v2431 = vadd.f32 0.0, %v2430
      %v2432 = vpop.f32.mrf.mxu0
      %2433 = vmatprep.mubr.bf16.mxu0 0
      %2434 = vmatmul.mubr.bf16.gmra.mxu0 %v2301
      %v2435 = vpop.f32.mrf.mxu0
      %v2436 = vadd.f32 0.0, %v2435
      %v2437 = vpop.f32.mrf.mxu0
      %v2438 = vpop.f32.mrf.mxu0
      %v2439 = vadd.f32 0.0, %v2438
      %v2440 = vpop.f32.mrf.mxu0
      %2441 = vmatprep.mubr.bf16.mxu0 0
      %2442 = vmatmul.mubr.bf16.gmra.mxu0 %v2303
      %v2443 = vpop.f32.mrf.mxu0
      %v2444 = vadd.f32 0.0, %v2443
      %v2445 = vpop.f32.mrf.mxu0
      %v2446 = vpop.f32.mrf.mxu0
      %v2447 = vadd.f32 0.0, %v2446
      %v2448 = vpop.f32.mrf.mxu0
      %2449 = vmatprep.mubr.bf16.mxu0 0
      %2450 = vmatmul.mubr.bf16.gmra.mxu0 %v2305
      %v2451 = vpop.f32.mrf.mxu0
      %v2452 = vadd.f32 0.0, %v2451
      %v2453 = vpop.f32.mrf.mxu0
      %v2454 = vpop.f32.mrf.mxu0
      %v2455 = vadd.f32 0.0, %v2454
      %v2456 = vpop.f32.mrf.mxu0
      %2457 = vmatprep.mubr.bf16.mxu0 0
      %2458 = vmatmul.mubr.bf16.gmra.mxu0 %v2307
      %v2459 = vpop.f32.mrf.mxu0
      %v2460 = vadd.f32 0.0, %v2459
      %v2461 = vpop.f32.mrf.mxu0
      %v2462 = vpop.f32.mrf.mxu0
      %v2463 = vadd.f32 0.0, %v2462
      %v2464 = vpop.f32.mrf.mxu0
      %2465 = vmatprep.mubr.bf16.mxu0 0
      %2466 = vmatmul.mubr.bf16.gmra.mxu0 %v2309
      %v2467 = vpop.f32.mrf.mxu0
      %v2468 = vadd.f32 0.0, %v2467
      %v2469 = vpop.f32.mrf.mxu0
      %v2470 = vpop.f32.mrf.mxu0
      %v2471 = vadd.f32 0.0, %v2470
      %v2472 = vpop.f32.mrf.mxu0
      %2473 = vmatprep.mubr.bf16.mxu0 0
      %2474 = vmatmul.mubr.bf16.gmra.mxu0 %v2311
      %v2475 = vpop.f32.mrf.mxu0
      %v2476 = vadd.f32 0.0, %v2475
      %v2477 = vpop.f32.mrf.mxu0
      %v2478 = vpop.f32.mrf.mxu0
      %v2479 = vadd.f32 0.0, %v2478
      %v2480 = vpop.f32.mrf.mxu0
      %2481 = vmatprep.mubr.bf16.mxu0 0
      %2482 = vmatmul.mubr.bf16.gmra.mxu0 %v2313
      %v2483 = vpop.f32.mrf.mxu0
      %v2484 = vadd.f32 0.0, %v2483
      %v2485 = vpop.f32.mrf.mxu0
      %v2486 = vpop.f32.mrf.mxu0
      %v2487 = vadd.f32 0.0, %v2486
      %v2488 = vpop.f32.mrf.mxu0
      %2489 = vmatprep.mubr.bf16.mxu0 0
      %2490 = vmatmul.mubr.bf16.gmra.mxu0 %v2315
      %v2491 = vpop.f32.mrf.mxu0
      %v2492 = vadd.f32 0.0, %v2491
      %v2493 = vpop.f32.mrf.mxu0
      %v2494 = vpop.f32.mrf.mxu0
      %v2495 = vadd.f32 0.0, %v2494
      %v2496 = vpop.f32.mrf.mxu0
      %2497 = vmatprep.mubr.bf16.mxu0 0
      %2498 = vmatmul.mubr.bf16.gmra.mxu0 %v2317
      %v2499 = vpop.f32.mrf.mxu0
      %v2500 = vadd.f32 0.0, %v2499
      %v2501 = vpop.f32.mrf.mxu0
      %v2502 = vpop.f32.mrf.mxu0
      %v2503 = vadd.f32 0.0, %v2502
      %v2504 = vpop.f32.mrf.mxu0
      %2505 = vmatprep.mubr.bf16.mxu0 0
      %2506 = vmatmul.mubr.bf16.gmra.mxu0 %v2319
      %v2507 = vpop.f32.mrf.mxu0
      %v2508 = vadd.f32 0.0, %v2507
      %v2509 = vpop.f32.mrf.mxu0
      %v2510 = vpop.f32.mrf.mxu0
      %v2511 = vadd.f32 0.0, %v2510
      %v2512 = vpop.f32.mrf.mxu0
      %2513 = vmatprep.mubr.bf16.mxu0 0
      %2514 = vmatmul.mubr.bf16.gmra.mxu0 %v2321
      %v2515 = vpop.f32.mrf.mxu0
      %v2516 = vadd.f32 0.0, %v2515
      %v2517 = vpop.f32.mrf.mxu0
      %v2518 = vpop.f32.mrf.mxu0
      %v2519 = vadd.f32 0.0, %v2518
      %v2520 = vpop.f32.mrf.mxu0
      %2521 = vmatprep.mubr.bf16.mxu0 0
      %2522 = vmatmul.mubr.bf16.gmra.mxu0 %v2323
      %v2523 = vpop.f32.mrf.mxu0
      %v2524 = vadd.f32 0.0, %v2523
      %v2525 = vpop.f32.mrf.mxu0
      %v2526 = vpop.f32.mrf.mxu0
      %v2527 = vadd.f32 0.0, %v2526
      %v2528 = vpop.f32.mrf.mxu0
      %2529 = vmatprep.mubr.bf16.mxu0 0
      %2530 = vmatmul.mubr.bf16.gmra.mxu0 %v2325
      %v2531 = vpop.f32.mrf.mxu0
      %v2532 = vadd.f32 0.0, %v2531
      %v2533 = vpop.f32.mrf.mxu0
      %v2534 = vpop.f32.mrf.mxu0
      %v2535 = vadd.f32 0.0, %v2534
      %v2536 = vpop.f32.mrf.mxu0
      %2537 = vmatprep.mubr.bf16.mxu0 0
      %2538 = vmatmul.mubr.bf16.gmra.mxu0 %v2327
      %v2539 = vpop.f32.mrf.mxu0
      %v2540 = vadd.f32 0.0, %v2539
      %v2541 = vpop.f32.mrf.mxu0
      %v2542 = vpop.f32.mrf.mxu0
      %v2543 = vadd.f32 0.0, %v2542
      %v2544 = vpop.f32.mrf.mxu0
      %2545 = vmatprep.mubr.bf16.mxu0 0
      %2546 = vmatmul.mubr.bf16.gmra.mxu0 %v2329
      %v2547 = vpop.f32.mrf.mxu0
      %v2548 = vadd.f32 0.0, %v2547
      %v2549 = vpop.f32.mrf.mxu0
      %v2550 = vpop.f32.mrf.mxu0
      %v2551 = vadd.f32 0.0, %v2550
      %v2552 = vpop.f32.mrf.mxu0
      %2553 = vmatprep.mubr.bf16.mxu0 0
      %2554 = vmatmul.mubr.bf16.gmra.mxu0 %v2331
      %v2555 = vpop.f32.mrf.mxu0
      %v2556 = vadd.f32 0.0, %v2555
      %v2557 = vpop.f32.mrf.mxu0
      %v2558 = vpop.f32.mrf.mxu0
      %v2559 = vadd.f32 0.0, %v2558
      %v2560 = vpop.f32.mrf.mxu0
      %2561 = vmatprep.mubr.bf16.mxu0 0
      %2562 = vmatmul.mubr.bf16.gmra.mxu0 %v2333
      %v2563 = vpop.f32.mrf.mxu0
      %v2564 = vadd.f32 0.0, %v2563
      %v2565 = vpop.f32.mrf.mxu0
      %v2566 = vpop.f32.mrf.mxu0
      %v2567 = vadd.f32 0.0, %v2566
      %v2568 = vpop.f32.mrf.mxu0
      %2569 = vmatprep.mubr.bf16.mxu0 0
      %2570 = vmatmul.mubr.bf16.gmra.mxu0 %v2335
      %v2571 = vpop.f32.mrf.mxu0
      %v2572 = vadd.f32 0.0, %v2571
      %v2573 = vpop.f32.mrf.mxu0
      %v2574 = vpop.f32.mrf.mxu0
      %v2575 = vadd.f32 0.0, %v2574
      %v2576 = vpop.f32.mrf.mxu0
      %2577 = vmatprep.mubr.bf16.mxu0 0
      %2578 = vmatmul.mubr.bf16.gmra.mxu0 %v2337
      %v2579 = vpop.f32.mrf.mxu0
      %v2580 = vadd.f32 0.0, %v2579
      %v2581 = vpop.f32.mrf.mxu0
      %v2582 = vpop.f32.mrf.mxu0
      %v2583 = vadd.f32 0.0, %v2582
      %v2584 = vpop.f32.mrf.mxu0
      %2585 = vmatprep.mubr.bf16.mxu0 0
      %2586 = vmatmul.mubr.bf16.gmra.mxu0 %v2339
      %v2587 = vpop.f32.mrf.mxu0
      %v2588 = vadd.f32 0.0, %v2587
      %v2589 = vpop.f32.mrf.mxu0
      %v2590 = vpop.f32.mrf.mxu0
      %v2591 = vadd.f32 0.0, %v2590
      %v2592 = vpop.f32.mrf.mxu0
      %2593 = vmatprep.mubr.bf16.mxu0 0
      %2594 = vmatmul.mubr.bf16.gmra.mxu0 %v2341
      %v2595 = vpop.f32.mrf.mxu0
      %v2596 = vadd.f32 0.0, %v2595
      %v2597 = vpop.f32.mrf.mxu0
      %v2598 = vpop.f32.mrf.mxu0
      %v2599 = vadd.f32 0.0, %v2598
      %v2600 = vpop.f32.mrf.mxu0
      %2601 = vmatprep.mubr.bf16.mxu0 0
      %2602 = vmatmul.mubr.bf16.gmra.mxu0 %v2343
      %v2603 = vpop.f32.mrf.mxu0
      %v2604 = vadd.f32 0.0, %v2603
      %v2605 = vpop.f32.mrf.mxu0
      %v2606 = vpop.f32.mrf.mxu0
      %v2607 = vadd.f32 0.0, %v2606
      %v2608 = vpop.f32.mrf.mxu0
      %2609 = vmatprep.mubr.bf16.mxu0 0
      %2610 = vmatmul.mubr.bf16.gmra.mxu0 %v2345
      %v2611 = vpop.f32.mrf.mxu0
      %v2612 = vadd.f32 0.0, %v2611
      %v2613 = vpop.f32.mrf.mxu0
      %v2614 = vpop.f32.mrf.mxu0
      %v2615 = vadd.f32 0.0, %v2614
      %v2616 = vpop.f32.mrf.mxu0
      %2617 = vmatprep.mubr.bf16.mxu0 0
      %2618 = vmatmul.mubr.bf16.gmra.mxu0 %v2347
      %v2619 = vpop.f32.mrf.mxu0
      %v2620 = vadd.f32 0.0, %v2619
      %v2621 = vpop.f32.mrf.mxu0
      %v2622 = vpop.f32.mrf.mxu0
      %v2623 = vadd.f32 0.0, %v2622
      %v2624 = vpop.f32.mrf.mxu0
      %2625 = vmatprep.mubr.bf16.mxu0 0
      %2626 = vmatmul.mubr.bf16.gmra.mxu0 %v2349
      %v2627 = vpop.f32.mrf.mxu0
      %v2628 = vadd.f32 0.0, %v2627
      %v2629 = vpop.f32.mrf.mxu0
      %v2630 = vpop.f32.mrf.mxu0
      %v2631 = vadd.f32 0.0, %v2630
      %v2632 = vpop.f32.mrf.mxu0
      %2633 = vmatprep.mubr.bf16.mxu0 0
      %2634 = vmatmul.mubr.bf16.gmra.mxu0 %v2351
      %v2635 = vpop.f32.mrf.mxu0
      %v2636 = vadd.f32 0.0, %v2635
      %v2637 = vpop.f32.mrf.mxu0
      %v2638 = vpop.f32.mrf.mxu0
      %v2639 = vadd.f32 0.0, %v2638
      %v2640 = vpop.f32.mrf.mxu0
      %2641 = vmatprep.mubr.bf16.mxu0 0
      %2642 = vmatmul.mubr.bf16.gmra.mxu0 %v2353
      %v2643 = vpop.f32.mrf.mxu0
      %v2644 = vadd.f32 0.0, %v2643
      %v2645 = vpop.f32.mrf.mxu0
      %v2646 = vpop.f32.mrf.mxu0
      %v2647 = vadd.f32 0.0, %v2646
      %v2648 = vpop.f32.mrf.mxu0
      %2649 = vmatprep.mubr.bf16.mxu0 0
      %2650 = vmatmul.mubr.bf16.gmra.mxu0 %v2355
      %v2651 = vpop.f32.mrf.mxu0
      %v2652 = vadd.f32 0.0, %v2651
      %v2653 = vpop.f32.mrf.mxu0
      %v2654 = vpop.f32.mrf.mxu0
      %v2655 = vadd.f32 0.0, %v2654
      %v2656 = vpop.f32.mrf.mxu0
      %2657 = vmatprep.mubr.bf16.mxu0 0
      %2658 = vmatmul.mubr.bf16.gmra.mxu0 %v2357
      %v2659 = vpop.f32.mrf.mxu0
      %v2660 = vadd.f32 0.0, %v2659
      %v2661 = vpop.f32.mrf.mxu0
      %v2662 = vpop.f32.mrf.mxu0
      %v2663 = vadd.f32 0.0, %v2662
      %v2664 = vpop.f32.mrf.mxu0
      %2665 = vmatprep.mubr.bf16.mxu0 0
      %2666 = vmatmul.mubr.bf16.gmra.mxu0 %v2359
      %v2667 = vpop.f32.mrf.mxu0
      %v2668 = vadd.f32 0.0, %v2667
      %v2669 = vpop.f32.mrf.mxu0
      %v2670 = vpop.f32.mrf.mxu0
      %v2671 = vadd.f32 0.0, %v2670
      %v2672 = vpop.f32.mrf.mxu0
      %2673 = vmatprep.mubr.bf16.mxu0 0
      %2674 = vmatmul.mubr.bf16.gmra.mxu0 %v2361
      %v2675 = vpop.f32.mrf.mxu0
      %v2676 = vadd.f32 0.0, %v2675
      %v2677 = vpop.f32.mrf.mxu0
      %v2678 = vpop.f32.mrf.mxu0
      %v2679 = vadd.f32 0.0, %v2678
      %v2680 = vpop.f32.mrf.mxu0
      %2681 = vmatprep.mubr.bf16.mxu0 0
      %2682 = vmatmul.mubr.bf16.gmra.mxu0 %v2363
      %v2683 = vpop.f32.mrf.mxu0
      %v2684 = vadd.f32 0.0, %v2683
      %v2685 = vpop.f32.mrf.mxu0
      %v2686 = vpop.f32.mrf.mxu0
      %v2687 = vadd.f32 0.0, %v2686
      %v2688 = vpop.f32.mrf.mxu0
      %2689 = vdwg.mxu0
      %v2690 = vld [vmem:[%s2] sm:$0x1]
      %v2692 = vlaneseq
      %v2693 = vshrl.u32 %v2692, 7
      %v2694 = vsub.s32 0, %v2693
      %v2695 = vrot.slane %v2690, %v2694
      %v2697 = vadd.f32 %v2404, %v2695
      %v2698 = vadd.f32 %v2407, %v2695
      %v2699 = vadd.f32 %v2412, %v2695
      %v2700 = vadd.f32 %v2415, %v2695
      %v2701 = vadd.f32 %v2420, %v2695
      %v2702 = vadd.f32 %v2423, %v2695
      %v2703 = vadd.f32 %v2428, %v2695
      %v2704 = vadd.f32 %v2431, %v2695
      %v2705 = vadd.f32 %v2436, %v2695
      %v2706 = vadd.f32 %v2439, %v2695
      %v2707 = vadd.f32 %v2444, %v2695
      %v2708 = vadd.f32 %v2447, %v2695
      %v2709 = vadd.f32 %v2452, %v2695
      %v2710 = vadd.f32 %v2455, %v2695
      %v2711 = vadd.f32 %v2460, %v2695
      %v2712 = vadd.f32 %v2463, %v2695
      %v2713 = vadd.f32 %v2468, %v2695
      %v2714 = vadd.f32 %v2471, %v2695
      %v2715 = vadd.f32 %v2476, %v2695
      %v2716 = vadd.f32 %v2479, %v2695
      %v2717 = vadd.f32 %v2484, %v2695
      %v2718 = vadd.f32 %v2487, %v2695
      %v2719 = vadd.f32 %v2492, %v2695
      %v2720 = vadd.f32 %v2495, %v2695
      %v2721 = vadd.f32 %v2500, %v2695
      %v2722 = vadd.f32 %v2503, %v2695
      %v2723 = vadd.f32 %v2508, %v2695
      %v2724 = vadd.f32 %v2511, %v2695
      %v2725 = vadd.f32 %v2516, %v2695
      %v2726 = vadd.f32 %v2519, %v2695
      %v2727 = vadd.f32 %v2524, %v2695
      %v2728 = vadd.f32 %v2527, %v2695
      %v2729 = vadd.f32 %v2532, %v2695
      %v2730 = vadd.f32 %v2535, %v2695
      %v2731 = vadd.f32 %v2540, %v2695
      %v2732 = vadd.f32 %v2543, %v2695
      %v2733 = vadd.f32 %v2548, %v2695
      %v2734 = vadd.f32 %v2551, %v2695
      %v2735 = vadd.f32 %v2556, %v2695
      %v2736 = vadd.f32 %v2559, %v2695
      %v2737 = vadd.f32 %v2564, %v2695
      %v2738 = vadd.f32 %v2567, %v2695
      %v2739 = vadd.f32 %v2572, %v2695
      %v2740 = vadd.f32 %v2575, %v2695
      %v2741 = vadd.f32 %v2580, %v2695
      %v2742 = vadd.f32 %v2583, %v2695
      %v2743 = vadd.f32 %v2588, %v2695
      %v2744 = vadd.f32 %v2591, %v2695
      %v2745 = vadd.f32 %v2596, %v2695
      %v2746 = vadd.f32 %v2599, %v2695
      %v2747 = vadd.f32 %v2604, %v2695
      %v2748 = vadd.f32 %v2607, %v2695
      %v2749 = vadd.f32 %v2612, %v2695
      %v2750 = vadd.f32 %v2615, %v2695
      %v2751 = vadd.f32 %v2620, %v2695
      %v2752 = vadd.f32 %v2623, %v2695
      %v2753 = vadd.f32 %v2628, %v2695
      %v2754 = vadd.f32 %v2631, %v2695
      %v2755 = vadd.f32 %v2636, %v2695
      %v2756 = vadd.f32 %v2639, %v2695
      %v2757 = vadd.f32 %v2644, %v2695
      %v2758 = vadd.f32 %v2647, %v2695
      %v2759 = vadd.f32 %v2652, %v2695
      %v2760 = vadd.f32 %v2655, %v2695
      %v2761 = vadd.f32 %v2660, %v2695
      %v2762 = vadd.f32 %v2663, %v2695
      %v2763 = vadd.f32 %v2668, %v2695
      %v2764 = vadd.f32 %v2671, %v2695
      %v2765 = vadd.f32 %v2676, %v2695
      %v2766 = vadd.f32 %v2679, %v2695
      %v2767 = vadd.f32 %v2684, %v2695
      %v2768 = vadd.f32 %v2687, %v2695
      %v2769 = vmax.f32 %v2697, 0.0
      %v2770 = vmax.f32 %v2698, 0.0
      %v2771 = vmax.f32 %v2699, 0.0
      %v2772 = vmax.f32 %v2700, 0.0
      %v2773 = vmax.f32 %v2701, 0.0
      %v2774 = vmax.f32 %v2702, 0.0
      %v2775 = vmax.f32 %v2703, 0.0
      %v2776 = vmax.f32 %v2704, 0.0
      %v2777 = vmax.f32 %v2705, 0.0
      %v2778 = vmax.f32 %v2706, 0.0
      %v2779 = vmax.f32 %v2707, 0.0
      %v2780 = vmax.f32 %v2708, 0.0
      %v2781 = vmax.f32 %v2709, 0.0
      %v2782 = vmax.f32 %v2710, 0.0
      %v2783 = vmax.f32 %v2711, 0.0
      %v2784 = vmax.f32 %v2712, 0.0
      %v2785 = vmax.f32 %v2713, 0.0
      %v2786 = vmax.f32 %v2714, 0.0
      %v2787 = vmax.f32 %v2715, 0.0
      %v2788 = vmax.f32 %v2716, 0.0
      %v2789 = vmax.f32 %v2717, 0.0
      %v2790 = vmax.f32 %v2718, 0.0
      %v2791 = vmax.f32 %v2719, 0.0
      %v2792 = vmax.f32 %v2720, 0.0
      %v2793 = vmax.f32 %v2721, 0.0
      %v2794 = vmax.f32 %v2722, 0.0
      %v2795 = vmax.f32 %v2723, 0.0
      %v2796 = vmax.f32 %v2724, 0.0
      %v2797 = vmax.f32 %v2725, 0.0
      %v2798 = vmax.f32 %v2726, 0.0
      %v2799 = vmax.f32 %v2727, 0.0
      %v2800 = vmax.f32 %v2728, 0.0
      %v2801 = vmax.f32 %v2729, 0.0
      %v2802 = vmax.f32 %v2730, 0.0
      %v2803 = vmax.f32 %v2731, 0.0
      %v2804 = vmax.f32 %v2732, 0.0
      %v2805 = vmax.f32 %v2733, 0.0
      %v2806 = vmax.f32 %v2734, 0.0
      %v2807 = vmax.f32 %v2735, 0.0
      %v2808 = vmax.f32 %v2736, 0.0
      %v2809 = vmax.f32 %v2737, 0.0
      %v2810 = vmax.f32 %v2738, 0.0
      %v2811 = vmax.f32 %v2739, 0.0
      %v2812 = vmax.f32 %v2740, 0.0
      %v2813 = vmax.f32 %v2741, 0.0
      %v2814 = vmax.f32 %v2742, 0.0
      %v2815 = vmax.f32 %v2743, 0.0
      %v2816 = vmax.f32 %v2744, 0.0
      %v2817 = vmax.f32 %v2745, 0.0
      %v2818 = vmax.f32 %v2746, 0.0
      %v2819 = vmax.f32 %v2747, 0.0
      %v2820 = vmax.f32 %v2748, 0.0
      %v2821 = vmax.f32 %v2749, 0.0
      %v2822 = vmax.f32 %v2750, 0.0
      %v2823 = vmax.f32 %v2751, 0.0
      %v2824 = vmax.f32 %v2752, 0.0
      %v2825 = vmax.f32 %v2753, 0.0
      %v2826 = vmax.f32 %v2754, 0.0
      %v2827 = vmax.f32 %v2755, 0.0
      %v2828 = vmax.f32 %v2756, 0.0
      %v2829 = vmax.f32 %v2757, 0.0
      %v2830 = vmax.f32 %v2758, 0.0
      %v2831 = vmax.f32 %v2759, 0.0
      %v2832 = vmax.f32 %v2760, 0.0
      %v2833 = vmax.f32 %v2761, 0.0
      %v2834 = vmax.f32 %v2762, 0.0
      %v2835 = vmax.f32 %v2763, 0.0
      %v2836 = vmax.f32 %v2764, 0.0
      %v2837 = vmax.f32 %v2765, 0.0
      %v2838 = vmax.f32 %v2766, 0.0
      %v2839 = vmax.f32 %v2767, 0.0
      %v2840 = vmax.f32 %v2768, 0.0
      %v2841 = vpack.c.bf16 %v2770, %v2769
      %v2842 = vpack.c.bf16 %v2772, %v2771
      %v2843 = vpack.c.bf16 %v2774, %v2773
      %v2844 = vpack.c.bf16 %v2776, %v2775
      %v2845 = vpack.c.bf16 %v2778, %v2777
      %v2846 = vpack.c.bf16 %v2780, %v2779
      %v2847 = vpack.c.bf16 %v2782, %v2781
      %v2848 = vpack.c.bf16 %v2784, %v2783
      %v2849 = vpack.c.bf16 %v2786, %v2785
      %v2850 = vpack.c.bf16 %v2788, %v2787
      %v2851 = vpack.c.bf16 %v2790, %v2789
      %v2852 = vpack.c.bf16 %v2792, %v2791
      %v2853 = vpack.c.bf16 %v2794, %v2793
      %v2854 = vpack.c.bf16 %v2796, %v2795
      %v2855 = vpack.c.bf16 %v2798, %v2797
      %v2856 = vpack.c.bf16 %v2800, %v2799
      %v2857 = vpack.c.bf16 %v2802, %v2801
      %v2858 = vpack.c.bf16 %v2804, %v2803
      %v2859 = vpack.c.bf16 %v2806, %v2805
      %v2860 = vpack.c.bf16 %v2808, %v2807
      %v2861 = vpack.c.bf16 %v2810, %v2809
      %v2862 = vpack.c.bf16 %v2812, %v2811
      %v2863 = vpack.c.bf16 %v2814, %v2813
      %v2864 = vpack.c.bf16 %v2816, %v2815
      %v2865 = vpack.c.bf16 %v2818, %v2817
      %v2866 = vpack.c.bf16 %v2820, %v2819
      %v2867 = vpack.c.bf16 %v2822, %v2821
      %v2868 = vpack.c.bf16 %v2824, %v2823
      %v2869 = vpack.c.bf16 %v2826, %v2825
      %v2870 = vpack.c.bf16 %v2828, %v2827
      %v2871 = vpack.c.bf16 %v2830, %v2829
      %v2872 = vpack.c.bf16 %v2832, %v2831
      %v2873 = vpack.c.bf16 %v2834, %v2833
      %v2874 = vpack.c.bf16 %v2836, %v2835
      %v2875 = vpack.c.bf16 %v2838, %v2837
      %v2876 = vpack.c.bf16 %v2840, %v2839
      %v2913 = vunpack.c.l.b16 %v2841
      %v2914 = vunpack.c.h.b16 %v2841
      %v2915 = vunpack.c.l.b16 %v2842
      %v2916 = vunpack.c.h.b16 %v2842
      %v2917 = vunpack.c.l.b16 %v2843
      %v2918 = vunpack.c.h.b16 %v2843
      %v2919 = vunpack.c.l.b16 %v2844
      %v2920 = vunpack.c.h.b16 %v2844
      %v2921 = vunpack.c.l.b16 %v2845
      %v2922 = vunpack.c.h.b16 %v2845
      %v2923 = vunpack.c.l.b16 %v2846
      %v2924 = vunpack.c.h.b16 %v2846
      %v2925 = vunpack.c.l.b16 %v2847
      %v2926 = vunpack.c.h.b16 %v2847
      %v2927 = vunpack.c.l.b16 %v2848
      %v2928 = vunpack.c.h.b16 %v2848
      %v2929 = vunpack.c.l.b16 %v2849
      %v2930 = vunpack.c.h.b16 %v2849
      %v2931 = vunpack.c.l.b16 %v2850
      %v2932 = vunpack.c.h.b16 %v2850
      %v2933 = vunpack.c.l.b16 %v2851
      %v2934 = vunpack.c.h.b16 %v2851
      %v2935 = vunpack.c.l.b16 %v2852
      %v2936 = vunpack.c.h.b16 %v2852
      %v2937 = vunpack.c.l.b16 %v2853
      %v2938 = vunpack.c.h.b16 %v2853
      %v2939 = vunpack.c.l.b16 %v2854
      %v2940 = vunpack.c.h.b16 %v2854
      %v2941 = vunpack.c.l.b16 %v2855
      %v2942 = vunpack.c.h.b16 %v2855
      %v2943 = vunpack.c.l.b16 %v2856
      %v2944 = vunpack.c.h.b16 %v2856
      %v2945 = vunpack.c.l.b16 %v2857
      %v2946 = vunpack.c.h.b16 %v2857
      %v2947 = vunpack.c.l.b16 %v2858
      %v2948 = vunpack.c.h.b16 %v2858
      %v2949 = vunpack.c.l.b16 %v2859
      %v2950 = vunpack.c.h.b16 %v2859
      %v2951 = vunpack.c.l.b16 %v2860
      %v2952 = vunpack.c.h.b16 %v2860
      %v2953 = vunpack.c.l.b16 %v2861
      %v2954 = vunpack.c.h.b16 %v2861
      %v2955 = vunpack.c.l.b16 %v2862
      %v2956 = vunpack.c.h.b16 %v2862
      %v2957 = vunpack.c.l.b16 %v2863
      %v2958 = vunpack.c.h.b16 %v2863
      %v2959 = vunpack.c.l.b16 %v2864
      %v2960 = vunpack.c.h.b16 %v2864
      %v2961 = vunpack.c.l.b16 %v2865
      %v2962 = vunpack.c.h.b16 %v2865
      %v2963 = vunpack.c.l.b16 %v2866
      %v2964 = vunpack.c.h.b16 %v2866
      %v2965 = vunpack.c.l.b16 %v2867
      %v2966 = vunpack.c.h.b16 %v2867
      %v2967 = vunpack.c.l.b16 %v2868
      %v2968 = vunpack.c.h.b16 %v2868
      %v2969 = vunpack.c.l.b16 %v2869
      %v2970 = vunpack.c.h.b16 %v2869
      %v2971 = vunpack.c.l.b16 %v2870
      %v2972 = vunpack.c.h.b16 %v2870
      %v2973 = vunpack.c.l.b16 %v2871
      %v2974 = vunpack.c.h.b16 %v2871
      %v2975 = vunpack.c.l.b16 %v2872
      %v2976 = vunpack.c.h.b16 %v2872
      %v2977 = vunpack.c.l.b16 %v2873
      %v2978 = vunpack.c.h.b16 %v2873
      %v2979 = vunpack.c.l.b16 %v2874
      %v2980 = vunpack.c.h.b16 %v2874
      %v2981 = vunpack.c.l.b16 %v2875
      %v2982 = vunpack.c.h.b16 %v2875
      %v2983 = vunpack.c.l.b16 %v2876
      %v2984 = vunpack.c.h.b16 %v2876
      %v2985 = vpack.c.b16 %v2913, %v2913
      %v2986 = vpack.c.b16 %v2914, %v2914
      %v2987 = vpack.c.b16 %v2915, %v2915
      %v2988 = vpack.c.b16 %v2916, %v2916
      %v2989 = vpack.c.b16 %v2917, %v2917
      %v2990 = vpack.c.b16 %v2918, %v2918
      %v2991 = vpack.c.b16 %v2919, %v2919
      %v2992 = vpack.c.b16 %v2920, %v2920
      %v2993 = vpack.c.b16 %v2921, %v2921
      %v2994 = vpack.c.b16 %v2922, %v2922
      %v2995 = vpack.c.b16 %v2923, %v2923
      %v2996 = vpack.c.b16 %v2924, %v2924
      %v2997 = vpack.c.b16 %v2925, %v2925
      %v2998 = vpack.c.b16 %v2926, %v2926
      %v2999 = vpack.c.b16 %v2927, %v2927
      %v3000 = vpack.c.b16 %v2928, %v2928
      %v3001 = vpack.c.b16 %v2929, %v2929
      %v3002 = vpack.c.b16 %v2930, %v2930
      %v3003 = vpack.c.b16 %v2931, %v2931
      %v3004 = vpack.c.b16 %v2932, %v2932
      %v3005 = vpack.c.b16 %v2933, %v2933
      %v3006 = vpack.c.b16 %v2934, %v2934
      %v3007 = vpack.c.b16 %v2935, %v2935
      %v3008 = vpack.c.b16 %v2936, %v2936
      %v3009 = vpack.c.b16 %v2937, %v2937
      %v3010 = vpack.c.b16 %v2938, %v2938
      %v3011 = vpack.c.b16 %v2939, %v2939
      %v3012 = vpack.c.b16 %v2940, %v2940
      %v3013 = vpack.c.b16 %v2941, %v2941
      %v3014 = vpack.c.b16 %v2942, %v2942
      %v3015 = vpack.c.b16 %v2943, %v2943
      %v3016 = vpack.c.b16 %v2944, %v2944
      %v3017 = vpack.c.b16 %v2945, %v2945
      %v3018 = vpack.c.b16 %v2946, %v2946
      %v3019 = vpack.c.b16 %v2947, %v2947
      %v3020 = vpack.c.b16 %v2948, %v2948
      %v3021 = vpack.c.b16 %v2949, %v2949
      %v3022 = vpack.c.b16 %v2950, %v2950
      %v3023 = vpack.c.b16 %v2951, %v2951
      %v3024 = vpack.c.b16 %v2952, %v2952
      %v3025 = vpack.c.b16 %v2953, %v2953
      %v3026 = vpack.c.b16 %v2954, %v2954
      %v3027 = vpack.c.b16 %v2955, %v2955
      %v3028 = vpack.c.b16 %v2956, %v2956
      %v3029 = vpack.c.b16 %v2957, %v2957
      %v3030 = vpack.c.b16 %v2958, %v2958
      %v3031 = vpack.c.b16 %v2959, %v2959
      %v3032 = vpack.c.b16 %v2960, %v2960
      %v3033 = vpack.c.b16 %v2961, %v2961
      %v3034 = vpack.c.b16 %v2962, %v2962
      %v3035 = vpack.c.b16 %v2963, %v2963
      %v3036 = vpack.c.b16 %v2964, %v2964
      %v3037 = vpack.c.b16 %v2965, %v2965
      %v3038 = vpack.c.b16 %v2966, %v2966
      %v3039 = vpack.c.b16 %v2967, %v2967
      %v3040 = vpack.c.b16 %v2968, %v2968
      %v3041 = vpack.c.b16 %v2969, %v2969
      %v3042 = vpack.c.b16 %v2970, %v2970
      %v3043 = vpack.c.b16 %v2971, %v2971
      %v3044 = vpack.c.b16 %v2972, %v2972
      %v3045 = vpack.c.b16 %v2973, %v2973
      %v3046 = vpack.c.b16 %v2974, %v2974
      %v3047 = vpack.c.b16 %v2975, %v2975
      %v3048 = vpack.c.b16 %v2976, %v2976
      %v3049 = vpack.c.b16 %v2977, %v2977
      %v3050 = vpack.c.b16 %v2978, %v2978
      %v3051 = vpack.c.b16 %v2979, %v2979
      %v3052 = vpack.c.b16 %v2980, %v2980
      %v3053 = vpack.c.b16 %v2981, %v2981
      %v3054 = vpack.c.b16 %v2982, %v2982
      %v3055 = vpack.c.b16 %v2983, %v2983
      %v3056 = vpack.c.b16 %v2984, %v2984
      %vm3057 = vsmask.f32 256
      %vm3058 = vsmask.f32 4368
      %vm3059 = vmor %vm3057, %vm3058
      %v3061 = vshrl.u32 %v2985, 16
      %v3063 = vrot.slane %v3061, 7
      %v3064 = vshll.u32 %v2985, 16
      %v3066 = vor.u32 %v3063, %v3064
      %v3067 = vrot.slane %v3063, 4
      %v3069 = vshrl.u32 %v2986, 16
      %v3071 = vrot.slane %v3069, 7
      %v3072 = vshll.u32 %v2986, 16
      %v3074 = vor.u32 %v3071, %v3072
      %v3075 = vsel %vm3059, %v3067, %v3074
      %v3076 = vrot.slane %v3071, 4
      %v3078 = vshrl.u32 %v2987, 16
      %v3080 = vrot.slane %v3078, 7
      %v3081 = vshll.u32 %v2987, 16
      %v3083 = vor.u32 %v3080, %v3081
      %v3084 = vsel %vm3059, %v3076, %v3083
      %v3085 = vrot.slane %v3080, 4
      %v3087 = vshrl.u32 %v2988, 16
      %v3089 = vrot.slane %v3087, 7
      %v3090 = vshll.u32 %v2988, 16
      %v3092 = vor.u32 %v3089, %v3090
      %v3093 = vsel %vm3059, %v3085, %v3092
      %v3094 = vrot.slane %v3089, 4
      %v3096 = vshrl.u32 %v2989, 16
      %v3098 = vrot.slane %v3096, 7
      %v3099 = vshll.u32 %v2989, 16
      %v3101 = vor.u32 %v3098, %v3099
      %v3102 = vrot.slane %v3098, 4
      %v3104 = vshrl.u32 %v2990, 16
      %v3106 = vrot.slane %v3104, 7
      %v3107 = vshll.u32 %v2990, 16
      %v3109 = vor.u32 %v3106, %v3107
      %v3110 = vsel %vm3059, %v3102, %v3109
      %v3111 = vrot.slane %v3106, 4
      %v3113 = vshrl.u32 %v2991, 16
      %v3115 = vrot.slane %v3113, 7
      %v3116 = vshll.u32 %v2991, 16
      %v3118 = vor.u32 %v3115, %v3116
      %v3119 = vsel %vm3059, %v3111, %v3118
      %v3120 = vrot.slane %v3115, 4
      %v3122 = vshrl.u32 %v2992, 16
      %v3124 = vrot.slane %v3122, 7
      %v3125 = vshll.u32 %v2992, 16
      %v3127 = vor.u32 %v3124, %v3125
      %v3128 = vsel %vm3059, %v3120, %v3127
      %v3129 = vrot.slane %v3124, 4
      %v3131 = vshrl.u32 %v2993, 16
      %v3133 = vrot.slane %v3131, 7
      %v3134 = vshll.u32 %v2993, 16
      %v3136 = vor.u32 %v3133, %v3134
      %v3137 = vrot.slane %v3133, 4
      %v3139 = vshrl.u32 %v2994, 16
      %v3141 = vrot.slane %v3139, 7
      %v3142 = vshll.u32 %v2994, 16
      %v3144 = vor.u32 %v3141, %v3142
      %v3145 = vsel %vm3059, %v3137, %v3144
      %v3146 = vrot.slane %v3141, 4
      %v3148 = vshrl.u32 %v2995, 16
      %v3150 = vrot.slane %v3148, 7
      %v3151 = vshll.u32 %v2995, 16
      %v3153 = vor.u32 %v3150, %v3151
      %v3154 = vsel %vm3059, %v3146, %v3153
      %v3155 = vrot.slane %v3150, 4
      %v3157 = vshrl.u32 %v2996, 16
      %v3159 = vrot.slane %v3157, 7
      %v3160 = vshll.u32 %v2996, 16
      %v3162 = vor.u32 %v3159, %v3160
      %v3163 = vsel %vm3059, %v3155, %v3162
      %v3164 = vrot.slane %v3159, 4
      %v3166 = vshrl.u32 %v2997, 16
      %v3168 = vrot.slane %v3166, 7
      %v3169 = vshll.u32 %v2997, 16
      %v3171 = vor.u32 %v3168, %v3169
      %v3172 = vrot.slane %v3168, 4
      %v3174 = vshrl.u32 %v2998, 16
      %v3176 = vrot.slane %v3174, 7
      %v3177 = vshll.u32 %v2998, 16
      %v3179 = vor.u32 %v3176, %v3177
      %v3180 = vsel %vm3059, %v3172, %v3179
      %v3181 = vrot.slane %v3176, 4
      %v3183 = vshrl.u32 %v2999, 16
      %v3185 = vrot.slane %v3183, 7
      %v3186 = vshll.u32 %v2999, 16
      %v3188 = vor.u32 %v3185, %v3186
      %v3189 = vsel %vm3059, %v3181, %v3188
      %v3190 = vrot.slane %v3185, 4
      %v3192 = vshrl.u32 %v3000, 16
      %v3194 = vrot.slane %v3192, 7
      %v3195 = vshll.u32 %v3000, 16
      %v3197 = vor.u32 %v3194, %v3195
      %v3198 = vsel %vm3059, %v3190, %v3197
      %v3199 = vrot.slane %v3194, 4
      %v3201 = vshrl.u32 %v3001, 16
      %v3203 = vrot.slane %v3201, 7
      %v3204 = vshll.u32 %v3001, 16
      %v3206 = vor.u32 %v3203, %v3204
      %v3207 = vrot.slane %v3203, 4
      %v3209 = vshrl.u32 %v3002, 16
      %v3211 = vrot.slane %v3209, 7
      %v3212 = vshll.u32 %v3002, 16
      %v3214 = vor.u32 %v3211, %v3212
      %v3215 = vsel %vm3059, %v3207, %v3214
      %v3216 = vrot.slane %v3211, 4
      %v3218 = vshrl.u32 %v3003, 16
      %v3220 = vrot.slane %v3218, 7
      %v3221 = vshll.u32 %v3003, 16
      %v3223 = vor.u32 %v3220, %v3221
      %v3224 = vsel %vm3059, %v3216, %v3223
      %v3225 = vrot.slane %v3220, 4
      %v3227 = vshrl.u32 %v3004, 16
      %v3229 = vrot.slane %v3227, 7
      %v3230 = vshll.u32 %v3004, 16
      %v3232 = vor.u32 %v3229, %v3230
      %v3233 = vsel %vm3059, %v3225, %v3232
      %v3234 = vrot.slane %v3229, 4
      %v3236 = vshrl.u32 %v3005, 16
      %v3238 = vrot.slane %v3236, 7
      %v3239 = vshll.u32 %v3005, 16
      %v3241 = vor.u32 %v3238, %v3239
      %v3242 = vrot.slane %v3238, 4
      %v3244 = vshrl.u32 %v3006, 16
      %v3246 = vrot.slane %v3244, 7
      %v3247 = vshll.u32 %v3006, 16
      %v3249 = vor.u32 %v3246, %v3247
      %v3250 = vsel %vm3059, %v3242, %v3249
      %v3251 = vrot.slane %v3246, 4
      %v3253 = vshrl.u32 %v3007, 16
      %v3255 = vrot.slane %v3253, 7
      %v3256 = vshll.u32 %v3007, 16
      %v3258 = vor.u32 %v3255, %v3256
      %v3259 = vsel %vm3059, %v3251, %v3258
      %v3260 = vrot.slane %v3255, 4
      %v3262 = vshrl.u32 %v3008, 16
      %v3264 = vrot.slane %v3262, 7
      %v3265 = vshll.u32 %v3008, 16
      %v3267 = vor.u32 %v3264, %v3265
      %v3268 = vsel %vm3059, %v3260, %v3267
      %v3269 = vrot.slane %v3264, 4
      %v3271 = vshrl.u32 %v3009, 16
      %v3273 = vrot.slane %v3271, 7
      %v3274 = vshll.u32 %v3009, 16
      %v3276 = vor.u32 %v3273, %v3274
      %v3277 = vrot.slane %v3273, 4
      %v3279 = vshrl.u32 %v3010, 16
      %v3281 = vrot.slane %v3279, 7
      %v3282 = vshll.u32 %v3010, 16
      %v3284 = vor.u32 %v3281, %v3282
      %v3285 = vsel %vm3059, %v3277, %v3284
      %v3286 = vrot.slane %v3281, 4
      %v3288 = vshrl.u32 %v3011, 16
      %v3290 = vrot.slane %v3288, 7
      %v3291 = vshll.u32 %v3011, 16
      %v3293 = vor.u32 %v3290, %v3291
      %v3294 = vsel %vm3059, %v3286, %v3293
      %v3295 = vrot.slane %v3290, 4
      %v3297 = vshrl.u32 %v3012, 16
      %v3299 = vrot.slane %v3297, 7
      %v3300 = vshll.u32 %v3012, 16
      %v3302 = vor.u32 %v3299, %v3300
      %v3303 = vsel %vm3059, %v3295, %v3302
      %v3304 = vrot.slane %v3299, 4
      %v3306 = vshrl.u32 %v3013, 16
      %v3308 = vrot.slane %v3306, 7
      %v3309 = vshll.u32 %v3013, 16
      %v3311 = vor.u32 %v3308, %v3309
      %v3312 = vrot.slane %v3308, 4
      %v3314 = vshrl.u32 %v3014, 16
      %v3316 = vrot.slane %v3314, 7
      %v3317 = vshll.u32 %v3014, 16
      %v3319 = vor.u32 %v3316, %v3317
      %v3320 = vsel %vm3059, %v3312, %v3319
      %v3321 = vrot.slane %v3316, 4
      %v3323 = vshrl.u32 %v3015, 16
      %v3325 = vrot.slane %v3323, 7
      %v3326 = vshll.u32 %v3015, 16
      %v3328 = vor.u32 %v3325, %v3326
      %v3329 = vsel %vm3059, %v3321, %v3328
      %v3330 = vrot.slane %v3325, 4
      %v3332 = vshrl.u32 %v3016, 16
      %v3334 = vrot.slane %v3332, 7
      %v3335 = vshll.u32 %v3016, 16
      %v3337 = vor.u32 %v3334, %v3335
      %v3338 = vsel %vm3059, %v3330, %v3337
      %v3339 = vrot.slane %v3334, 4
      %v3341 = vshrl.u32 %v3017, 16
      %v3343 = vrot.slane %v3341, 7
      %v3344 = vshll.u32 %v3017, 16
      %v3346 = vor.u32 %v3343, %v3344
      %v3347 = vrot.slane %v3343, 4
      %v3349 = vshrl.u32 %v3018, 16
      %v3351 = vrot.slane %v3349, 7
      %v3352 = vshll.u32 %v3018, 16
      %v3354 = vor.u32 %v3351, %v3352
      %v3355 = vsel %vm3059, %v3347, %v3354
      %v3356 = vrot.slane %v3351, 4
      %v3358 = vshrl.u32 %v3019, 16
      %v3360 = vrot.slane %v3358, 7
      %v3361 = vshll.u32 %v3019, 16
      %v3363 = vor.u32 %v3360, %v3361
      %v3364 = vsel %vm3059, %v3356, %v3363
      %v3365 = vrot.slane %v3360, 4
      %v3367 = vshrl.u32 %v3020, 16
      %v3369 = vrot.slane %v3367, 7
      %v3370 = vshll.u32 %v3020, 16
      %v3372 = vor.u32 %v3369, %v3370
      %v3373 = vsel %vm3059, %v3365, %v3372
      %v3374 = vrot.slane %v3369, 4
      %v3376 = vshrl.u32 %v3021, 16
      %v3378 = vrot.slane %v3376, 7
      %v3379 = vshll.u32 %v3021, 16
      %v3381 = vor.u32 %v3378, %v3379
      %v3382 = vrot.slane %v3378, 4
      %v3384 = vshrl.u32 %v3022, 16
      %v3386 = vrot.slane %v3384, 7
      %v3387 = vshll.u32 %v3022, 16
      %v3389 = vor.u32 %v3386, %v3387
      %v3390 = vsel %vm3059, %v3382, %v3389
      %v3391 = vrot.slane %v3386, 4
      %v3393 = vshrl.u32 %v3023, 16
      %v3395 = vrot.slane %v3393, 7
      %v3396 = vshll.u32 %v3023, 16
      %v3398 = vor.u32 %v3395, %v3396
      %v3399 = vsel %vm3059, %v3391, %v3398
      %v3400 = vrot.slane %v3395, 4
      %v3402 = vshrl.u32 %v3024, 16
      %v3404 = vrot.slane %v3402, 7
      %v3405 = vshll.u32 %v3024, 16
      %v3407 = vor.u32 %v3404, %v3405
      %v3408 = vsel %vm3059, %v3400, %v3407
      %v3409 = vrot.slane %v3404, 4
      %v3411 = vshrl.u32 %v3025, 16
      %v3413 = vrot.slane %v3411, 7
      %v3414 = vshll.u32 %v3025, 16
      %v3416 = vor.u32 %v3413, %v3414
      %v3417 = vrot.slane %v3413, 4
      %v3419 = vshrl.u32 %v3026, 16
      %v3421 = vrot.slane %v3419, 7
      %v3422 = vshll.u32 %v3026, 16
      %v3424 = vor.u32 %v3421, %v3422
      %v3425 = vsel %vm3059, %v3417, %v3424
      %v3426 = vrot.slane %v3421, 4
      %v3428 = vshrl.u32 %v3027, 16
      %v3430 = vrot.slane %v3428, 7
      %v3431 = vshll.u32 %v3027, 16
      %v3433 = vor.u32 %v3430, %v3431
      %v3434 = vsel %vm3059, %v3426, %v3433
      %v3435 = vrot.slane %v3430, 4
      %v3437 = vshrl.u32 %v3028, 16
      %v3439 = vrot.slane %v3437, 7
      %v3440 = vshll.u32 %v3028, 16
      %v3442 = vor.u32 %v3439, %v3440
      %v3443 = vsel %vm3059, %v3435, %v3442
      %v3444 = vrot.slane %v3439, 4
      %v3446 = vshrl.u32 %v3029, 16
      %v3448 = vrot.slane %v3446, 7
      %v3449 = vshll.u32 %v3029, 16
      %v3451 = vor.u32 %v3448, %v3449
      %v3452 = vrot.slane %v3448, 4
      %v3454 = vshrl.u32 %v3030, 16
      %v3456 = vrot.slane %v3454, 7
      %v3457 = vshll.u32 %v3030, 16
      %v3459 = vor.u32 %v3456, %v3457
      %v3460 = vsel %vm3059, %v3452, %v3459
      %v3461 = vrot.slane %v3456, 4
      %v3463 = vshrl.u32 %v3031, 16
      %v3465 = vrot.slane %v3463, 7
      %v3466 = vshll.u32 %v3031, 16
      %v3468 = vor.u32 %v3465, %v3466
      %v3469 = vsel %vm3059, %v3461, %v3468
      %v3470 = vrot.slane %v3465, 4
      %v3472 = vshrl.u32 %v3032, 16
      %v3474 = vrot.slane %v3472, 7
      %v3475 = vshll.u32 %v3032, 16
      %v3477 = vor.u32 %v3474, %v3475
      %v3478 = vsel %vm3059, %v3470, %v3477
      %v3479 = vrot.slane %v3474, 4
      %v3481 = vshrl.u32 %v3033, 16
      %v3483 = vrot.slane %v3481, 7
      %v3484 = vshll.u32 %v3033, 16
      %v3486 = vor.u32 %v3483, %v3484
      %v3487 = vrot.slane %v3483, 4
      %v3489 = vshrl.u32 %v3034, 16
      %v3491 = vrot.slane %v3489, 7
      %v3492 = vshll.u32 %v3034, 16
      %v3494 = vor.u32 %v3491, %v3492
      %v3495 = vsel %vm3059, %v3487, %v3494
      %v3496 = vrot.slane %v3491, 4
      %v3498 = vshrl.u32 %v3035, 16
      %v3500 = vrot.slane %v3498, 7
      %v3501 = vshll.u32 %v3035, 16
      %v3503 = vor.u32 %v3500, %v3501
      %v3504 = vsel %vm3059, %v3496, %v3503
      %v3505 = vrot.slane %v3500, 4
      %v3507 = vshrl.u32 %v3036, 16
      %v3509 = vrot.slane %v3507, 7
      %v3510 = vshll.u32 %v3036, 16
      %v3512 = vor.u32 %v3509, %v3510
      %v3513 = vsel %vm3059, %v3505, %v3512
      %v3514 = vrot.slane %v3509, 4
      %v3516 = vshrl.u32 %v3037, 16
      %v3518 = vrot.slane %v3516, 7
      %v3519 = vshll.u32 %v3037, 16
      %v3521 = vor.u32 %v3518, %v3519
      %v3522 = vrot.slane %v3518, 4
      %v3524 = vshrl.u32 %v3038, 16
      %v3526 = vrot.slane %v3524, 7
      %v3527 = vshll.u32 %v3038, 16
      %v3529 = vor.u32 %v3526, %v3527
      %v3530 = vsel %vm3059, %v3522, %v3529
      %v3531 = vrot.slane %v3526, 4
      %v3533 = vshrl.u32 %v3039, 16
      %v3535 = vrot.slane %v3533, 7
      %v3536 = vshll.u32 %v3039, 16
      %v3538 = vor.u32 %v3535, %v3536
      %v3539 = vsel %vm3059, %v3531, %v3538
      %v3540 = vrot.slane %v3535, 4
      %v3542 = vshrl.u32 %v3040, 16
      %v3544 = vrot.slane %v3542, 7
      %v3545 = vshll.u32 %v3040, 16
      %v3547 = vor.u32 %v3544, %v3545
      %v3548 = vsel %vm3059, %v3540, %v3547
      %v3549 = vrot.slane %v3544, 4
      %v3551 = vshrl.u32 %v3041, 16
      %v3553 = vrot.slane %v3551, 7
      %v3554 = vshll.u32 %v3041, 16
      %v3556 = vor.u32 %v3553, %v3554
      %v3557 = vrot.slane %v3553, 4
      %v3559 = vshrl.u32 %v3042, 16
      %v3561 = vrot.slane %v3559, 7
      %v3562 = vshll.u32 %v3042, 16
      %v3564 = vor.u32 %v3561, %v3562
      %v3565 = vsel %vm3059, %v3557, %v3564
      %v3566 = vrot.slane %v3561, 4
      %v3568 = vshrl.u32 %v3043, 16
      %v3570 = vrot.slane %v3568, 7
      %v3571 = vshll.u32 %v3043, 16
      %v3573 = vor.u32 %v3570, %v3571
      %v3574 = vsel %vm3059, %v3566, %v3573
      %v3575 = vrot.slane %v3570, 4
      %v3577 = vshrl.u32 %v3044, 16
      %v3579 = vrot.slane %v3577, 7
      %v3580 = vshll.u32 %v3044, 16
      %v3582 = vor.u32 %v3579, %v3580
      %v3583 = vsel %vm3059, %v3575, %v3582
      %v3584 = vrot.slane %v3579, 4
      %v3586 = vshrl.u32 %v3045, 16
      %v3588 = vrot.slane %v3586, 7
      %v3589 = vshll.u32 %v3045, 16
      %v3591 = vor.u32 %v3588, %v3589
      %v3592 = vrot.slane %v3588, 4
      %v3594 = vshrl.u32 %v3046, 16
      %v3596 = vrot.slane %v3594, 7
      %v3597 = vshll.u32 %v3046, 16
      %v3599 = vor.u32 %v3596, %v3597
      %v3600 = vsel %vm3059, %v3592, %v3599
      %v3601 = vrot.slane %v3596, 4
      %v3603 = vshrl.u32 %v3047, 16
      %v3605 = vrot.slane %v3603, 7
      %v3606 = vshll.u32 %v3047, 16
      %v3608 = vor.u32 %v3605, %v3606
      %v3609 = vsel %vm3059, %v3601, %v3608
      %v3610 = vrot.slane %v3605, 4
      %v3612 = vshrl.u32 %v3048, 16
      %v3614 = vrot.slane %v3612, 7
      %v3615 = vshll.u32 %v3048, 16
      %v3617 = vor.u32 %v3614, %v3615
      %v3618 = vsel %vm3059, %v3610, %v3617
      %v3619 = vrot.slane %v3614, 4
      %v3621 = vshrl.u32 %v3049, 16
      %v3623 = vrot.slane %v3621, 7
      %v3624 = vshll.u32 %v3049, 16
      %v3626 = vor.u32 %v3623, %v3624
      %v3627 = vrot.slane %v3623, 4
      %v3629 = vshrl.u32 %v3050, 16
      %v3631 = vrot.slane %v3629, 7
      %v3632 = vshll.u32 %v3050, 16
      %v3634 = vor.u32 %v3631, %v3632
      %v3635 = vsel %vm3059, %v3627, %v3634
      %v3636 = vrot.slane %v3631, 4
      %v3638 = vshrl.u32 %v3051, 16
      %v3640 = vrot.slane %v3638, 7
      %v3641 = vshll.u32 %v3051, 16
      %v3643 = vor.u32 %v3640, %v3641
      %v3644 = vsel %vm3059, %v3636, %v3643
      %v3645 = vrot.slane %v3640, 4
      %v3647 = vshrl.u32 %v3052, 16
      %v3649 = vrot.slane %v3647, 7
      %v3650 = vshll.u32 %v3052, 16
      %v3652 = vor.u32 %v3649, %v3650
      %v3653 = vsel %vm3059, %v3645, %v3652
      %v3654 = vrot.slane %v3649, 4
      %v3656 = vshrl.u32 %v3053, 16
      %v3658 = vrot.slane %v3656, 7
      %v3659 = vshll.u32 %v3053, 16
      %v3661 = vor.u32 %v3658, %v3659
      %v3662 = vrot.slane %v3658, 4
      %v3664 = vshrl.u32 %v3054, 16
      %v3666 = vrot.slane %v3664, 7
      %v3667 = vshll.u32 %v3054, 16
      %v3669 = vor.u32 %v3666, %v3667
      %v3670 = vsel %vm3059, %v3662, %v3669
      %v3671 = vrot.slane %v3666, 4
      %v3673 = vshrl.u32 %v3055, 16
      %v3675 = vrot.slane %v3673, 7
      %v3676 = vshll.u32 %v3055, 16
      %v3678 = vor.u32 %v3675, %v3676
      %v3679 = vsel %vm3059, %v3671, %v3678
      %v3680 = vrot.slane %v3675, 4
      %v3682 = vshrl.u32 %v3056, 16
      %v3684 = vrot.slane %v3682, 7
      %v3685 = vshll.u32 %v3056, 16
      %v3687 = vor.u32 %v3684, %v3685
      %v3688 = vsel %vm3059, %v3680, %v3687
      %v3689 = vrot.slane %v3684, 4
      %vm3780 = vcmask 60416
      %vm3781 = vsmask.f32 7938
      %vm3782 = vmand %vm3780, %vm3781
      %v3783 = vld [vmem:[#allocation2] sm:$0xf]
      %v3784 = vsel %vm3782, %v3066, %v3783
      %3785 = vst [vmem:[#allocation2] sm:$0xf] %v3784
      %vm3786 = vcmask 60416
      %3787 = vst.msk [vmem:[#allocation2 + $0x4] sm:$0xf] %vm3786, %v3075
      %3788 = vst.msk [vmem:[#allocation2 + $0x8] sm:$0xf] %vm3786, %v3084
      %3789 = vst.msk [vmem:[#allocation2 + $0xc] sm:$0xf] %vm3786, %v3093
      %vm3790 = vcmask 57344
      %vm3791 = vmand %vm3790, %vm3057
      %v3792 = vld [vmem:[#allocation2 + $0x10] sm:$0x1]
      %v3793 = vsel %vm3791, %v3094, %v3792
      %3794 = vst [vmem:[#allocation2 + $0x10] sm:$0x1] %v3793
      %v3795 = vld [vmem:[#allocation2 + $0x14] sm:$0xf]
      %v3796 = vsel %vm3782, %v3101, %v3795
      %3797 = vst [vmem:[#allocation2 + $0x14] sm:$0xf] %v3796
      %3798 = vst.msk [vmem:[#allocation2 + $0x18] sm:$0xf] %vm3786, %v3110
      %3799 = vst.msk [vmem:[#allocation2 + $0x1c] sm:$0xf] %vm3786, %v3119
      %3800 = vst.msk [vmem:[#allocation2 + $0x20] sm:$0xf] %vm3786, %v3128
      %v3801 = vld [vmem:[#allocation2 + $0x24] sm:$0x1]
      %v3802 = vsel %vm3791, %v3129, %v3801
      %3803 = vst [vmem:[#allocation2 + $0x24] sm:$0x1] %v3802
      %v3804 = vld [vmem:[#allocation2 + $0x28] sm:$0xf]
      %v3805 = vsel %vm3782, %v3136, %v3804
      %3806 = vst [vmem:[#allocation2 + $0x28] sm:$0xf] %v3805
      %3807 = vst.msk [vmem:[#allocation2 + $0x2c] sm:$0xf] %vm3786, %v3145
      %3808 = vst.msk [vmem:[#allocation2 + $0x30] sm:$0xf] %vm3786, %v3154
      %3809 = vst.msk [vmem:[#allocation2 + $0x34] sm:$0xf] %vm3786, %v3163
      %v3810 = vld [vmem:[#allocation2 + $0x38] sm:$0x1]
      %v3811 = vsel %vm3791, %v3164, %v3810
      %3812 = vst [vmem:[#allocation2 + $0x38] sm:$0x1] %v3811
      %v3813 = vld [vmem:[#allocation2 + $0x3c] sm:$0xf]
      %v3814 = vsel %vm3782, %v3171, %v3813
      %3815 = vst [vmem:[#allocation2 + $0x3c] sm:$0xf] %v3814
      %3816 = vst.msk [vmem:[#allocation2 + $0x40] sm:$0xf] %vm3786, %v3180
      %3817 = vst.msk [vmem:[#allocation2 + $0x44] sm:$0xf] %vm3786, %v3189
      %3818 = vst.msk [vmem:[#allocation2 + $0x48] sm:$0xf] %vm3786, %v3198
      %v3819 = vld [vmem:[#allocation2 + $0x4c] sm:$0x1]
      %v3820 = vsel %vm3791, %v3199, %v3819
      %3821 = vst [vmem:[#allocation2 + $0x4c] sm:$0x1] %v3820
      %v3822 = vld [vmem:[#allocation2 + $0x50] sm:$0xf]
      %v3823 = vsel %vm3782, %v3206, %v3822
      %3824 = vst [vmem:[#allocation2 + $0x50] sm:$0xf] %v3823
      %3825 = vst.msk [vmem:[#allocation2 + $0x54] sm:$0xf] %vm3786, %v3215
      %3826 = vst.msk [vmem:[#allocation2 + $0x58] sm:$0xf] %vm3786, %v3224
      %3827 = vst.msk [vmem:[#allocation2 + $0x5c] sm:$0xf] %vm3786, %v3233
      %v3828 = vld [vmem:[#allocation2 + $0x60] sm:$0x1]
      %v3829 = vsel %vm3791, %v3234, %v3828
      %3830 = vst [vmem:[#allocation2 + $0x60] sm:$0x1] %v3829
      %v3831 = vld [vmem:[#allocation2 + $0x64] sm:$0xf]
      %v3832 = vsel %vm3782, %v3241, %v3831
      %3833 = vst [vmem:[#allocation2 + $0x64] sm:$0xf] %v3832
      %3834 = vst.msk [vmem:[#allocation2 + $0x68] sm:$0xf] %vm3786, %v3250
      %3835 = vst.msk [vmem:[#allocation2 + $0x6c] sm:$0xf] %vm3786, %v3259
      %3836 = vst.msk [vmem:[#allocation2 + $0x70] sm:$0xf] %vm3786, %v3268
      %v3837 = vld [vmem:[#allocation2 + $0x74] sm:$0x1]
      %v3838 = vsel %vm3791, %v3269, %v3837
      %3839 = vst [vmem:[#allocation2 + $0x74] sm:$0x1] %v3838
      %v3840 = vld [vmem:[#allocation2 + $0x78] sm:$0xf]
      %v3841 = vsel %vm3782, %v3276, %v3840
      %3842 = vst [vmem:[#allocation2 + $0x78] sm:$0xf] %v3841
      %3843 = vst.msk [vmem:[#allocation2 + $0x7c] sm:$0xf] %vm3786, %v3285
      %3844 = vst.msk [vmem:[#allocation2 + $0x80] sm:$0xf] %vm3786, %v3294
      %3845 = vst.msk [vmem:[#allocation2 + $0x84] sm:$0xf] %vm3786, %v3303
      %v3846 = vld [vmem:[#allocation2 + $0x88] sm:$0x1]
      %v3847 = vsel %vm3791, %v3304, %v3846
      %3848 = vst [vmem:[#allocation2 + $0x88] sm:$0x1] %v3847
      %v3849 = vld [vmem:[#allocation2 + $0x8c] sm:$0xf]
      %v3850 = vsel %vm3782, %v3311, %v3849
      %3851 = vst [vmem:[#allocation2 + $0x8c] sm:$0xf] %v3850
      %3852 = vst.msk [vmem:[#allocation2 + $0x90] sm:$0xf] %vm3786, %v3320
      %3853 = vst.msk [vmem:[#allocation2 + $0x94] sm:$0xf] %vm3786, %v3329
      %3854 = vst.msk [vmem:[#allocation2 + $0x98] sm:$0xf] %vm3786, %v3338
      %v3855 = vld [vmem:[#allocation2 + $0x9c] sm:$0x1]
      %v3856 = vsel %vm3791, %v3339, %v3855
      %3857 = vst [vmem:[#allocation2 + $0x9c] sm:$0x1] %v3856
      %v3858 = vld [vmem:[#allocation2 + $0xa0] sm:$0xf]
      %v3859 = vsel %vm3782, %v3346, %v3858
      %3860 = vst [vmem:[#allocation2 + $0xa0] sm:$0xf] %v3859
      %3861 = vst.msk [vmem:[#allocation2 + $0xa4] sm:$0xf] %vm3786, %v3355
      %3862 = vst.msk [vmem:[#allocation2 + $0xa8] sm:$0xf] %vm3786, %v3364
      %3863 = vst.msk [vmem:[#allocation2 + $0xac] sm:$0xf] %vm3786, %v3373
      %v3864 = vld [vmem:[#allocation2 + $0xb0] sm:$0x1]
      %v3865 = vsel %vm3791, %v3374, %v3864
      %3866 = vst [vmem:[#allocation2 + $0xb0] sm:$0x1] %v3865
      %v3867 = vld [vmem:[#allocation2 + $0xb4] sm:$0xf]
      %v3868 = vsel %vm3782, %v3381, %v3867
      %3869 = vst [vmem:[#allocation2 + $0xb4] sm:$0xf] %v3868
      %3870 = vst.msk [vmem:[#allocation2 + $0xb8] sm:$0xf] %vm3786, %v3390
      %3871 = vst.msk [vmem:[#allocation2 + $0xbc] sm:$0xf] %vm3786, %v3399
      %3872 = vst.msk [vmem:[#allocation2 + $0xc0] sm:$0xf] %vm3786, %v3408
      %v3873 = vld [vmem:[#allocation2 + $0xc4] sm:$0x1]
      %v3874 = vsel %vm3791, %v3409, %v3873
      %3875 = vst [vmem:[#allocation2 + $0xc4] sm:$0x1] %v3874
      %v3876 = vld [vmem:[#allocation2 + $0xc8] sm:$0xf]
      %v3877 = vsel %vm3782, %v3416, %v3876
      %3878 = vst [vmem:[#allocation2 + $0xc8] sm:$0xf] %v3877
      %3879 = vst.msk [vmem:[#allocation2 + $0xcc] sm:$0xf] %vm3786, %v3425
      %3880 = vst.msk [vmem:[#allocation2 + $0xd0] sm:$0xf] %vm3786, %v3434
      %3881 = vst.msk [vmem:[#allocation2 + $0xd4] sm:$0xf] %vm3786, %v3443
      %v3882 = vld [vmem:[#allocation2 + $0xd8] sm:$0x1]
      %v3883 = vsel %vm3791, %v3444, %v3882
      %3884 = vst [vmem:[#allocation2 + $0xd8] sm:$0x1] %v3883
      %v3885 = vld [vmem:[#allocation2 + $0xdc] sm:$0xf]
      %v3886 = vsel %vm3782, %v3451, %v3885
      %3887 = vst [vmem:[#allocation2 + $0xdc] sm:$0xf] %v3886
      %3888 = vst.msk [vmem:[#allocation2 + $0xe0] sm:$0xf] %vm3786, %v3460
      %3889 = vst.msk [vmem:[#allocation2 + $0xe4] sm:$0xf] %vm3786, %v3469
      %3890 = vst.msk [vmem:[#allocation2 + $0xe8] sm:$0xf] %vm3786, %v3478
      %v3891 = vld [vmem:[#allocation2 + $0xec] sm:$0x1]
      %v3892 = vsel %vm3791, %v3479, %v3891
      %3893 = vst [vmem:[#allocation2 + $0xec] sm:$0x1] %v3892
      %v3894 = vld [vmem:[#allocation2 + $0xf0] sm:$0xf]
      %v3895 = vsel %vm3782, %v3486, %v3894
      %3896 = vst [vmem:[#allocation2 + $0xf0] sm:$0xf] %v3895
      %3897 = vst.msk [vmem:[#allocation2 + $0xf4] sm:$0xf] %vm3786, %v3495
      %3898 = vst.msk [vmem:[#allocation2 + $0xf8] sm:$0xf] %vm3786, %v3504
      %3899 = vst.msk [vmem:[#allocation2 + $0xfc] sm:$0xf] %vm3786, %v3513
      %v3900 = vld [vmem:[#allocation2 + $0x100] sm:$0x1]
      %v3901 = vsel %vm3791, %v3514, %v3900
      %3902 = vst [vmem:[#allocation2 + $0x100] sm:$0x1] %v3901
      %v3903 = vld [vmem:[#allocation2 + $0x104] sm:$0xf]
      %v3904 = vsel %vm3782, %v3521, %v3903
      %3905 = vst [vmem:[#allocation2 + $0x104] sm:$0xf] %v3904
      %3906 = vst.msk [vmem:[#allocation2 + $0x108] sm:$0xf] %vm3786, %v3530
      %3907 = vst.msk [vmem:[#allocation2 + $0x10c] sm:$0xf] %vm3786, %v3539
      %3908 = vst.msk [vmem:[#allocation2 + $0x110] sm:$0xf] %vm3786, %v3548
      %v3909 = vld [vmem:[#allocation2 + $0x114] sm:$0x1]
      %v3910 = vsel %vm3791, %v3549, %v3909
      %3911 = vst [vmem:[#allocation2 + $0x114] sm:$0x1] %v3910
      %v3912 = vld [vmem:[#allocation2 + $0x118] sm:$0xf]
      %v3913 = vsel %vm3782, %v3556, %v3912
      %3914 = vst [vmem:[#allocation2 + $0x118] sm:$0xf] %v3913
      %3915 = vst.msk [vmem:[#allocation2 + $0x11c] sm:$0xf] %vm3786, %v3565
      %3916 = vst.msk [vmem:[#allocation2 + $0x120] sm:$0xf] %vm3786, %v3574
      %3917 = vst.msk [vmem:[#allocation2 + $0x124] sm:$0xf] %vm3786, %v3583
      %v3918 = vld [vmem:[#allocation2 + $0x128] sm:$0x1]
      %v3919 = vsel %vm3791, %v3584, %v3918
      %3920 = vst [vmem:[#allocation2 + $0x128] sm:$0x1] %v3919
      %v3921 = vld [vmem:[#allocation2 + $0x12c] sm:$0xf]
      %v3922 = vsel %vm3782, %v3591, %v3921
      %3923 = vst [vmem:[#allocation2 + $0x12c] sm:$0xf] %v3922
      %3924 = vst.msk [vmem:[#allocation2 + $0x130] sm:$0xf] %vm3786, %v3600
      %3925 = vst.msk [vmem:[#allocation2 + $0x134] sm:$0xf] %vm3786, %v3609
      %3926 = vst.msk [vmem:[#allocation2 + $0x138] sm:$0xf] %vm3786, %v3618
      %v3927 = vld [vmem:[#allocation2 + $0x13c] sm:$0x1]
      %v3928 = vsel %vm3791, %v3619, %v3927
      %3929 = vst [vmem:[#allocation2 + $0x13c] sm:$0x1] %v3928
      %v3930 = vld [vmem:[#allocation2 + $0x140] sm:$0xf]
      %v3931 = vsel %vm3782, %v3626, %v3930
      %3932 = vst [vmem:[#allocation2 + $0x140] sm:$0xf] %v3931
      %3933 = vst.msk [vmem:[#allocation2 + $0x144] sm:$0xf] %vm3786, %v3635
      %3934 = vst.msk [vmem:[#allocation2 + $0x148] sm:$0xf] %vm3786, %v3644
      %3935 = vst.msk [vmem:[#allocation2 + $0x14c] sm:$0xf] %vm3786, %v3653
      %v3936 = vld [vmem:[#allocation2 + $0x150] sm:$0x1]
      %v3937 = vsel %vm3791, %v3654, %v3936
      %3938 = vst [vmem:[#allocation2 + $0x150] sm:$0x1] %v3937
      %v3939 = vld [vmem:[#allocation2 + $0x154] sm:$0xf]
      %v3940 = vsel %vm3782, %v3661, %v3939
      %3941 = vst [vmem:[#allocation2 + $0x154] sm:$0xf] %v3940
      %3942 = vst.msk [vmem:[#allocation2 + $0x158] sm:$0xf] %vm3786, %v3670
      %3943 = vst.msk [vmem:[#allocation2 + $0x15c] sm:$0xf] %vm3786, %v3679
      %3944 = vst.msk [vmem:[#allocation2 + $0x160] sm:$0xf] %vm3786, %v3688
      %v3945 = vld [vmem:[#allocation2 + $0x164] sm:$0x1]
      %v3946 = vsel %vm3791, %v3689, %v3945
      %3947 = vst [vmem:[#allocation2 + $0x164] sm:$0x1] %v3946
      %v3948 = vld [vmem:[#allocation2] sm:$0x1]
      %v3949 = vsel %vm3791, 0, %v3948
      %3950 = vst [vmem:[#allocation2] sm:$0x1] %v3949
      %v3951 = vld [vmem:[#allocation2 + $0x14] sm:$0x1]
      %v3952 = vsel %vm3791, 0, %v3951
      %3953 = vst [vmem:[#allocation2 + $0x14] sm:$0x1] %v3952
      %v3954 = vld [vmem:[#allocation2 + $0x28] sm:$0x1]
      %v3955 = vsel %vm3791, 0, %v3954
      %3956 = vst [vmem:[#allocation2 + $0x28] sm:$0x1] %v3955
      %v3957 = vld [vmem:[#allocation2 + $0x3c] sm:$0x1]
      %v3958 = vsel %vm3791, 0, %v3957
      %3959 = vst [vmem:[#allocation2 + $0x3c] sm:$0x1] %v3958
      %v3960 = vld [vmem:[#allocation2 + $0x50] sm:$0x1]
      %v3961 = vsel %vm3791, 0, %v3960
      %3962 = vst [vmem:[#allocation2 + $0x50] sm:$0x1] %v3961
      %v3963 = vld [vmem:[#allocation2 + $0x64] sm:$0x1]
      %v3964 = vsel %vm3791, 0, %v3963
      %3965 = vst [vmem:[#allocation2 + $0x64] sm:$0x1] %v3964
      %v3966 = vld [vmem:[#allocation2 + $0x78] sm:$0x1]
      %v3967 = vsel %vm3791, 0, %v3966
      %3968 = vst [vmem:[#allocation2 + $0x78] sm:$0x1] %v3967
      %v3969 = vld [vmem:[#allocation2 + $0x8c] sm:$0x1]
      %v3970 = vsel %vm3791, 0, %v3969
      %3971 = vst [vmem:[#allocation2 + $0x8c] sm:$0x1] %v3970
      %v3972 = vld [vmem:[#allocation2 + $0xa0] sm:$0x1]
      %v3973 = vsel %vm3791, 0, %v3972
      %3974 = vst [vmem:[#allocation2 + $0xa0] sm:$0x1] %v3973
      %v3975 = vld [vmem:[#allocation2 + $0xb4] sm:$0x1]
      %v3976 = vsel %vm3791, 0, %v3975
      %3977 = vst [vmem:[#allocation2 + $0xb4] sm:$0x1] %v3976
      %v3978 = vld [vmem:[#allocation2 + $0xc8] sm:$0x1]
      %v3979 = vsel %vm3791, 0, %v3978
      %3980 = vst [vmem:[#allocation2 + $0xc8] sm:$0x1] %v3979
      %v3981 = vld [vmem:[#allocation2 + $0xdc] sm:$0x1]
      %v3982 = vsel %vm3791, 0, %v3981
      %3983 = vst [vmem:[#allocation2 + $0xdc] sm:$0x1] %v3982
      %v3984 = vld [vmem:[#allocation2 + $0xf0] sm:$0x1]
      %v3985 = vsel %vm3791, 0, %v3984
      %3986 = vst [vmem:[#allocation2 + $0xf0] sm:$0x1] %v3985
      %v3987 = vld [vmem:[#allocation2 + $0x104] sm:$0x1]
      %v3988 = vsel %vm3791, 0, %v3987
      %3989 = vst [vmem:[#allocation2 + $0x104] sm:$0x1] %v3988
      %v3990 = vld [vmem:[#allocation2 + $0x118] sm:$0x1]
      %v3991 = vsel %vm3791, 0, %v3990
      %3992 = vst [vmem:[#allocation2 + $0x118] sm:$0x1] %v3991
      %v3993 = vld [vmem:[#allocation2 + $0x12c] sm:$0x1]
      %v3994 = vsel %vm3791, 0, %v3993
      %3995 = vst [vmem:[#allocation2 + $0x12c] sm:$0x1] %v3994
      %v3996 = vld [vmem:[#allocation2 + $0x140] sm:$0x1]
      %v3997 = vsel %vm3791, 0, %v3996
      %3998 = vst [vmem:[#allocation2 + $0x140] sm:$0x1] %v3997
      %v3999 = vld [vmem:[#allocation2 + $0x154] sm:$0x1]
      %v4000 = vsel %vm3791, 0, %v3999
      %4001 = vst [vmem:[#allocation2 + $0x154] sm:$0x1] %v4000
      %vm4002 = vmand %vm3790, %vm3781
      %v4003 = vld [vmem:[#allocation2 + $0x10] sm:$0x1]
      %v4004 = vsel %vm4002, 0, %v4003
      %4005 = vst [vmem:[#allocation2 + $0x10] sm:$0x1] %v4004
      %v4006 = vld [vmem:[#allocation2 + $0x24] sm:$0x1]
      %v4007 = vsel %vm4002, 0, %v4006
      %4008 = vst [vmem:[#allocation2 + $0x24] sm:$0x1] %v4007
      %v4009 = vld [vmem:[#allocation2 + $0x38] sm:$0x1]
      %v4010 = vsel %vm4002, 0, %v4009
      %4011 = vst [vmem:[#allocation2 + $0x38] sm:$0x1] %v4010
      %v4012 = vld [vmem:[#allocation2 + $0x4c] sm:$0x1]
      %v4013 = vsel %vm4002, 0, %v4012
      %4014 = vst [vmem:[#allocation2 + $0x4c] sm:$0x1] %v4013
      %v4015 = vld [vmem:[#allocation2 + $0x60] sm:$0x1]
      %v4016 = vsel %vm4002, 0, %v4015
      %4017 = vst [vmem:[#allocation2 + $0x60] sm:$0x1] %v4016
      %v4018 = vld [vmem:[#allocation2 + $0x74] sm:$0x1]
      %v4019 = vsel %vm4002, 0, %v4018
      %4020 = vst [vmem:[#allocation2 + $0x74] sm:$0x1] %v4019
      %v4021 = vld [vmem:[#allocation2 + $0x88] sm:$0x1]
      %v4022 = vsel %vm4002, 0, %v4021
      %4023 = vst [vmem:[#allocation2 + $0x88] sm:$0x1] %v4022
      %v4024 = vld [vmem:[#allocation2 + $0x9c] sm:$0x1]
      %v4025 = vsel %vm4002, 0, %v4024
      %4026 = vst [vmem:[#allocation2 + $0x9c] sm:$0x1] %v4025
      %v4027 = vld [vmem:[#allocation2 + $0xb0] sm:$0x1]
      %v4028 = vsel %vm4002, 0, %v4027
      %4029 = vst [vmem:[#allocation2 + $0xb0] sm:$0x1] %v4028
      %v4030 = vld [vmem:[#allocation2 + $0xc4] sm:$0x1]
      %v4031 = vsel %vm4002, 0, %v4030
      %4032 = vst [vmem:[#allocation2 + $0xc4] sm:$0x1] %v4031
      %v4033 = vld [vmem:[#allocation2 + $0xd8] sm:$0x1]
      %v4034 = vsel %vm4002, 0, %v4033
      %4035 = vst [vmem:[#allocation2 + $0xd8] sm:$0x1] %v4034
      %v4036 = vld [vmem:[#allocation2 + $0xec] sm:$0x1]
      %v4037 = vsel %vm4002, 0, %v4036
      %4038 = vst [vmem:[#allocation2 + $0xec] sm:$0x1] %v4037
      %v4039 = vld [vmem:[#allocation2 + $0x100] sm:$0x1]
      %v4040 = vsel %vm4002, 0, %v4039
      %4041 = vst [vmem:[#allocation2 + $0x100] sm:$0x1] %v4040
      %v4042 = vld [vmem:[#allocation2 + $0x114] sm:$0x1]
      %v4043 = vsel %vm4002, 0, %v4042
      %4044 = vst [vmem:[#allocation2 + $0x114] sm:$0x1] %v4043
      %v4045 = vld [vmem:[#allocation2 + $0x128] sm:$0x1]
      %v4046 = vsel %vm4002, 0, %v4045
      %4047 = vst [vmem:[#allocation2 + $0x128] sm:$0x1] %v4046
      %v4048 = vld [vmem:[#allocation2 + $0x13c] sm:$0x1]
      %v4049 = vsel %vm4002, 0, %v4048
      %4050 = vst [vmem:[#allocation2 + $0x13c] sm:$0x1] %v4049
      %v4051 = vld [vmem:[#allocation2 + $0x150] sm:$0x1]
      %v4052 = vsel %vm4002, 0, %v4051
      %4053 = vst [vmem:[#allocation2 + $0x150] sm:$0x1] %v4052
      %v4054 = vld [vmem:[#allocation2 + $0x164] sm:$0x1]
      %v4055 = vsel %vm4002, 0, %v4054
      %4056 = vst [vmem:[#allocation2 + $0x164] sm:$0x1] %v4055
      %p4057 = scmp.eq.s32.totalorder %s21, 0
      // Predicated region
      $region41: #{residual_block_forward.1} parent=39 // pred_check
        %p4058 = pneg %p4057
      $region42: #{residual_block_forward.1} parent=39 // pred_check_branch
        %4060 = sbr.rel (%p4058) target = $region44
      $region43: #{residual_block_forward.1} parent=39 // pred_region
        %4061 = vst.msk [vmem:[#allocation2] sm:$0xf] %vm3786, 0
        %4062 = vst.msk [vmem:[#allocation2 + $0x4] sm:$0xf] %vm3786, 0
        %4063 = vst.msk [vmem:[#allocation2 + $0x8] sm:$0xf] %vm3786, 0
        %4064 = vst.msk [vmem:[#allocation2 + $0xc] sm:$0xf] %vm3786, 0
        %vm4065 = vcmask 57344
        %4066 = vst.msk [vmem:[#allocation2 + $0x10] sm:$0x1] %vm4065, 0
      $region44: #{residual_block_forward.1} parent=39 // pred_fallthru
        _
      %p4067 = scmp.eq.s32.totalorder %s21, 1
      // Predicated region
      $region45: #{residual_block_forward.1} parent=39 // pred_check
        %p4068 = pneg %p4067
      $region46: #{residual_block_forward.1} parent=39 // pred_check_branch
        %4070 = sbr.rel (%p4068) target = $region48
      $region47: #{residual_block_forward.1} parent=39 // pred_region
        %s4071 = scalar_lea.vmem [#allocation2], 340
        %4072 = vst.msk [vmem:[%s4071] sm:$0xf] %vm3786, 0
        %4073 = vst.msk [vmem:[%s4071 + $0x4] sm:$0xf] %vm3786, 0
        %4074 = vst.msk [vmem:[%s4071 + $0x8] sm:$0xf] %vm3786, 0
        %4075 = vst.msk [vmem:[%s4071 + $0xc] sm:$0xf] %vm3786, 0
        %vm4076 = vcmask 57344
        %4077 = vst.msk [vmem:[%s4071 + $0x10] sm:$0x1] %vm4076, 0
      $region48: #{residual_block_forward.1} parent=39 // pred_fallthru
        _
      %v4078 = vld [vmem:[#allocation2] sm:$0xf]
      %v4079 = vld [vmem:[#allocation2 + $0x4] sm:$0xf]
      %v4080 = vld [vmem:[#allocation2 + $0x8] sm:$0xf]
      %v4081 = vld [vmem:[#allocation2 + $0xc] sm:$0xf]
      %v4082 = vld [vmem:[#allocation2 + $0x10] sm:$0x1]
      %v4083 = vld [vmem:[#allocation2 + $0x14] sm:$0xf]
      %v4084 = vld [vmem:[#allocation2 + $0x18] sm:$0xf]
      %v4085 = vld [vmem:[#allocation2 + $0x1c] sm:$0xf]
      %v4086 = vld [vmem:[#allocation2 + $0x20] sm:$0xf]
      %v4087 = vld [vmem:[#allocation2 + $0x24] sm:$0x1]
      %v4088 = vld [vmem:[#allocation2 + $0x28] sm:$0xf]
      %v4089 = vld [vmem:[#allocation2 + $0x2c] sm:$0xf]
      %v4090 = vld [vmem:[#allocation2 + $0x30] sm:$0xf]
      %v4091 = vld [vmem:[#allocation2 + $0x34] sm:$0xf]
      %v4092 = vld [vmem:[#allocation2 + $0x38] sm:$0x1]
      %v4093 = vld [vmem:[#allocation2 + $0x3c] sm:$0xf]
      %v4094 = vld [vmem:[#allocation2 + $0x40] sm:$0xf]
      %v4095 = vld [vmem:[#allocation2 + $0x44] sm:$0xf]
      %v4096 = vld [vmem:[#allocation2 + $0x48] sm:$0xf]
      %v4097 = vld [vmem:[#allocation2 + $0x4c] sm:$0x1]
      %v4098 = vld [vmem:[#allocation2 + $0x50] sm:$0xf]
      %v4099 = vld [vmem:[#allocation2 + $0x54] sm:$0xf]
      %v4100 = vld [vmem:[#allocation2 + $0x58] sm:$0xf]
      %v4101 = vld [vmem:[#allocation2 + $0x5c] sm:$0xf]
      %v4102 = vld [vmem:[#allocation2 + $0x60] sm:$0x1]
      %v4103 = vld [vmem:[#allocation2 + $0x64] sm:$0xf]
      %v4104 = vld [vmem:[#allocation2 + $0x68] sm:$0xf]
      %v4105 = vld [vmem:[#allocation2 + $0x6c] sm:$0xf]
      %v4106 = vld [vmem:[#allocation2 + $0x70] sm:$0xf]
      %v4107 = vld [vmem:[#allocation2 + $0x74] sm:$0x1]
      %v4108 = vld [vmem:[#allocation2 + $0x78] sm:$0xf]
      %v4109 = vld [vmem:[#allocation2 + $0x7c] sm:$0xf]
      %v4110 = vld [vmem:[#allocation2 + $0x80] sm:$0xf]
      %v4111 = vld [vmem:[#allocation2 + $0x84] sm:$0xf]
      %v4112 = vld [vmem:[#allocation2 + $0x88] sm:$0x1]
      %v4113 = vld [vmem:[#allocation2 + $0x8c] sm:$0xf]
      %v4114 = vld [vmem:[#allocation2 + $0x90] sm:$0xf]
      %v4115 = vld [vmem:[#allocation2 + $0x94] sm:$0xf]
      %v4116 = vld [vmem:[#allocation2 + $0x98] sm:$0xf]
      %v4117 = vld [vmem:[#allocation2 + $0x9c] sm:$0x1]
      %v4118 = vld [vmem:[#allocation2 + $0xa0] sm:$0xf]
      %v4119 = vld [vmem:[#allocation2 + $0xa4] sm:$0xf]
      %v4120 = vld [vmem:[#allocation2 + $0xa8] sm:$0xf]
      %v4121 = vld [vmem:[#allocation2 + $0xac] sm:$0xf]
      %v4122 = vld [vmem:[#allocation2 + $0xb0] sm:$0x1]
      %v4123 = vld [vmem:[#allocation2 + $0xb4] sm:$0xf]
      %v4124 = vld [vmem:[#allocation2 + $0xb8] sm:$0xf]
      %v4125 = vld [vmem:[#allocation2 + $0xbc] sm:$0xf]
      %v4126 = vld [vmem:[#allocation2 + $0xc0] sm:$0xf]
      %v4127 = vld [vmem:[#allocation2 + $0xc4] sm:$0x1]
      %v4128 = vld [vmem:[#allocation2 + $0xc8] sm:$0xf]
      %v4129 = vld [vmem:[#allocation2 + $0xcc] sm:$0xf]
      %v4130 = vld [vmem:[#allocation2 + $0xd0] sm:$0xf]
      %v4131 = vld [vmem:[#allocation2 + $0xd4] sm:$0xf]
      %v4132 = vld [vmem:[#allocation2 + $0xd8] sm:$0x1]
      %v4133 = vld [vmem:[#allocation2 + $0xdc] sm:$0xf]
      %v4134 = vld [vmem:[#allocation2 + $0xe0] sm:$0xf]
      %v4135 = vld [vmem:[#allocation2 + $0xe4] sm:$0xf]
      %v4136 = vld [vmem:[#allocation2 + $0xe8] sm:$0xf]
      %v4137 = vld [vmem:[#allocation2 + $0xec] sm:$0x1]
      %v4138 = vld [vmem:[#allocation2 + $0xf0] sm:$0xf]
      %v4139 = vld [vmem:[#allocation2 + $0xf4] sm:$0xf]
      %v4140 = vld [vmem:[#allocation2 + $0xf8] sm:$0xf]
      %v4141 = vld [vmem:[#allocation2 + $0xfc] sm:$0xf]
      %v4142 = vld [vmem:[#allocation2 + $0x100] sm:$0x1]
      %v4143 = vld [vmem:[#allocation2 + $0x104] sm:$0xf]
      %v4144 = vld [vmem:[#allocation2 + $0x108] sm:$0xf]
      %v4145 = vld [vmem:[#allocation2 + $0x10c] sm:$0xf]
      %v4146 = vld [vmem:[#allocation2 + $0x110] sm:$0xf]
      %v4147 = vld [vmem:[#allocation2 + $0x114] sm:$0x1]
      %v4148 = vld [vmem:[#allocation2 + $0x118] sm:$0xf]
      %v4149 = vld [vmem:[#allocation2 + $0x11c] sm:$0xf]
      %v4150 = vld [vmem:[#allocation2 + $0x120] sm:$0xf]
      %v4151 = vld [vmem:[#allocation2 + $0x124] sm:$0xf]
      %v4152 = vld [vmem:[#allocation2 + $0x128] sm:$0x1]
      %v4153 = vld [vmem:[#allocation2 + $0x12c] sm:$0xf]
      %v4154 = vld [vmem:[#allocation2 + $0x130] sm:$0xf]
      %v4155 = vld [vmem:[#allocation2 + $0x134] sm:$0xf]
      %v4156 = vld [vmem:[#allocation2 + $0x138] sm:$0xf]
      %v4157 = vld [vmem:[#allocation2 + $0x13c] sm:$0x1]
      %v4158 = vld [vmem:[#allocation2 + $0x140] sm:$0xf]
      %v4159 = vld [vmem:[#allocation2 + $0x144] sm:$0xf]
      %v4160 = vld [vmem:[#allocation2 + $0x148] sm:$0xf]
      %v4161 = vld [vmem:[#allocation2 + $0x14c] sm:$0xf]
      %v4162 = vld [vmem:[#allocation2 + $0x150] sm:$0x1]
      %v4163 = vld [vmem:[#allocation2 + $0x154] sm:$0xf]
      %v4164 = vld [vmem:[#allocation2 + $0x158] sm:$0xf]
      %v4165 = vld [vmem:[#allocation2 + $0x15c] sm:$0xf]
      %v4166 = vld [vmem:[#allocation2 + $0x160] sm:$0xf]
      %v4167 = vld [vmem:[#allocation2 + $0x164] sm:$0x1]
      %v4232 = vunpack.c.l.b16 %v4078
      %v4233 = vunpack.c.l.b16 %v4079
      %v4234 = vunpack.c.l.b16 %v4080
      %v4235 = vunpack.c.l.b16 %v4081
      %v4236 = vunpack.c.l.b16 %v4083
      %v4237 = vunpack.c.l.b16 %v4084
      %v4238 = vunpack.c.l.b16 %v4085
      %v4239 = vunpack.c.l.b16 %v4086
      %v4240 = vunpack.c.l.b16 %v4088
      %v4241 = vunpack.c.l.b16 %v4089
      %v4242 = vunpack.c.l.b16 %v4090
      %v4243 = vunpack.c.l.b16 %v4091
      %v4244 = vunpack.c.l.b16 %v4093
      %v4245 = vunpack.c.l.b16 %v4094
      %v4246 = vunpack.c.l.b16 %v4095
      %v4247 = vunpack.c.l.b16 %v4096
      %v4248 = vunpack.c.l.b16 %v4098
      %v4249 = vunpack.c.l.b16 %v4099
      %v4250 = vunpack.c.l.b16 %v4100
      %v4251 = vunpack.c.l.b16 %v4101
      %v4252 = vunpack.c.l.b16 %v4103
      %v4253 = vunpack.c.l.b16 %v4104
      %v4254 = vunpack.c.l.b16 %v4105
      %v4255 = vunpack.c.l.b16 %v4106
      %v4256 = vunpack.c.l.b16 %v4108
      %v4257 = vunpack.c.l.b16 %v4109
      %v4258 = vunpack.c.l.b16 %v4110
      %v4259 = vunpack.c.l.b16 %v4111
      %v4260 = vunpack.c.l.b16 %v4113
      %v4261 = vunpack.c.l.b16 %v4114
      %v4262 = vunpack.c.l.b16 %v4115
      %v4263 = vunpack.c.l.b16 %v4116
      %v4264 = vunpack.c.l.b16 %v4118
      %v4265 = vunpack.c.l.b16 %v4119
      %v4266 = vunpack.c.l.b16 %v4120
      %v4267 = vunpack.c.l.b16 %v4121
      %v4268 = vunpack.c.l.b16 %v4123
      %v4269 = vunpack.c.l.b16 %v4124
      %v4270 = vunpack.c.l.b16 %v4125
      %v4271 = vunpack.c.l.b16 %v4126
      %v4272 = vunpack.c.l.b16 %v4128
      %v4273 = vunpack.c.l.b16 %v4129
      %v4274 = vunpack.c.l.b16 %v4130
      %v4275 = vunpack.c.l.b16 %v4131
      %v4276 = vunpack.c.l.b16 %v4133
      %v4277 = vunpack.c.l.b16 %v4134
      %v4278 = vunpack.c.l.b16 %v4135
      %v4279 = vunpack.c.l.b16 %v4136
      %v4280 = vunpack.c.l.b16 %v4138
      %v4281 = vunpack.c.l.b16 %v4139
      %v4282 = vunpack.c.l.b16 %v4140
      %v4283 = vunpack.c.l.b16 %v4141
      %v4284 = vunpack.c.l.b16 %v4143
      %v4285 = vunpack.c.l.b16 %v4144
      %v4286 = vunpack.c.l.b16 %v4145
      %v4287 = vunpack.c.l.b16 %v4146
      %v4288 = vunpack.c.l.b16 %v4148
      %v4289 = vunpack.c.l.b16 %v4149
      %v4290 = vunpack.c.l.b16 %v4150
      %v4291 = vunpack.c.l.b16 %v4151
      %v4292 = vunpack.c.l.b16 %v4153
      %v4293 = vunpack.c.l.b16 %v4154
      %v4294 = vunpack.c.l.b16 %v4155
      %v4295 = vunpack.c.l.b16 %v4156
      %v4296 = vpack.c.b16 %v4233, %v4232
      %v4297 = vpack.c.b16 %v4235, %v4234
      %v4298 = vpack.c.b16 %v4237, %v4236
      %v4299 = vpack.c.b16 %v4239, %v4238
      %v4300 = vpack.c.b16 %v4241, %v4240
      %v4301 = vpack.c.b16 %v4243, %v4242
      %v4302 = vpack.c.b16 %v4245, %v4244
      %v4303 = vpack.c.b16 %v4247, %v4246
      %v4304 = vpack.c.b16 %v4249, %v4248
      %v4305 = vpack.c.b16 %v4251, %v4250
      %v4306 = vpack.c.b16 %v4253, %v4252
      %v4307 = vpack.c.b16 %v4255, %v4254
      %v4308 = vpack.c.b16 %v4257, %v4256
      %v4309 = vpack.c.b16 %v4259, %v4258
      %v4310 = vpack.c.b16 %v4261, %v4260
      %v4311 = vpack.c.b16 %v4263, %v4262
      %v4312 = vpack.c.b16 %v4265, %v4264
      %v4313 = vpack.c.b16 %v4267, %v4266
      %v4314 = vpack.c.b16 %v4269, %v4268
      %v4315 = vpack.c.b16 %v4271, %v4270
      %v4316 = vpack.c.b16 %v4273, %v4272
      %v4317 = vpack.c.b16 %v4275, %v4274
      %v4318 = vpack.c.b16 %v4277, %v4276
      %v4319 = vpack.c.b16 %v4279, %v4278
      %v4320 = vpack.c.b16 %v4281, %v4280
      %v4321 = vpack.c.b16 %v4283, %v4282
      %v4322 = vpack.c.b16 %v4285, %v4284
      %v4323 = vpack.c.b16 %v4287, %v4286
      %v4324 = vpack.c.b16 %v4289, %v4288
      %v4325 = vpack.c.b16 %v4291, %v4290
      %v4326 = vpack.c.b16 %v4293, %v4292
      %v4327 = vpack.c.b16 %v4295, %v4294
      %v4344 = vunpack.c.l.b16 %v4082
      %v4345 = vunpack.c.l.b16 %v4087
      %v4346 = vunpack.c.l.b16 %v4092
      %v4347 = vunpack.c.l.b16 %v4097
      %v4348 = vunpack.c.l.b16 %v4102
      %v4349 = vunpack.c.l.b16 %v4107
      %v4350 = vunpack.c.l.b16 %v4112
      %v4351 = vunpack.c.l.b16 %v4117
      %v4352 = vunpack.c.l.b16 %v4122
      %v4353 = vunpack.c.l.b16 %v4127
      %v4354 = vunpack.c.l.b16 %v4132
      %v4355 = vunpack.c.l.b16 %v4137
      %v4356 = vunpack.c.l.b16 %v4142
      %v4357 = vunpack.c.l.b16 %v4147
      %v4358 = vunpack.c.l.b16 %v4152
      %v4359 = vunpack.c.l.b16 %v4157
      %v4360 = vpack.c.b16 %v4344, %v4344
      %v4361 = vpack.c.b16 %v4345, %v4345
      %v4362 = vpack.c.b16 %v4346, %v4346
      %v4363 = vpack.c.b16 %v4347, %v4347
      %v4364 = vpack.c.b16 %v4348, %v4348
      %v4365 = vpack.c.b16 %v4349, %v4349
      %v4366 = vpack.c.b16 %v4350, %v4350
      %v4367 = vpack.c.b16 %v4351, %v4351
      %v4368 = vpack.c.b16 %v4352, %v4352
      %v4369 = vpack.c.b16 %v4353, %v4353
      %v4370 = vpack.c.b16 %v4354, %v4354
      %v4371 = vpack.c.b16 %v4355, %v4355
      %v4372 = vpack.c.b16 %v4356, %v4356
      %v4373 = vpack.c.b16 %v4357, %v4357
      %v4374 = vpack.c.b16 %v4358, %v4358
      %v4375 = vpack.c.b16 %v4359, %v4359
      %v4377 = vshrl.u32 %v4296, 16
      %v4379 = vshll.u32 %v4296, 16
      %v4381 = vrot.slane %v4379, 1
      %v4382 = vor.u32 %v4377, %v4381
      %v4384 = vshll.u32 %v4297, 16
      %v4386 = vrot.slane %v4384, 1
      %v4387 = vsel %vm584, %v4382, %v4386
      %v4388 = vshrl.u32 %v4297, 16
      %v4390 = vor.u32 %v4388, %v4386
      %v4392 = vshll.u32 %v4360, 16
      %v4394 = vrot.slane %v4392, 1
      %v4395 = vsel %vm584, %v4390, %v4394
      %v4397 = vshrl.u32 %v4298, 16
      %v4399 = vshll.u32 %v4298, 16
      %v4401 = vrot.slane %v4399, 1
      %v4402 = vor.u32 %v4397, %v4401
      %v4404 = vshll.u32 %v4299, 16
      %v4406 = vrot.slane %v4404, 1
      %v4407 = vsel %vm584, %v4402, %v4406
      %v4408 = vshrl.u32 %v4299, 16
      %v4410 = vor.u32 %v4408, %v4406
      %v4412 = vshll.u32 %v4361, 16
      %v4414 = vrot.slane %v4412, 1
      %v4415 = vsel %vm584, %v4410, %v4414
      %v4417 = vshrl.u32 %v4300, 16
      %v4419 = vshll.u32 %v4300, 16
      %v4421 = vrot.slane %v4419, 1
      %v4422 = vor.u32 %v4417, %v4421
      %v4424 = vshll.u32 %v4301, 16
      %v4426 = vrot.slane %v4424, 1
      %v4427 = vsel %vm584, %v4422, %v4426
      %v4428 = vshrl.u32 %v4301, 16
      %v4430 = vor.u32 %v4428, %v4426
      %v4432 = vshll.u32 %v4362, 16
      %v4434 = vrot.slane %v4432, 1
      %v4435 = vsel %vm584, %v4430, %v4434
      %v4437 = vshrl.u32 %v4302, 16
      %v4439 = vshll.u32 %v4302, 16
      %v4441 = vrot.slane %v4439, 1
      %v4442 = vor.u32 %v4437, %v4441
      %v4444 = vshll.u32 %v4303, 16
      %v4446 = vrot.slane %v4444, 1
      %v4447 = vsel %vm584, %v4442, %v4446
      %v4448 = vshrl.u32 %v4303, 16
      %v4450 = vor.u32 %v4448, %v4446
      %v4452 = vshll.u32 %v4363, 16
      %v4454 = vrot.slane %v4452, 1
      %v4455 = vsel %vm584, %v4450, %v4454
      %v4457 = vshrl.u32 %v4304, 16
      %v4459 = vshll.u32 %v4304, 16
      %v4461 = vrot.slane %v4459, 1
      %v4462 = vor.u32 %v4457, %v4461
      %v4464 = vshll.u32 %v4305, 16
      %v4466 = vrot.slane %v4464, 1
      %v4467 = vsel %vm584, %v4462, %v4466
      %v4468 = vshrl.u32 %v4305, 16
      %v4470 = vor.u32 %v4468, %v4466
      %v4472 = vshll.u32 %v4364, 16
      %v4474 = vrot.slane %v4472, 1
      %v4475 = vsel %vm584, %v4470, %v4474
      %v4477 = vshrl.u32 %v4306, 16
      %v4479 = vshll.u32 %v4306, 16
      %v4481 = vrot.slane %v4479, 1
      %v4482 = vor.u32 %v4477, %v4481
      %v4484 = vshll.u32 %v4307, 16
      %v4486 = vrot.slane %v4484, 1
      %v4487 = vsel %vm584, %v4482, %v4486
      %v4488 = vshrl.u32 %v4307, 16
      %v4490 = vor.u32 %v4488, %v4486
      %v4492 = vshll.u32 %v4365, 16
      %v4494 = vrot.slane %v4492, 1
      %v4495 = vsel %vm584, %v4490, %v4494
      %v4497 = vshrl.u32 %v4308, 16
      %v4499 = vshll.u32 %v4308, 16
      %v4501 = vrot.slane %v4499, 1
      %v4502 = vor.u32 %v4497, %v4501
      %v4504 = vshll.u32 %v4309, 16
      %v4506 = vrot.slane %v4504, 1
      %v4507 = vsel %vm584, %v4502, %v4506
      %v4508 = vshrl.u32 %v4309, 16
      %v4510 = vor.u32 %v4508, %v4506
      %v4512 = vshll.u32 %v4366, 16
      %v4514 = vrot.slane %v4512, 1
      %v4515 = vsel %vm584, %v4510, %v4514
      %v4517 = vshrl.u32 %v4310, 16
      %v4519 = vshll.u32 %v4310, 16
      %v4521 = vrot.slane %v4519, 1
      %v4522 = vor.u32 %v4517, %v4521
      %v4524 = vshll.u32 %v4311, 16
      %v4526 = vrot.slane %v4524, 1
      %v4527 = vsel %vm584, %v4522, %v4526
      %v4528 = vshrl.u32 %v4311, 16
      %v4530 = vor.u32 %v4528, %v4526
      %v4532 = vshll.u32 %v4367, 16
      %v4534 = vrot.slane %v4532, 1
      %v4535 = vsel %vm584, %v4530, %v4534
      %v4537 = vshrl.u32 %v4312, 16
      %v4539 = vshll.u32 %v4312, 16
      %v4541 = vrot.slane %v4539, 1
      %v4542 = vor.u32 %v4537, %v4541
      %v4544 = vshll.u32 %v4313, 16
      %v4546 = vrot.slane %v4544, 1
      %v4547 = vsel %vm584, %v4542, %v4546
      %v4548 = vshrl.u32 %v4313, 16
      %v4550 = vor.u32 %v4548, %v4546
      %v4552 = vshll.u32 %v4368, 16
      %v4554 = vrot.slane %v4552, 1
      %v4555 = vsel %vm584, %v4550, %v4554
      %v4557 = vshrl.u32 %v4314, 16
      %v4559 = vshll.u32 %v4314, 16
      %v4561 = vrot.slane %v4559, 1
      %v4562 = vor.u32 %v4557, %v4561
      %v4564 = vshll.u32 %v4315, 16
      %v4566 = vrot.slane %v4564, 1
      %v4567 = vsel %vm584, %v4562, %v4566
      %v4568 = vshrl.u32 %v4315, 16
      %v4570 = vor.u32 %v4568, %v4566
      %v4572 = vshll.u32 %v4369, 16
      %v4574 = vrot.slane %v4572, 1
      %v4575 = vsel %vm584, %v4570, %v4574
      %v4577 = vshrl.u32 %v4316, 16
      %v4579 = vshll.u32 %v4316, 16
      %v4581 = vrot.slane %v4579, 1
      %v4582 = vor.u32 %v4577, %v4581
      %v4584 = vshll.u32 %v4317, 16
      %v4586 = vrot.slane %v4584, 1
      %v4587 = vsel %vm584, %v4582, %v4586
      %v4588 = vshrl.u32 %v4317, 16
      %v4590 = vor.u32 %v4588, %v4586
      %v4592 = vshll.u32 %v4370, 16
      %v4594 = vrot.slane %v4592, 1
      %v4595 = vsel %vm584, %v4590, %v4594
      %v4597 = vshrl.u32 %v4318, 16
      %v4599 = vshll.u32 %v4318, 16
      %v4601 = vrot.slane %v4599, 1
      %v4602 = vor.u32 %v4597, %v4601
      %v4604 = vshll.u32 %v4319, 16
      %v4606 = vrot.slane %v4604, 1
      %v4607 = vsel %vm584, %v4602, %v4606
      %v4608 = vshrl.u32 %v4319, 16
      %v4610 = vor.u32 %v4608, %v4606
      %v4612 = vshll.u32 %v4371, 16
      %v4614 = vrot.slane %v4612, 1
      %v4615 = vsel %vm584, %v4610, %v4614
      %v4617 = vshrl.u32 %v4320, 16
      %v4619 = vshll.u32 %v4320, 16
      %v4621 = vrot.slane %v4619, 1
      %v4622 = vor.u32 %v4617, %v4621
      %v4624 = vshll.u32 %v4321, 16
      %v4626 = vrot.slane %v4624, 1
      %v4627 = vsel %vm584, %v4622, %v4626
      %v4628 = vshrl.u32 %v4321, 16
      %v4630 = vor.u32 %v4628, %v4626
      %v4632 = vshll.u32 %v4372, 16
      %v4634 = vrot.slane %v4632, 1
      %v4635 = vsel %vm584, %v4630, %v4634
      %v4637 = vshrl.u32 %v4322, 16
      %v4639 = vshll.u32 %v4322, 16
      %v4641 = vrot.slane %v4639, 1
      %v4642 = vor.u32 %v4637, %v4641
      %v4644 = vshll.u32 %v4323, 16
      %v4646 = vrot.slane %v4644, 1
      %v4647 = vsel %vm584, %v4642, %v4646
      %v4648 = vshrl.u32 %v4323, 16
      %v4650 = vor.u32 %v4648, %v4646
      %v4652 = vshll.u32 %v4373, 16
      %v4654 = vrot.slane %v4652, 1
      %v4655 = vsel %vm584, %v4650, %v4654
      %v4657 = vshrl.u32 %v4324, 16
      %v4659 = vshll.u32 %v4324, 16
      %v4661 = vrot.slane %v4659, 1
      %v4662 = vor.u32 %v4657, %v4661
      %v4664 = vshll.u32 %v4325, 16
      %v4666 = vrot.slane %v4664, 1
      %v4667 = vsel %vm584, %v4662, %v4666
      %v4668 = vshrl.u32 %v4325, 16
      %v4670 = vor.u32 %v4668, %v4666
      %v4672 = vshll.u32 %v4374, 16
      %v4674 = vrot.slane %v4672, 1
      %v4675 = vsel %vm584, %v4670, %v4674
      %v4677 = vshrl.u32 %v4326, 16
      %v4679 = vshll.u32 %v4326, 16
      %v4681 = vrot.slane %v4679, 1
      %v4682 = vor.u32 %v4677, %v4681
      %v4684 = vshll.u32 %v4327, 16
      %v4686 = vrot.slane %v4684, 1
      %v4687 = vsel %vm584, %v4682, %v4686
      %v4688 = vshrl.u32 %v4327, 16
      %v4690 = vor.u32 %v4688, %v4686
      %v4692 = vshll.u32 %v4375, 16
      %v4694 = vrot.slane %v4692, 1
      %v4695 = vsel %vm584, %v4690, %v4694
      %4696 = vrot.lane.b32.xlu0 %v4387, 8
      %v4697 = vpop.permute.xlu0 %4696
      %4698 = vrot.lane.b32.xlu0 %v4395, 8
      %v4699 = vpop.permute.xlu0 %4698
      %4700 = vrot.lane.b32.xlu0 %v4407, 8
      %v4701 = vpop.permute.xlu0 %4700
      %4702 = vrot.lane.b32.xlu0 %v4415, 8
      %v4703 = vpop.permute.xlu0 %4702
      %4704 = vrot.lane.b32.xlu0 %v4427, 8
      %v4705 = vpop.permute.xlu0 %4704
      %4706 = vrot.lane.b32.xlu0 %v4435, 8
      %v4707 = vpop.permute.xlu0 %4706
      %4708 = vrot.lane.b32.xlu0 %v4447, 8
      %v4709 = vpop.permute.xlu0 %4708
      %4710 = vrot.lane.b32.xlu0 %v4455, 8
      %v4711 = vpop.permute.xlu0 %4710
      %4712 = vrot.lane.b32.xlu0 %v4467, 8
      %v4713 = vpop.permute.xlu0 %4712
      %4714 = vrot.lane.b32.xlu0 %v4475, 8
      %v4715 = vpop.permute.xlu0 %4714
      %4716 = vrot.lane.b32.xlu0 %v4487, 8
      %v4717 = vpop.permute.xlu0 %4716
      %4718 = vrot.lane.b32.xlu0 %v4495, 8
      %v4719 = vpop.permute.xlu0 %4718
      %4720 = vrot.lane.b32.xlu0 %v4507, 8
      %v4721 = vpop.permute.xlu0 %4720
      %4722 = vrot.lane.b32.xlu0 %v4515, 8
      %v4723 = vpop.permute.xlu0 %4722
      %4724 = vrot.lane.b32.xlu0 %v4527, 8
      %v4725 = vpop.permute.xlu0 %4724
      %4726 = vrot.lane.b32.xlu0 %v4535, 8
      %v4727 = vpop.permute.xlu0 %4726
      %4728 = vrot.lane.b32.xlu0 %v4547, 8
      %v4729 = vpop.permute.xlu0 %4728
      %4730 = vrot.lane.b32.xlu0 %v4555, 8
      %v4731 = vpop.permute.xlu0 %4730
      %4732 = vrot.lane.b32.xlu0 %v4567, 8
      %v4733 = vpop.permute.xlu0 %4732
      %4734 = vrot.lane.b32.xlu0 %v4575, 8
      %v4735 = vpop.permute.xlu0 %4734
      %4736 = vrot.lane.b32.xlu0 %v4587, 8
      %v4737 = vpop.permute.xlu0 %4736
      %4738 = vrot.lane.b32.xlu0 %v4595, 8
      %v4739 = vpop.permute.xlu0 %4738
      %4740 = vrot.lane.b32.xlu0 %v4607, 8
      %v4741 = vpop.permute.xlu0 %4740
      %4742 = vrot.lane.b32.xlu0 %v4615, 8
      %v4743 = vpop.permute.xlu0 %4742
      %4744 = vrot.lane.b32.xlu0 %v4627, 8
      %v4745 = vpop.permute.xlu0 %4744
      %4746 = vrot.lane.b32.xlu0 %v4635, 8
      %v4747 = vpop.permute.xlu0 %4746
      %4748 = vrot.lane.b32.xlu0 %v4647, 8
      %v4749 = vpop.permute.xlu0 %4748
      %4750 = vrot.lane.b32.xlu0 %v4655, 8
      %v4751 = vpop.permute.xlu0 %4750
      %4752 = vrot.lane.b32.xlu0 %v4667, 8
      %v4753 = vpop.permute.xlu0 %4752
      %4754 = vrot.lane.b32.xlu0 %v4675, 8
      %v4755 = vpop.permute.xlu0 %4754
      %4756 = vrot.lane.b32.xlu0 %v4687, 8
      %v4757 = vpop.permute.xlu0 %4756
      %4758 = vrot.lane.b32.xlu0 %v4695, 8
      %v4759 = vpop.permute.xlu0 %4758
      %v4760 = vrot.slane %v4296, 1
      %v4761 = vrot.slane %v4297, 1
      %v4762 = vsel %vm1017, %v4760, %v4761
      %v4763 = vrot.slane %v4360, 1
      %v4764 = vsel %vm1017, %v4761, %v4763
      %v4765 = vrot.slane %v4298, 1
      %v4766 = vrot.slane %v4299, 1
      %v4767 = vsel %vm1017, %v4765, %v4766
      %v4768 = vrot.slane %v4361, 1
      %v4769 = vsel %vm1017, %v4766, %v4768
      %v4770 = vrot.slane %v4300, 1
      %v4771 = vrot.slane %v4301, 1
      %v4772 = vsel %vm1017, %v4770, %v4771
      %v4773 = vrot.slane %v4362, 1
      %v4774 = vsel %vm1017, %v4771, %v4773
      %v4775 = vrot.slane %v4302, 1
      %v4776 = vrot.slane %v4303, 1
      %v4777 = vsel %vm1017, %v4775, %v4776
      %v4778 = vrot.slane %v4363, 1
      %v4779 = vsel %vm1017, %v4776, %v4778
      %v4780 = vrot.slane %v4304, 1
      %v4781 = vrot.slane %v4305, 1
      %v4782 = vsel %vm1017, %v4780, %v4781
      %v4783 = vrot.slane %v4364, 1
      %v4784 = vsel %vm1017, %v4781, %v4783
      %v4785 = vrot.slane %v4306, 1
      %v4786 = vrot.slane %v4307, 1
      %v4787 = vsel %vm1017, %v4785, %v4786
      %v4788 = vrot.slane %v4365, 1
      %v4789 = vsel %vm1017, %v4786, %v4788
      %v4790 = vrot.slane %v4308, 1
      %v4791 = vrot.slane %v4309, 1
      %v4792 = vsel %vm1017, %v4790, %v4791
      %v4793 = vrot.slane %v4366, 1
      %v4794 = vsel %vm1017, %v4791, %v4793
      %v4795 = vrot.slane %v4310, 1
      %v4796 = vrot.slane %v4311, 1
      %v4797 = vsel %vm1017, %v4795, %v4796
      %v4798 = vrot.slane %v4367, 1
      %v4799 = vsel %vm1017, %v4796, %v4798
      %v4800 = vrot.slane %v4312, 1
      %v4801 = vrot.slane %v4313, 1
      %v4802 = vsel %vm1017, %v4800, %v4801
      %v4803 = vrot.slane %v4368, 1
      %v4804 = vsel %vm1017, %v4801, %v4803
      %v4805 = vrot.slane %v4314, 1
      %v4806 = vrot.slane %v4315, 1
      %v4807 = vsel %vm1017, %v4805, %v4806
      %v4808 = vrot.slane %v4369, 1
      %v4809 = vsel %vm1017, %v4806, %v4808
      %v4810 = vrot.slane %v4316, 1
      %v4811 = vrot.slane %v4317, 1
      %v4812 = vsel %vm1017, %v4810, %v4811
      %v4813 = vrot.slane %v4370, 1
      %v4814 = vsel %vm1017, %v4811, %v4813
      %v4815 = vrot.slane %v4318, 1
      %v4816 = vrot.slane %v4319, 1
      %v4817 = vsel %vm1017, %v4815, %v4816
      %v4818 = vrot.slane %v4371, 1
      %v4819 = vsel %vm1017, %v4816, %v4818
      %v4820 = vrot.slane %v4320, 1
      %v4821 = vrot.slane %v4321, 1
      %v4822 = vsel %vm1017, %v4820, %v4821
      %v4823 = vrot.slane %v4372, 1
      %v4824 = vsel %vm1017, %v4821, %v4823
      %v4825 = vrot.slane %v4322, 1
      %v4826 = vrot.slane %v4323, 1
      %v4827 = vsel %vm1017, %v4825, %v4826
      %v4828 = vrot.slane %v4373, 1
      %v4829 = vsel %vm1017, %v4826, %v4828
      %v4830 = vrot.slane %v4324, 1
      %v4831 = vrot.slane %v4325, 1
      %v4832 = vsel %vm1017, %v4830, %v4831
      %v4833 = vrot.slane %v4374, 1
      %v4834 = vsel %vm1017, %v4831, %v4833
      %v4835 = vrot.slane %v4326, 1
      %v4836 = vrot.slane %v4327, 1
      %v4837 = vsel %vm1017, %v4835, %v4836
      %v4838 = vrot.slane %v4375, 1
      %v4839 = vsel %vm1017, %v4836, %v4838
      %4840 = vrot.lane.b32.xlu0 %v4762, 16
      %v4841 = vpop.permute.xlu0 %4840
      %4842 = vrot.lane.b32.xlu0 %v4764, 16
      %v4843 = vpop.permute.xlu0 %4842
      %4844 = vrot.lane.b32.xlu0 %v4767, 16
      %v4845 = vpop.permute.xlu0 %4844
      %4846 = vrot.lane.b32.xlu0 %v4769, 16
      %v4847 = vpop.permute.xlu0 %4846
      %4848 = vrot.lane.b32.xlu0 %v4772, 16
      %v4849 = vpop.permute.xlu0 %4848
      %4850 = vrot.lane.b32.xlu0 %v4774, 16
      %v4851 = vpop.permute.xlu0 %4850
      %4852 = vrot.lane.b32.xlu0 %v4777, 16
      %v4853 = vpop.permute.xlu0 %4852
      %4854 = vrot.lane.b32.xlu0 %v4779, 16
      %v4855 = vpop.permute.xlu0 %4854
      %4856 = vrot.lane.b32.xlu0 %v4782, 16
      %v4857 = vpop.permute.xlu0 %4856
      %4858 = vrot.lane.b32.xlu0 %v4784, 16
      %v4859 = vpop.permute.xlu0 %4858
      %4860 = vrot.lane.b32.xlu0 %v4787, 16
      %v4861 = vpop.permute.xlu0 %4860
      %4862 = vrot.lane.b32.xlu0 %v4789, 16
      %v4863 = vpop.permute.xlu0 %4862
      %4864 = vrot.lane.b32.xlu0 %v4792, 16
      %v4865 = vpop.permute.xlu0 %4864
      %4866 = vrot.lane.b32.xlu0 %v4794, 16
      %v4867 = vpop.permute.xlu0 %4866
      %4868 = vrot.lane.b32.xlu0 %v4797, 16
      %v4869 = vpop.permute.xlu0 %4868
      %4870 = vrot.lane.b32.xlu0 %v4799, 16
      %v4871 = vpop.permute.xlu0 %4870
      %4872 = vrot.lane.b32.xlu0 %v4802, 16
      %v4873 = vpop.permute.xlu0 %4872
      %4874 = vrot.lane.b32.xlu0 %v4804, 16
      %v4875 = vpop.permute.xlu0 %4874
      %4876 = vrot.lane.b32.xlu0 %v4807, 16
      %v4877 = vpop.permute.xlu0 %4876
      %4878 = vrot.lane.b32.xlu0 %v4809, 16
      %v4879 = vpop.permute.xlu0 %4878
      %4880 = vrot.lane.b32.xlu0 %v4812, 16
      %v4881 = vpop.permute.xlu0 %4880
      %4882 = vrot.lane.b32.xlu0 %v4814, 16
      %v4883 = vpop.permute.xlu0 %4882
      %4884 = vrot.lane.b32.xlu0 %v4817, 16
      %v4885 = vpop.permute.xlu0 %4884
      %4886 = vrot.lane.b32.xlu0 %v4819, 16
      %v4887 = vpop.permute.xlu0 %4886
      %4888 = vrot.lane.b32.xlu0 %v4822, 16
      %v4889 = vpop.permute.xlu0 %4888
      %4890 = vrot.lane.b32.xlu0 %v4824, 16
      %v4891 = vpop.permute.xlu0 %4890
      %4892 = vrot.lane.b32.xlu0 %v4827, 16
      %v4893 = vpop.permute.xlu0 %4892
      %4894 = vrot.lane.b32.xlu0 %v4829, 16
      %v4895 = vpop.permute.xlu0 %4894
      %4896 = vrot.lane.b32.xlu0 %v4832, 16
      %v4897 = vpop.permute.xlu0 %4896
      %4898 = vrot.lane.b32.xlu0 %v4834, 16
      %v4899 = vpop.permute.xlu0 %4898
      %4900 = vrot.lane.b32.xlu0 %v4837, 16
      %v4901 = vpop.permute.xlu0 %4900
      %4902 = vrot.lane.b32.xlu0 %v4839, 16
      %v4903 = vpop.permute.xlu0 %4902
      %v4908 = vunpack.c.l.b16 %v4158
      %v4909 = vunpack.c.l.b16 %v4159
      %v4910 = vunpack.c.l.b16 %v4160
      %v4911 = vunpack.c.l.b16 %v4161
      %v4912 = vpack.c.b16 %v4909, %v4908
      %v4913 = vpack.c.b16 %v4911, %v4910
      %4914 = vrot.lane.b32.xlu0 %v4298, 24
      %v4915 = vpop.permute.xlu0 %4914
      %4916 = vrot.lane.b32.xlu0 %v4299, 24
      %v4917 = vpop.permute.xlu0 %4916
      %4918 = vrot.lane.b32.xlu0 %v4300, 24
      %v4919 = vpop.permute.xlu0 %4918
      %4920 = vrot.lane.b32.xlu0 %v4301, 24
      %v4921 = vpop.permute.xlu0 %4920
      %4922 = vrot.lane.b32.xlu0 %v4302, 24
      %v4923 = vpop.permute.xlu0 %4922
      %4924 = vrot.lane.b32.xlu0 %v4303, 24
      %v4925 = vpop.permute.xlu0 %4924
      %4926 = vrot.lane.b32.xlu0 %v4304, 24
      %v4927 = vpop.permute.xlu0 %4926
      %4928 = vrot.lane.b32.xlu0 %v4305, 24
      %v4929 = vpop.permute.xlu0 %4928
      %4930 = vrot.lane.b32.xlu0 %v4306, 24
      %v4931 = vpop.permute.xlu0 %4930
      %4932 = vrot.lane.b32.xlu0 %v4307, 24
      %v4933 = vpop.permute.xlu0 %4932
      %4934 = vrot.lane.b32.xlu0 %v4308, 24
      %v4935 = vpop.permute.xlu0 %4934
      %4936 = vrot.lane.b32.xlu0 %v4309, 24
      %v4937 = vpop.permute.xlu0 %4936
      %4938 = vrot.lane.b32.xlu0 %v4310, 24
      %v4939 = vpop.permute.xlu0 %4938
      %4940 = vrot.lane.b32.xlu0 %v4311, 24
      %v4941 = vpop.permute.xlu0 %4940
      %4942 = vrot.lane.b32.xlu0 %v4312, 24
      %v4943 = vpop.permute.xlu0 %4942
      %4944 = vrot.lane.b32.xlu0 %v4313, 24
      %v4945 = vpop.permute.xlu0 %4944
      %4946 = vrot.lane.b32.xlu0 %v4314, 24
      %v4947 = vpop.permute.xlu0 %4946
      %4948 = vrot.lane.b32.xlu0 %v4315, 24
      %v4949 = vpop.permute.xlu0 %4948
      %4950 = vrot.lane.b32.xlu0 %v4316, 24
      %v4951 = vpop.permute.xlu0 %4950
      %4952 = vrot.lane.b32.xlu0 %v4317, 24
      %v4953 = vpop.permute.xlu0 %4952
      %4954 = vrot.lane.b32.xlu0 %v4318, 24
      %v4955 = vpop.permute.xlu0 %4954
      %4956 = vrot.lane.b32.xlu0 %v4319, 24
      %v4957 = vpop.permute.xlu0 %4956
      %4958 = vrot.lane.b32.xlu0 %v4320, 24
      %v4959 = vpop.permute.xlu0 %4958
      %4960 = vrot.lane.b32.xlu0 %v4321, 24
      %v4961 = vpop.permute.xlu0 %4960
      %4962 = vrot.lane.b32.xlu0 %v4322, 24
      %v4963 = vpop.permute.xlu0 %4962
      %4964 = vrot.lane.b32.xlu0 %v4323, 24
      %v4965 = vpop.permute.xlu0 %4964
      %4966 = vrot.lane.b32.xlu0 %v4324, 24
      %v4967 = vpop.permute.xlu0 %4966
      %4968 = vrot.lane.b32.xlu0 %v4325, 24
      %v4969 = vpop.permute.xlu0 %4968
      %4970 = vrot.lane.b32.xlu0 %v4326, 24
      %v4971 = vpop.permute.xlu0 %4970
      %4972 = vrot.lane.b32.xlu0 %v4327, 24
      %v4973 = vpop.permute.xlu0 %4972
      %4974 = vrot.lane.b32.xlu0 %v4912, 24
      %v4975 = vpop.permute.xlu0 %4974
      %4976 = vrot.lane.b32.xlu0 %v4913, 24
      %v4977 = vpop.permute.xlu0 %4976
      %v4979 = vunpack.c.l.b16 %v4162
      %v4980 = vpack.c.b16 %v4979, %v4979
      %v4982 = vshrl.u32 %v4912, 16
      %v4984 = vshll.u32 %v4912, 16
      %v4986 = vrot.slane %v4984, 1
      %v4987 = vor.u32 %v4982, %v4986
      %v4989 = vshll.u32 %v4913, 16
      %v4991 = vrot.slane %v4989, 1
      %v4992 = vsel %vm584, %v4987, %v4991
      %v4993 = vshrl.u32 %v4913, 16
      %v4995 = vor.u32 %v4993, %v4991
      %v4997 = vshll.u32 %v4980, 16
      %v4999 = vrot.slane %v4997, 1
      %v5000 = vsel %vm584, %v4995, %v4999
      %5001 = vrot.lane.b32.xlu0 %v4407, 32
      %v5002 = vpop.permute.xlu0 %5001
      %5003 = vrot.lane.b32.xlu0 %v4415, 32
      %v5004 = vpop.permute.xlu0 %5003
      %5005 = vrot.lane.b32.xlu0 %v4427, 32
      %v5006 = vpop.permute.xlu0 %5005
      %5007 = vrot.lane.b32.xlu0 %v4435, 32
      %v5008 = vpop.permute.xlu0 %5007
      %5009 = vrot.lane.b32.xlu0 %v4447, 32
      %v5010 = vpop.permute.xlu0 %5009
      %5011 = vrot.lane.b32.xlu0 %v4455, 32
      %v5012 = vpop.permute.xlu0 %5011
      %5013 = vrot.lane.b32.xlu0 %v4467, 32
      %v5014 = vpop.permute.xlu0 %5013
      %5015 = vrot.lane.b32.xlu0 %v4475, 32
      %v5016 = vpop.permute.xlu0 %5015
      %5017 = vrot.lane.b32.xlu0 %v4487, 32
      %v5018 = vpop.permute.xlu0 %5017
      %5019 = vrot.lane.b32.xlu0 %v4495, 32
      %v5020 = vpop.permute.xlu0 %5019
      %5021 = vrot.lane.b32.xlu0 %v4507, 32
      %v5022 = vpop.permute.xlu0 %5021
      %5023 = vrot.lane.b32.xlu0 %v4515, 32
      %v5024 = vpop.permute.xlu0 %5023
      %5025 = vrot.lane.b32.xlu0 %v4527, 32
      %v5026 = vpop.permute.xlu0 %5025
      %5027 = vrot.lane.b32.xlu0 %v4535, 32
      %v5028 = vpop.permute.xlu0 %5027
      %5029 = vrot.lane.b32.xlu0 %v4547, 32
      %v5030 = vpop.permute.xlu0 %5029
      %5031 = vrot.lane.b32.xlu0 %v4555, 32
      %v5032 = vpop.permute.xlu0 %5031
      %5033 = vrot.lane.b32.xlu0 %v4567, 32
      %v5034 = vpop.permute.xlu0 %5033
      %5035 = vrot.lane.b32.xlu0 %v4575, 32
      %v5036 = vpop.permute.xlu0 %5035
      %5037 = vrot.lane.b32.xlu0 %v4587, 32
      %v5038 = vpop.permute.xlu0 %5037
      %5039 = vrot.lane.b32.xlu0 %v4595, 32
      %v5040 = vpop.permute.xlu0 %5039
      %5041 = vrot.lane.b32.xlu0 %v4607, 32
      %v5042 = vpop.permute.xlu0 %5041
      %5043 = vrot.lane.b32.xlu0 %v4615, 32
      %v5044 = vpop.permute.xlu0 %5043
      %5045 = vrot.lane.b32.xlu0 %v4627, 32
      %v5046 = vpop.permute.xlu0 %5045
      %5047 = vrot.lane.b32.xlu0 %v4635, 32
      %v5048 = vpop.permute.xlu0 %5047
      %5049 = vrot.lane.b32.xlu0 %v4647, 32
      %v5050 = vpop.permute.xlu0 %5049
      %5051 = vrot.lane.b32.xlu0 %v4655, 32
      %v5052 = vpop.permute.xlu0 %5051
      %5053 = vrot.lane.b32.xlu0 %v4667, 32
      %v5054 = vpop.permute.xlu0 %5053
      %5055 = vrot.lane.b32.xlu0 %v4675, 32
      %v5056 = vpop.permute.xlu0 %5055
      %5057 = vrot.lane.b32.xlu0 %v4687, 32
      %v5058 = vpop.permute.xlu0 %5057
      %5059 = vrot.lane.b32.xlu0 %v4695, 32
      %v5060 = vpop.permute.xlu0 %5059
      %5061 = vrot.lane.b32.xlu0 %v4992, 32
      %v5062 = vpop.permute.xlu0 %5061
      %5063 = vrot.lane.b32.xlu0 %v5000, 32
      %v5064 = vpop.permute.xlu0 %5063
      %v5065 = vrot.slane %v4912, 1
      %v5066 = vrot.slane %v4913, 1
      %v5067 = vsel %vm1017, %v5065, %v5066
      %v5068 = vrot.slane %v4980, 1
      %v5069 = vsel %vm1017, %v5066, %v5068
      %5070 = vrot.lane.b32.xlu0 %v4767, 40
      %v5071 = vpop.permute.xlu0 %5070
      %5072 = vrot.lane.b32.xlu0 %v4769, 40
      %v5073 = vpop.permute.xlu0 %5072
      %5074 = vrot.lane.b32.xlu0 %v4772, 40
      %v5075 = vpop.permute.xlu0 %5074
      %5076 = vrot.lane.b32.xlu0 %v4774, 40
      %v5077 = vpop.permute.xlu0 %5076
      %5078 = vrot.lane.b32.xlu0 %v4777, 40
      %v5079 = vpop.permute.xlu0 %5078
      %5080 = vrot.lane.b32.xlu0 %v4779, 40
      %v5081 = vpop.permute.xlu0 %5080
      %5082 = vrot.lane.b32.xlu0 %v4782, 40
      %v5083 = vpop.permute.xlu0 %5082
      %5084 = vrot.lane.b32.xlu0 %v4784, 40
      %v5085 = vpop.permute.xlu0 %5084
      %5086 = vrot.lane.b32.xlu0 %v4787, 40
      %v5087 = vpop.permute.xlu0 %5086
      %5088 = vrot.lane.b32.xlu0 %v4789, 40
      %v5089 = vpop.permute.xlu0 %5088
      %5090 = vrot.lane.b32.xlu0 %v4792, 40
      %v5091 = vpop.permute.xlu0 %5090
      %5092 = vrot.lane.b32.xlu0 %v4794, 40
      %v5093 = vpop.permute.xlu0 %5092
      %5094 = vrot.lane.b32.xlu0 %v4797, 40
      %v5095 = vpop.permute.xlu0 %5094
      %5096 = vrot.lane.b32.xlu0 %v4799, 40
      %v5097 = vpop.permute.xlu0 %5096
      %5098 = vrot.lane.b32.xlu0 %v4802, 40
      %v5099 = vpop.permute.xlu0 %5098
      %5100 = vrot.lane.b32.xlu0 %v4804, 40
      %v5101 = vpop.permute.xlu0 %5100
      %5102 = vrot.lane.b32.xlu0 %v4807, 40
      %v5103 = vpop.permute.xlu0 %5102
      %5104 = vrot.lane.b32.xlu0 %v4809, 40
      %v5105 = vpop.permute.xlu0 %5104
      %5106 = vrot.lane.b32.xlu0 %v4812, 40
      %v5107 = vpop.permute.xlu0 %5106
      %5108 = vrot.lane.b32.xlu0 %v4814, 40
      %v5109 = vpop.permute.xlu0 %5108
      %5110 = vrot.lane.b32.xlu0 %v4817, 40
      %v5111 = vpop.permute.xlu0 %5110
      %5112 = vrot.lane.b32.xlu0 %v4819, 40
      %v5113 = vpop.permute.xlu0 %5112
      %5114 = vrot.lane.b32.xlu0 %v4822, 40
      %v5115 = vpop.permute.xlu0 %5114
      %5116 = vrot.lane.b32.xlu0 %v4824, 40
      %v5117 = vpop.permute.xlu0 %5116
      %5118 = vrot.lane.b32.xlu0 %v4827, 40
      %v5119 = vpop.permute.xlu0 %5118
      %5120 = vrot.lane.b32.xlu0 %v4829, 40
      %v5121 = vpop.permute.xlu0 %5120
      %5122 = vrot.lane.b32.xlu0 %v4832, 40
      %v5123 = vpop.permute.xlu0 %5122
      %5124 = vrot.lane.b32.xlu0 %v4834, 40
      %v5125 = vpop.permute.xlu0 %5124
      %5126 = vrot.lane.b32.xlu0 %v4837, 40
      %v5127 = vpop.permute.xlu0 %5126
      %5128 = vrot.lane.b32.xlu0 %v4839, 40
      %v5129 = vpop.permute.xlu0 %5128
      %5130 = vrot.lane.b32.xlu0 %v5067, 40
      %v5131 = vpop.permute.xlu0 %5130
      %5132 = vrot.lane.b32.xlu0 %v5069, 40
      %v5133 = vpop.permute.xlu0 %5132
      %v5138 = vunpack.c.l.b16 %v4163
      %v5139 = vunpack.c.l.b16 %v4164
      %v5140 = vunpack.c.l.b16 %v4165
      %v5141 = vunpack.c.l.b16 %v4166
      %v5142 = vpack.c.b16 %v5139, %v5138
      %v5143 = vpack.c.b16 %v5141, %v5140
      %5144 = vrot.lane.b32.xlu0 %v4300, 48
      %v5145 = vpop.permute.xlu0 %5144
      %5146 = vrot.lane.b32.xlu0 %v4301, 48
      %v5147 = vpop.permute.xlu0 %5146
      %5148 = vrot.lane.b32.xlu0 %v4302, 48
      %v5149 = vpop.permute.xlu0 %5148
      %5150 = vrot.lane.b32.xlu0 %v4303, 48
      %v5151 = vpop.permute.xlu0 %5150
      %5152 = vrot.lane.b32.xlu0 %v4304, 48
      %v5153 = vpop.permute.xlu0 %5152
      %5154 = vrot.lane.b32.xlu0 %v4305, 48
      %v5155 = vpop.permute.xlu0 %5154
      %5156 = vrot.lane.b32.xlu0 %v4306, 48
      %v5157 = vpop.permute.xlu0 %5156
      %5158 = vrot.lane.b32.xlu0 %v4307, 48
      %v5159 = vpop.permute.xlu0 %5158
      %5160 = vrot.lane.b32.xlu0 %v4308, 48
      %v5161 = vpop.permute.xlu0 %5160
      %5162 = vrot.lane.b32.xlu0 %v4309, 48
      %v5163 = vpop.permute.xlu0 %5162
      %5164 = vrot.lane.b32.xlu0 %v4310, 48
      %v5165 = vpop.permute.xlu0 %5164
      %5166 = vrot.lane.b32.xlu0 %v4311, 48
      %v5167 = vpop.permute.xlu0 %5166
      %5168 = vrot.lane.b32.xlu0 %v4312, 48
      %v5169 = vpop.permute.xlu0 %5168
      %5170 = vrot.lane.b32.xlu0 %v4313, 48
      %v5171 = vpop.permute.xlu0 %5170
      %5172 = vrot.lane.b32.xlu0 %v4314, 48
      %v5173 = vpop.permute.xlu0 %5172
      %5174 = vrot.lane.b32.xlu0 %v4315, 48
      %v5175 = vpop.permute.xlu0 %5174
      %5176 = vrot.lane.b32.xlu0 %v4316, 48
      %v5177 = vpop.permute.xlu0 %5176
      %5178 = vrot.lane.b32.xlu0 %v4317, 48
      %v5179 = vpop.permute.xlu0 %5178
      %5180 = vrot.lane.b32.xlu0 %v4318, 48
      %v5181 = vpop.permute.xlu0 %5180
      %5182 = vrot.lane.b32.xlu0 %v4319, 48
      %v5183 = vpop.permute.xlu0 %5182
      %5184 = vrot.lane.b32.xlu0 %v4320, 48
      %v5185 = vpop.permute.xlu0 %5184
      %5186 = vrot.lane.b32.xlu0 %v4321, 48
      %v5187 = vpop.permute.xlu0 %5186
      %5188 = vrot.lane.b32.xlu0 %v4322, 48
      %v5189 = vpop.permute.xlu0 %5188
      %5190 = vrot.lane.b32.xlu0 %v4323, 48
      %v5191 = vpop.permute.xlu0 %5190
      %5192 = vrot.lane.b32.xlu0 %v4324, 48
      %v5193 = vpop.permute.xlu0 %5192
      %5194 = vrot.lane.b32.xlu0 %v4325, 48
      %v5195 = vpop.permute.xlu0 %5194
      %5196 = vrot.lane.b32.xlu0 %v4326, 48
      %v5197 = vpop.permute.xlu0 %5196
      %5198 = vrot.lane.b32.xlu0 %v4327, 48
      %v5199 = vpop.permute.xlu0 %5198
      %5200 = vrot.lane.b32.xlu0 %v4912, 48
      %v5201 = vpop.permute.xlu0 %5200
      %5202 = vrot.lane.b32.xlu0 %v4913, 48
      %v5203 = vpop.permute.xlu0 %5202
      %5204 = vrot.lane.b32.xlu0 %v5142, 48
      %v5205 = vpop.permute.xlu0 %5204
      %5206 = vrot.lane.b32.xlu0 %v5143, 48
      %v5207 = vpop.permute.xlu0 %5206
      %v5209 = vunpack.c.l.b16 %v4167
      %v5210 = vpack.c.b16 %v5209, %v5209
      %v5212 = vshrl.u32 %v5142, 16
      %v5214 = vshll.u32 %v5142, 16
      %v5216 = vrot.slane %v5214, 1
      %v5217 = vor.u32 %v5212, %v5216
      %v5219 = vshll.u32 %v5143, 16
      %v5221 = vrot.slane %v5219, 1
      %v5222 = vsel %vm584, %v5217, %v5221
      %v5223 = vshrl.u32 %v5143, 16
      %v5225 = vor.u32 %v5223, %v5221
      %v5227 = vshll.u32 %v5210, 16
      %v5229 = vrot.slane %v5227, 1
      %v5230 = vsel %vm584, %v5225, %v5229
      %5231 = vrot.lane.b32.xlu0 %v4427, 56
      %v5232 = vpop.permute.xlu0 %5231
      %5233 = vrot.lane.b32.xlu0 %v4435, 56
      %v5234 = vpop.permute.xlu0 %5233
      %5235 = vrot.lane.b32.xlu0 %v4447, 56
      %v5236 = vpop.permute.xlu0 %5235
      %5237 = vrot.lane.b32.xlu0 %v4455, 56
      %v5238 = vpop.permute.xlu0 %5237
      %5239 = vrot.lane.b32.xlu0 %v4467, 56
      %v5240 = vpop.permute.xlu0 %5239
      %5241 = vrot.lane.b32.xlu0 %v4475, 56
      %v5242 = vpop.permute.xlu0 %5241
      %5243 = vrot.lane.b32.xlu0 %v4487, 56
      %v5244 = vpop.permute.xlu0 %5243
      %5245 = vrot.lane.b32.xlu0 %v4495, 56
      %v5246 = vpop.permute.xlu0 %5245
      %5247 = vrot.lane.b32.xlu0 %v4507, 56
      %v5248 = vpop.permute.xlu0 %5247
      %5249 = vrot.lane.b32.xlu0 %v4515, 56
      %v5250 = vpop.permute.xlu0 %5249
      %5251 = vrot.lane.b32.xlu0 %v4527, 56
      %v5252 = vpop.permute.xlu0 %5251
      %5253 = vrot.lane.b32.xlu0 %v4535, 56
      %v5254 = vpop.permute.xlu0 %5253
      %5255 = vrot.lane.b32.xlu0 %v4547, 56
      %v5256 = vpop.permute.xlu0 %5255
      %5257 = vrot.lane.b32.xlu0 %v4555, 56
      %v5258 = vpop.permute.xlu0 %5257
      %5259 = vrot.lane.b32.xlu0 %v4567, 56
      %v5260 = vpop.permute.xlu0 %5259
      %5261 = vrot.lane.b32.xlu0 %v4575, 56
      %v5262 = vpop.permute.xlu0 %5261
      %5263 = vrot.lane.b32.xlu0 %v4587, 56
      %v5264 = vpop.permute.xlu0 %5263
      %5265 = vrot.lane.b32.xlu0 %v4595, 56
      %v5266 = vpop.permute.xlu0 %5265
      %5267 = vrot.lane.b32.xlu0 %v4607, 56
      %v5268 = vpop.permute.xlu0 %5267
      %5269 = vrot.lane.b32.xlu0 %v4615, 56
      %v5270 = vpop.permute.xlu0 %5269
      %5271 = vrot.lane.b32.xlu0 %v4627, 56
      %v5272 = vpop.permute.xlu0 %5271
      %5273 = vrot.lane.b32.xlu0 %v4635, 56
      %v5274 = vpop.permute.xlu0 %5273
      %5275 = vrot.lane.b32.xlu0 %v4647, 56
      %v5276 = vpop.permute.xlu0 %5275
      %5277 = vrot.lane.b32.xlu0 %v4655, 56
      %v5278 = vpop.permute.xlu0 %5277
      %5279 = vrot.lane.b32.xlu0 %v4667, 56
      %v5280 = vpop.permute.xlu0 %5279
      %5281 = vrot.lane.b32.xlu0 %v4675, 56
      %v5282 = vpop.permute.xlu0 %5281
      %5283 = vrot.lane.b32.xlu0 %v4687, 56
      %v5284 = vpop.permute.xlu0 %5283
      %5285 = vrot.lane.b32.xlu0 %v4695, 56
      %v5286 = vpop.permute.xlu0 %5285
      %5287 = vrot.lane.b32.xlu0 %v4992, 56
      %v5288 = vpop.permute.xlu0 %5287
      %5289 = vrot.lane.b32.xlu0 %v5000, 56
      %v5290 = vpop.permute.xlu0 %5289
      %5291 = vrot.lane.b32.xlu0 %v5222, 56
      %v5292 = vpop.permute.xlu0 %5291
      %5293 = vrot.lane.b32.xlu0 %v5230, 56
      %v5294 = vpop.permute.xlu0 %5293
      %v5295 = vrot.slane %v5142, 1
      %v5296 = vrot.slane %v5143, 1
      %v5297 = vsel %vm1017, %v5295, %v5296
      %v5298 = vrot.slane %v5210, 1
      %v5299 = vsel %vm1017, %v5296, %v5298
      %5300 = vrot.lane.b32.xlu0 %v4772, 64
      %v5301 = vpop.permute.xlu0 %5300
      %5302 = vrot.lane.b32.xlu0 %v4774, 64
      %v5303 = vpop.permute.xlu0 %5302
      %5304 = vrot.lane.b32.xlu0 %v4777, 64
      %v5305 = vpop.permute.xlu0 %5304
      %5306 = vrot.lane.b32.xlu0 %v4779, 64
      %v5307 = vpop.permute.xlu0 %5306
      %5308 = vrot.lane.b32.xlu0 %v4782, 64
      %v5309 = vpop.permute.xlu0 %5308
      %5310 = vrot.lane.b32.xlu0 %v4784, 64
      %v5311 = vpop.permute.xlu0 %5310
      %5312 = vrot.lane.b32.xlu0 %v4787, 64
      %v5313 = vpop.permute.xlu0 %5312
      %5314 = vrot.lane.b32.xlu0 %v4789, 64
      %v5315 = vpop.permute.xlu0 %5314
      %5316 = vrot.lane.b32.xlu0 %v4792, 64
      %v5317 = vpop.permute.xlu0 %5316
      %5318 = vrot.lane.b32.xlu0 %v4794, 64
      %v5319 = vpop.permute.xlu0 %5318
      %5320 = vrot.lane.b32.xlu0 %v4797, 64
      %v5321 = vpop.permute.xlu0 %5320
      %5322 = vrot.lane.b32.xlu0 %v4799, 64
      %v5323 = vpop.permute.xlu0 %5322
      %5324 = vrot.lane.b32.xlu0 %v4802, 64
      %v5325 = vpop.permute.xlu0 %5324
      %5326 = vrot.lane.b32.xlu0 %v4804, 64
      %v5327 = vpop.permute.xlu0 %5326
      %5328 = vrot.lane.b32.xlu0 %v4807, 64
      %v5329 = vpop.permute.xlu0 %5328
      %5330 = vrot.lane.b32.xlu0 %v4809, 64
      %v5331 = vpop.permute.xlu0 %5330
      %5332 = vrot.lane.b32.xlu0 %v4812, 64
      %v5333 = vpop.permute.xlu0 %5332
      %5334 = vrot.lane.b32.xlu0 %v4814, 64
      %v5335 = vpop.permute.xlu0 %5334
      %5336 = vrot.lane.b32.xlu0 %v4817, 64
      %v5337 = vpop.permute.xlu0 %5336
      %5338 = vrot.lane.b32.xlu0 %v4819, 64
      %v5339 = vpop.permute.xlu0 %5338
      %5340 = vrot.lane.b32.xlu0 %v4822, 64
      %v5341 = vpop.permute.xlu0 %5340
      %5342 = vrot.lane.b32.xlu0 %v4824, 64
      %v5343 = vpop.permute.xlu0 %5342
      %5344 = vrot.lane.b32.xlu0 %v4827, 64
      %v5345 = vpop.permute.xlu0 %5344
      %5346 = vrot.lane.b32.xlu0 %v4829, 64
      %v5347 = vpop.permute.xlu0 %5346
      %5348 = vrot.lane.b32.xlu0 %v4832, 64
      %v5349 = vpop.permute.xlu0 %5348
      %5350 = vrot.lane.b32.xlu0 %v4834, 64
      %v5351 = vpop.permute.xlu0 %5350
      %5352 = vrot.lane.b32.xlu0 %v4837, 64
      %v5353 = vpop.permute.xlu0 %5352
      %5354 = vrot.lane.b32.xlu0 %v4839, 64
      %v5355 = vpop.permute.xlu0 %5354
      %5356 = vrot.lane.b32.xlu0 %v5067, 64
      %v5357 = vpop.permute.xlu0 %5356
      %5358 = vrot.lane.b32.xlu0 %v5069, 64
      %v5359 = vpop.permute.xlu0 %5358
      %5360 = vrot.lane.b32.xlu0 %v5297, 64
      %v5361 = vpop.permute.xlu0 %5360
      %5362 = vrot.lane.b32.xlu0 %v5299, 64
      %v5363 = vpop.permute.xlu0 %5362
      %v5365 = vsel %vm1761, %v4296, %v4697
      %v5367 = vsel %vm1761, %v4297, %v4699
      %v5369 = vsel %vm1761, %v4298, %v4701
      %v5371 = vsel %vm1761, %v4299, %v4703
      %v5373 = vsel %vm1761, %v4300, %v4705
      %v5375 = vsel %vm1761, %v4301, %v4707
      %v5377 = vsel %vm1761, %v4302, %v4709
      %v5379 = vsel %vm1761, %v4303, %v4711
      %v5381 = vsel %vm1761, %v4304, %v4713
      %v5383 = vsel %vm1761, %v4305, %v4715
      %v5385 = vsel %vm1761, %v4306, %v4717
      %v5387 = vsel %vm1761, %v4307, %v4719
      %v5389 = vsel %vm1761, %v4308, %v4721
      %v5391 = vsel %vm1761, %v4309, %v4723
      %v5393 = vsel %vm1761, %v4310, %v4725
      %v5395 = vsel %vm1761, %v4311, %v4727
      %v5397 = vsel %vm1761, %v4312, %v4729
      %v5399 = vsel %vm1761, %v4313, %v4731
      %v5401 = vsel %vm1761, %v4314, %v4733
      %v5403 = vsel %vm1761, %v4315, %v4735
      %v5405 = vsel %vm1761, %v4316, %v4737
      %v5407 = vsel %vm1761, %v4317, %v4739
      %v5409 = vsel %vm1761, %v4318, %v4741
      %v5411 = vsel %vm1761, %v4319, %v4743
      %v5413 = vsel %vm1761, %v4320, %v4745
      %v5415 = vsel %vm1761, %v4321, %v4747
      %v5417 = vsel %vm1761, %v4322, %v4749
      %v5419 = vsel %vm1761, %v4323, %v4751
      %v5421 = vsel %vm1761, %v4324, %v4753
      %v5423 = vsel %vm1761, %v4325, %v4755
      %v5425 = vsel %vm1761, %v4326, %v4757
      %v5427 = vsel %vm1761, %v4327, %v4759
      %v5429 = vsel %vm1907, %v5365, %v4841
      %v5431 = vsel %vm1907, %v5367, %v4843
      %v5433 = vsel %vm1907, %v5369, %v4845
      %v5435 = vsel %vm1907, %v5371, %v4847
      %v5437 = vsel %vm1907, %v5373, %v4849
      %v5439 = vsel %vm1907, %v5375, %v4851
      %v5441 = vsel %vm1907, %v5377, %v4853
      %v5443 = vsel %vm1907, %v5379, %v4855
      %v5445 = vsel %vm1907, %v5381, %v4857
      %v5447 = vsel %vm1907, %v5383, %v4859
      %v5449 = vsel %vm1907, %v5385, %v4861
      %v5451 = vsel %vm1907, %v5387, %v4863
      %v5453 = vsel %vm1907, %v5389, %v4865
      %v5455 = vsel %vm1907, %v5391, %v4867
      %v5457 = vsel %vm1907, %v5393, %v4869
      %v5459 = vsel %vm1907, %v5395, %v4871
      %v5461 = vsel %vm1907, %v5397, %v4873
      %v5463 = vsel %vm1907, %v5399, %v4875
      %v5465 = vsel %vm1907, %v5401, %v4877
      %v5467 = vsel %vm1907, %v5403, %v4879
      %v5469 = vsel %vm1907, %v5405, %v4881
      %v5471 = vsel %vm1907, %v5407, %v4883
      %v5473 = vsel %vm1907, %v5409, %v4885
      %v5475 = vsel %vm1907, %v5411, %v4887
      %v5477 = vsel %vm1907, %v5413, %v4889
      %v5479 = vsel %vm1907, %v5415, %v4891
      %v5481 = vsel %vm1907, %v5417, %v4893
      %v5483 = vsel %vm1907, %v5419, %v4895
      %v5485 = vsel %vm1907, %v5421, %v4897
      %v5487 = vsel %vm1907, %v5423, %v4899
      %v5489 = vsel %vm1907, %v5425, %v4901
      %v5491 = vsel %vm1907, %v5427, %v4903
      %v5493 = vsel %vm2053, %v5429, %v4915
      %v5495 = vsel %vm2053, %v5431, %v4917
      %v5497 = vsel %vm2053, %v5433, %v4919
      %v5499 = vsel %vm2053, %v5435, %v4921
      %v5501 = vsel %vm2053, %v5437, %v4923
      %v5503 = vsel %vm2053, %v5439, %v4925
      %v5505 = vsel %vm2053, %v5441, %v4927
      %v5507 = vsel %vm2053, %v5443, %v4929
      %v5509 = vsel %vm2053, %v5445, %v4931
      %v5511 = vsel %vm2053, %v5447, %v4933
      %v5513 = vsel %vm2053, %v5449, %v4935
      %v5515 = vsel %vm2053, %v5451, %v4937
      %v5517 = vsel %vm2053, %v5453, %v4939
      %v5519 = vsel %vm2053, %v5455, %v4941
      %v5521 = vsel %vm2053, %v5457, %v4943
      %v5523 = vsel %vm2053, %v5459, %v4945
      %v5525 = vsel %vm2053, %v5461, %v4947
      %v5527 = vsel %vm2053, %v5463, %v4949
      %v5529 = vsel %vm2053, %v5465, %v4951
      %v5531 = vsel %vm2053, %v5467, %v4953
      %v5533 = vsel %vm2053, %v5469, %v4955
      %v5535 = vsel %vm2053, %v5471, %v4957
      %v5537 = vsel %vm2053, %v5473, %v4959
      %v5539 = vsel %vm2053, %v5475, %v4961
      %v5541 = vsel %vm2053, %v5477, %v4963
      %v5543 = vsel %vm2053, %v5479, %v4965
      %v5545 = vsel %vm2053, %v5481, %v4967
      %v5547 = vsel %vm2053, %v5483, %v4969
      %v5549 = vsel %vm2053, %v5485, %v4971
      %v5551 = vsel %vm2053, %v5487, %v4973
      %v5553 = vsel %vm2053, %v5489, %v4975
      %v5555 = vsel %vm2053, %v5491, %v4977
      %v5557 = vsel %vm2199, %v5493, %v5002
      %v5559 = vsel %vm2199, %v5495, %v5004
      %v5561 = vsel %vm2199, %v5497, %v5006
      %v5563 = vsel %vm2199, %v5499, %v5008
      %v5565 = vsel %vm2199, %v5501, %v5010
      %v5567 = vsel %vm2199, %v5503, %v5012
      %v5569 = vsel %vm2199, %v5505, %v5014
      %v5571 = vsel %vm2199, %v5507, %v5016
      %v5573 = vsel %vm2199, %v5509, %v5018
      %v5575 = vsel %vm2199, %v5511, %v5020
      %v5577 = vsel %vm2199, %v5513, %v5022
      %v5579 = vsel %vm2199, %v5515, %v5024
      %v5581 = vsel %vm2199, %v5517, %v5026
      %v5583 = vsel %vm2199, %v5519, %v5028
      %v5585 = vsel %vm2199, %v5521, %v5030
      %v5587 = vsel %vm2199, %v5523, %v5032
      %v5589 = vsel %vm2199, %v5525, %v5034
      %v5591 = vsel %vm2199, %v5527, %v5036
      %v5593 = vsel %vm2199, %v5529, %v5038
      %v5595 = vsel %vm2199, %v5531, %v5040
      %v5597 = vsel %vm2199, %v5533, %v5042
      %v5599 = vsel %vm2199, %v5535, %v5044
      %v5601 = vsel %vm2199, %v5537, %v5046
      %v5603 = vsel %vm2199, %v5539, %v5048
      %v5605 = vsel %vm2199, %v5541, %v5050
      %v5607 = vsel %vm2199, %v5543, %v5052
      %v5609 = vsel %vm2199, %v5545, %v5054
      %v5611 = vsel %vm2199, %v5547, %v5056
      %v5613 = vsel %vm2199, %v5549, %v5058
      %v5615 = vsel %vm2199, %v5551, %v5060
      %v5617 = vsel %vm2199, %v5553, %v5062
      %v5619 = vsel %vm2199, %v5555, %v5064
      %vm5620 = vcmask 326656
      %v5622 = vsel %vm5620, %v5557, %v5071
      %v5624 = vsel %vm5620, %v5559, %v5073
      %v5626 = vsel %vm5620, %v5561, %v5075
      %v5628 = vsel %vm5620, %v5563, %v5077
      %v5630 = vsel %vm5620, %v5565, %v5079
      %v5632 = vsel %vm5620, %v5567, %v5081
      %v5634 = vsel %vm5620, %v5569, %v5083
      %v5636 = vsel %vm5620, %v5571, %v5085
      %v5638 = vsel %vm5620, %v5573, %v5087
      %v5640 = vsel %vm5620, %v5575, %v5089
      %v5642 = vsel %vm5620, %v5577, %v5091
      %v5644 = vsel %vm5620, %v5579, %v5093
      %v5646 = vsel %vm5620, %v5581, %v5095
      %v5648 = vsel %vm5620, %v5583, %v5097
      %v5650 = vsel %vm5620, %v5585, %v5099
      %v5652 = vsel %vm5620, %v5587, %v5101
      %v5654 = vsel %vm5620, %v5589, %v5103
      %v5656 = vsel %vm5620, %v5591, %v5105
      %v5658 = vsel %vm5620, %v5593, %v5107
      %v5660 = vsel %vm5620, %v5595, %v5109
      %v5662 = vsel %vm5620, %v5597, %v5111
      %v5664 = vsel %vm5620, %v5599, %v5113
      %v5666 = vsel %vm5620, %v5601, %v5115
      %v5668 = vsel %vm5620, %v5603, %v5117
      %v5670 = vsel %vm5620, %v5605, %v5119
      %v5672 = vsel %vm5620, %v5607, %v5121
      %v5674 = vsel %vm5620, %v5609, %v5123
      %v5676 = vsel %vm5620, %v5611, %v5125
      %v5678 = vsel %vm5620, %v5613, %v5127
      %v5680 = vsel %vm5620, %v5615, %v5129
      %v5682 = vsel %vm5620, %v5617, %v5131
      %v5684 = vsel %vm5620, %v5619, %v5133
      %vm5685 = vcmask 392192
      %v5687 = vsel %vm5685, %v5622, %v5145
      %v5689 = vsel %vm5685, %v5624, %v5147
      %v5691 = vsel %vm5685, %v5626, %v5149
      %v5693 = vsel %vm5685, %v5628, %v5151
      %v5695 = vsel %vm5685, %v5630, %v5153
      %v5697 = vsel %vm5685, %v5632, %v5155
      %v5699 = vsel %vm5685, %v5634, %v5157
      %v5701 = vsel %vm5685, %v5636, %v5159
      %v5703 = vsel %vm5685, %v5638, %v5161
      %v5705 = vsel %vm5685, %v5640, %v5163
      %v5707 = vsel %vm5685, %v5642, %v5165
      %v5709 = vsel %vm5685, %v5644, %v5167
      %v5711 = vsel %vm5685, %v5646, %v5169
      %v5713 = vsel %vm5685, %v5648, %v5171
      %v5715 = vsel %vm5685, %v5650, %v5173
      %v5717 = vsel %vm5685, %v5652, %v5175
      %v5719 = vsel %vm5685, %v5654, %v5177
      %v5721 = vsel %vm5685, %v5656, %v5179
      %v5723 = vsel %vm5685, %v5658, %v5181
      %v5725 = vsel %vm5685, %v5660, %v5183
      %v5727 = vsel %vm5685, %v5662, %v5185
      %v5729 = vsel %vm5685, %v5664, %v5187
      %v5731 = vsel %vm5685, %v5666, %v5189
      %v5733 = vsel %vm5685, %v5668, %v5191
      %v5735 = vsel %vm5685, %v5670, %v5193
      %v5737 = vsel %vm5685, %v5672, %v5195
      %v5739 = vsel %vm5685, %v5674, %v5197
      %v5741 = vsel %vm5685, %v5676, %v5199
      %v5743 = vsel %vm5685, %v5678, %v5201
      %v5745 = vsel %vm5685, %v5680, %v5203
      %v5747 = vsel %vm5685, %v5682, %v5205
      %v5749 = vsel %vm5685, %v5684, %v5207
      %vm5750 = vcmask 457728
      %v5752 = vsel %vm5750, %v5687, %v5232
      %v5754 = vsel %vm5750, %v5689, %v5234
      %v5756 = vsel %vm5750, %v5691, %v5236
      %v5758 = vsel %vm5750, %v5693, %v5238
      %v5760 = vsel %vm5750, %v5695, %v5240
      %v5762 = vsel %vm5750, %v5697, %v5242
      %v5764 = vsel %vm5750, %v5699, %v5244
      %v5766 = vsel %vm5750, %v5701, %v5246
      %v5768 = vsel %vm5750, %v5703, %v5248
      %v5770 = vsel %vm5750, %v5705, %v5250
      %v5772 = vsel %vm5750, %v5707, %v5252
      %v5774 = vsel %vm5750, %v5709, %v5254
      %v5776 = vsel %vm5750, %v5711, %v5256
      %v5778 = vsel %vm5750, %v5713, %v5258
      %v5780 = vsel %vm5750, %v5715, %v5260
      %v5782 = vsel %vm5750, %v5717, %v5262
      %v5784 = vsel %vm5750, %v5719, %v5264
      %v5786 = vsel %vm5750, %v5721, %v5266
      %v5788 = vsel %vm5750, %v5723, %v5268
      %v5790 = vsel %vm5750, %v5725, %v5270
      %v5792 = vsel %vm5750, %v5727, %v5272
      %v5794 = vsel %vm5750, %v5729, %v5274
      %v5796 = vsel %vm5750, %v5731, %v5276
      %v5798 = vsel %vm5750, %v5733, %v5278
      %v5800 = vsel %vm5750, %v5735, %v5280
      %v5802 = vsel %vm5750, %v5737, %v5282
      %v5804 = vsel %vm5750, %v5739, %v5284
      %v5806 = vsel %vm5750, %v5741, %v5286
      %v5808 = vsel %vm5750, %v5743, %v5288
      %v5810 = vsel %vm5750, %v5745, %v5290
      %v5812 = vsel %vm5750, %v5747, %v5292
      %v5814 = vsel %vm5750, %v5749, %v5294
      %vm5815 = vcmask 523264
      %v5817 = vsel %vm5815, %v5752, %v5301
      %v5819 = vsel %vm5815, %v5754, %v5303
      %v5821 = vsel %vm5815, %v5756, %v5305
      %v5823 = vsel %vm5815, %v5758, %v5307
      %v5825 = vsel %vm5815, %v5760, %v5309
      %v5827 = vsel %vm5815, %v5762, %v5311
      %v5829 = vsel %vm5815, %v5764, %v5313
      %v5831 = vsel %vm5815, %v5766, %v5315
      %v5833 = vsel %vm5815, %v5768, %v5317
      %v5835 = vsel %vm5815, %v5770, %v5319
      %v5837 = vsel %vm5815, %v5772, %v5321
      %v5839 = vsel %vm5815, %v5774, %v5323
      %v5841 = vsel %vm5815, %v5776, %v5325
      %v5843 = vsel %vm5815, %v5778, %v5327
      %v5845 = vsel %vm5815, %v5780, %v5329
      %v5847 = vsel %vm5815, %v5782, %v5331
      %v5849 = vsel %vm5815, %v5784, %v5333
      %v5851 = vsel %vm5815, %v5786, %v5335
      %v5853 = vsel %vm5815, %v5788, %v5337
      %v5855 = vsel %vm5815, %v5790, %v5339
      %v5857 = vsel %vm5815, %v5792, %v5341
      %v5859 = vsel %vm5815, %v5794, %v5343
      %v5861 = vsel %vm5815, %v5796, %v5345
      %v5863 = vsel %vm5815, %v5798, %v5347
      %v5865 = vsel %vm5815, %v5800, %v5349
      %v5867 = vsel %vm5815, %v5802, %v5351
      %v5869 = vsel %vm5815, %v5804, %v5353
      %v5871 = vsel %vm5815, %v5806, %v5355
      %v5873 = vsel %vm5815, %v5808, %v5357
      %v5875 = vsel %vm5815, %v5810, %v5359
      %v5877 = vsel %vm5815, %v5812, %v5361
      %v5879 = vsel %vm5815, %v5814, %v5363
      %v5880 = vld [vmem:[%s3] sm:$0xf]
      %v5881 = vld [vmem:[%s3 + $0x4] sm:$0xf]
      %v5882 = vld [vmem:[%s3 + $0x8] sm:$0xf]
      %v5883 = vld [vmem:[%s3 + $0xc] sm:$0xf]
      %v5884 = vld [vmem:[%s3 + $0x10] sm:$0xf]
      %v5885 = vld [vmem:[%s3 + $0x14] sm:$0xf]
      %v5886 = vld [vmem:[%s3 + $0x18] sm:$0xf]
      %v5887 = vld [vmem:[%s3 + $0x1c] sm:$0xf]
      %v5888 = vld [vmem:[%s3 + $0x20] sm:$0xf]
      %v5898 = vunpack.c.l.b16 %v5880
      %v5899 = vunpack.c.l.b16 %v5881
      %v5900 = vunpack.c.l.b16 %v5882
      %v5901 = vunpack.c.l.b16 %v5883
      %v5902 = vunpack.c.l.b16 %v5884
      %v5903 = vunpack.c.l.b16 %v5885
      %v5904 = vunpack.c.l.b16 %v5886
      %v5905 = vunpack.c.l.b16 %v5887
      %v5906 = vunpack.c.l.b16 %v5888
      %v5907 = vpack.c.b16 %v5899, %v5898
      %v5908 = vpack.c.b16 %v5901, %v5900
      %v5909 = vpack.c.b16 %v5903, %v5902
      %v5910 = vpack.c.b16 %v5905, %v5904
      %v5911 = vpack.c.b16 %v5906, %v5906
      %5980 = vrot.lane.b32.xlu0 %v2420, 120
      %v5981 = vpop.permute.xlu0 %5980
      %5982 = vrot.lane.b32.xlu0 %v2423, 120
      %v5983 = vpop.permute.xlu0 %5982
      %5984 = vrot.lane.b32.xlu0 %v2428, 120
      %v5985 = vpop.permute.xlu0 %5984
      %5986 = vrot.lane.b32.xlu0 %v2431, 120
      %v5987 = vpop.permute.xlu0 %5986
      %5988 = vrot.lane.b32.xlu0 %v2436, 120
      %v5989 = vpop.permute.xlu0 %5988
      %5990 = vrot.lane.b32.xlu0 %v2439, 120
      %v5991 = vpop.permute.xlu0 %5990
      %5992 = vrot.lane.b32.xlu0 %v2444, 120
      %v5993 = vpop.permute.xlu0 %5992
      %5994 = vrot.lane.b32.xlu0 %v2447, 120
      %v5995 = vpop.permute.xlu0 %5994
      %5996 = vrot.lane.b32.xlu0 %v2452, 120
      %v5997 = vpop.permute.xlu0 %5996
      %5998 = vrot.lane.b32.xlu0 %v2455, 120
      %v5999 = vpop.permute.xlu0 %5998
      %6000 = vrot.lane.b32.xlu0 %v2460, 120
      %v6001 = vpop.permute.xlu0 %6000
      %6002 = vrot.lane.b32.xlu0 %v2463, 120
      %v6003 = vpop.permute.xlu0 %6002
      %6004 = vrot.lane.b32.xlu0 %v2468, 120
      %v6005 = vpop.permute.xlu0 %6004
      %6006 = vrot.lane.b32.xlu0 %v2471, 120
      %v6007 = vpop.permute.xlu0 %6006
      %6008 = vrot.lane.b32.xlu0 %v2476, 120
      %v6009 = vpop.permute.xlu0 %6008
      %6010 = vrot.lane.b32.xlu0 %v2479, 120
      %v6011 = vpop.permute.xlu0 %6010
      %6012 = vrot.lane.b32.xlu0 %v2484, 120
      %v6013 = vpop.permute.xlu0 %6012
      %6014 = vrot.lane.b32.xlu0 %v2487, 120
      %v6015 = vpop.permute.xlu0 %6014
      %6016 = vrot.lane.b32.xlu0 %v2492, 120
      %v6017 = vpop.permute.xlu0 %6016
      %6018 = vrot.lane.b32.xlu0 %v2495, 120
      %v6019 = vpop.permute.xlu0 %6018
      %6020 = vrot.lane.b32.xlu0 %v2500, 120
      %v6021 = vpop.permute.xlu0 %6020
      %6022 = vrot.lane.b32.xlu0 %v2503, 120
      %v6023 = vpop.permute.xlu0 %6022
      %6024 = vrot.lane.b32.xlu0 %v2508, 120
      %v6025 = vpop.permute.xlu0 %6024
      %6026 = vrot.lane.b32.xlu0 %v2511, 120
      %v6027 = vpop.permute.xlu0 %6026
      %6028 = vrot.lane.b32.xlu0 %v2516, 120
      %v6029 = vpop.permute.xlu0 %6028
      %6030 = vrot.lane.b32.xlu0 %v2519, 120
      %v6031 = vpop.permute.xlu0 %6030
      %6032 = vrot.lane.b32.xlu0 %v2524, 120
      %v6033 = vpop.permute.xlu0 %6032
      %6034 = vrot.lane.b32.xlu0 %v2527, 120
      %v6035 = vpop.permute.xlu0 %6034
      %6036 = vrot.lane.b32.xlu0 %v2532, 120
      %v6037 = vpop.permute.xlu0 %6036
      %6038 = vrot.lane.b32.xlu0 %v2535, 120
      %v6039 = vpop.permute.xlu0 %6038
      %6040 = vrot.lane.b32.xlu0 %v2540, 120
      %v6041 = vpop.permute.xlu0 %6040
      %6042 = vrot.lane.b32.xlu0 %v2543, 120
      %v6043 = vpop.permute.xlu0 %6042
      %6044 = vrot.lane.b32.xlu0 %v2548, 120
      %v6045 = vpop.permute.xlu0 %6044
      %6046 = vrot.lane.b32.xlu0 %v2551, 120
      %v6047 = vpop.permute.xlu0 %6046
      %6048 = vrot.lane.b32.xlu0 %v2556, 120
      %v6049 = vpop.permute.xlu0 %6048
      %6050 = vrot.lane.b32.xlu0 %v2559, 120
      %v6051 = vpop.permute.xlu0 %6050
      %6052 = vrot.lane.b32.xlu0 %v2564, 120
      %v6053 = vpop.permute.xlu0 %6052
      %6054 = vrot.lane.b32.xlu0 %v2567, 120
      %v6055 = vpop.permute.xlu0 %6054
      %6056 = vrot.lane.b32.xlu0 %v2572, 120
      %v6057 = vpop.permute.xlu0 %6056
      %6058 = vrot.lane.b32.xlu0 %v2575, 120
      %v6059 = vpop.permute.xlu0 %6058
      %6060 = vrot.lane.b32.xlu0 %v2580, 120
      %v6061 = vpop.permute.xlu0 %6060
      %6062 = vrot.lane.b32.xlu0 %v2583, 120
      %v6063 = vpop.permute.xlu0 %6062
      %6064 = vrot.lane.b32.xlu0 %v2588, 120
      %v6065 = vpop.permute.xlu0 %6064
      %6066 = vrot.lane.b32.xlu0 %v2591, 120
      %v6067 = vpop.permute.xlu0 %6066
      %6068 = vrot.lane.b32.xlu0 %v2596, 120
      %v6069 = vpop.permute.xlu0 %6068
      %6070 = vrot.lane.b32.xlu0 %v2599, 120
      %v6071 = vpop.permute.xlu0 %6070
      %6072 = vrot.lane.b32.xlu0 %v2604, 120
      %v6073 = vpop.permute.xlu0 %6072
      %6074 = vrot.lane.b32.xlu0 %v2607, 120
      %v6075 = vpop.permute.xlu0 %6074
      %6076 = vrot.lane.b32.xlu0 %v2612, 120
      %v6077 = vpop.permute.xlu0 %6076
      %6078 = vrot.lane.b32.xlu0 %v2615, 120
      %v6079 = vpop.permute.xlu0 %6078
      %6080 = vrot.lane.b32.xlu0 %v2620, 120
      %v6081 = vpop.permute.xlu0 %6080
      %6082 = vrot.lane.b32.xlu0 %v2623, 120
      %v6083 = vpop.permute.xlu0 %6082
      %6084 = vrot.lane.b32.xlu0 %v2628, 120
      %v6085 = vpop.permute.xlu0 %6084
      %6086 = vrot.lane.b32.xlu0 %v2631, 120
      %v6087 = vpop.permute.xlu0 %6086
      %6088 = vrot.lane.b32.xlu0 %v2636, 120
      %v6089 = vpop.permute.xlu0 %6088
      %6090 = vrot.lane.b32.xlu0 %v2639, 120
      %v6091 = vpop.permute.xlu0 %6090
      %6092 = vrot.lane.b32.xlu0 %v2644, 120
      %v6093 = vpop.permute.xlu0 %6092
      %6094 = vrot.lane.b32.xlu0 %v2647, 120
      %v6095 = vpop.permute.xlu0 %6094
      %6096 = vrot.lane.b32.xlu0 %v2652, 120
      %v6097 = vpop.permute.xlu0 %6096
      %6098 = vrot.lane.b32.xlu0 %v2655, 120
      %v6099 = vpop.permute.xlu0 %6098
      %6100 = vrot.lane.b32.xlu0 %v2660, 120
      %v6101 = vpop.permute.xlu0 %6100
      %6102 = vrot.lane.b32.xlu0 %v2663, 120
      %v6103 = vpop.permute.xlu0 %6102
      %6104 = vrot.lane.b32.xlu0 %v2668, 120
      %v6105 = vpop.permute.xlu0 %6104
      %6106 = vrot.lane.b32.xlu0 %v2671, 120
      %v6107 = vpop.permute.xlu0 %6106
      %vm6172 = vcmask 588800
      %v6173 = vsel %vm6172, %v5817, 0
      %v6175 = vsel %vm6172, %v5819, 0
      %v6177 = vsel %vm6172, %v5821, 0
      %v6179 = vsel %vm6172, %v5823, 0
      %v6181 = vsel %vm6172, %v5825, 0
      %v6183 = vsel %vm6172, %v5827, 0
      %v6185 = vsel %vm6172, %v5829, 0
      %v6187 = vsel %vm6172, %v5831, 0
      %v6189 = vsel %vm6172, %v5833, 0
      %v6191 = vsel %vm6172, %v5835, 0
      %v6193 = vsel %vm6172, %v5837, 0
      %v6195 = vsel %vm6172, %v5839, 0
      %v6197 = vsel %vm6172, %v5841, 0
      %v6199 = vsel %vm6172, %v5843, 0
      %v6201 = vsel %vm6172, %v5845, 0
      %v6203 = vsel %vm6172, %v5847, 0
      %v6205 = vsel %vm6172, %v5849, 0
      %v6207 = vsel %vm6172, %v5851, 0
      %v6209 = vsel %vm6172, %v5853, 0
      %v6211 = vsel %vm6172, %v5855, 0
      %v6213 = vsel %vm6172, %v5857, 0
      %v6215 = vsel %vm6172, %v5859, 0
      %v6217 = vsel %vm6172, %v5861, 0
      %v6219 = vsel %vm6172, %v5863, 0
      %v6221 = vsel %vm6172, %v5865, 0
      %v6223 = vsel %vm6172, %v5867, 0
      %v6225 = vsel %vm6172, %v5869, 0
      %v6227 = vsel %vm6172, %v5871, 0
      %v6229 = vsel %vm6172, %v5873, 0
      %v6231 = vsel %vm6172, %v5875, 0
      %v6233 = vsel %vm6172, %v5877, 0
      %v6235 = vsel %vm6172, %v5879, 0
      %vm6237 = vcmask 1043456
      %v6239 = vsel %vm6237, %v5911, 0
      %6241 = vmatprep.subr.bf16.mxu0 0
      %6242 = vmatpush1.bf16.msra.mxu0 0
      %6243 = vmatprep.subr.bf16.mxu0 0
      %6244 = vmatpush1.bf16.msra.mxu0 0
      %6245 = vmatprep.subr.bf16.mxu0 0
      %6246 = vmatpush1.bf16.msra.mxu0 0
      %6247 = vmatprep.subr.bf16.mxu0 0
      %6248 = vmatpush1.bf16.msra.mxu0 %v6239
      %6249 = vmatprep.subr.bf16.mxu0 0
      %6250 = vmatpush1.bf16.msra.mxu0 %v5910
      %6251 = vmatprep.subr.bf16.mxu0 0
      %6252 = vmatpush1.bf16.msra.mxu0 %v5909
      %6253 = vmatprep.subr.bf16.mxu0 0
      %6254 = vmatpush1.bf16.msra.mxu0 %v5908
      %6255 = vmatprep.subr.bf16.mxu0 0
      %6256 = vmatpush1.bf16.msra.mxu0 %v5907
      %6257 = vmatprep.subr.bf16.mxu0 0
      %6258 = vmatpush2.bf16.msra.mxu0 0
      %6259 = vmatprep.subr.bf16.mxu0 0
      %6260 = vmatpush2.bf16.msra.mxu0 0
      %6261 = vmatprep.subr.bf16.mxu0 0
      %6262 = vmatpush2.bf16.msra.mxu0 0
      %6263 = vmatprep.subr.bf16.mxu0 0
      %6264 = vmatpush2.bf16.msra.mxu0 0
      %6265 = vmatprep.subr.bf16.mxu0 0
      %6266 = vmatpush2.bf16.msra.mxu0 0
      %6267 = vmatprep.subr.bf16.mxu0 0
      %6268 = vmatpush2.bf16.msra.mxu0 0
      %6269 = vmatprep.subr.bf16.mxu0 0
      %6270 = vmatpush2.bf16.msra.mxu0 0
      %6271 = vmatprep.subr.bf16.mxu0 0
      %6272 = vmatpush2.bf16.msra.mxu0 0
      %6273 = vmatprep.mubr.bf16.mxu0 0
      %6274 = vmatmul.mubr.bf16.gmra.mxu0 %v6173
      %v6275 = vpop.f32.mrf.mxu0
      %v6276 = vadd.f32 %v5981, %v6275
      %v6277 = vpop.f32.mrf.mxu0
      %v6278 = vpop.f32.mrf.mxu0
      %v6279 = vadd.f32 %v5983, %v6278
      %v6280 = vpop.f32.mrf.mxu0
      %6281 = vmatprep.mubr.bf16.mxu0 0
      %6282 = vmatmul.mubr.bf16.gmra.mxu0 %v6175
      %v6283 = vpop.f32.mrf.mxu0
      %v6284 = vadd.f32 %v5985, %v6283
      %v6285 = vpop.f32.mrf.mxu0
      %v6286 = vpop.f32.mrf.mxu0
      %v6287 = vadd.f32 %v5987, %v6286
      %v6288 = vpop.f32.mrf.mxu0
      %6289 = vmatprep.mubr.bf16.mxu0 0
      %6290 = vmatmul.mubr.bf16.gmra.mxu0 %v6177
      %v6291 = vpop.f32.mrf.mxu0
      %v6292 = vadd.f32 %v5989, %v6291
      %v6293 = vpop.f32.mrf.mxu0
      %v6294 = vpop.f32.mrf.mxu0
      %v6295 = vadd.f32 %v5991, %v6294
      %v6296 = vpop.f32.mrf.mxu0
      %6297 = vmatprep.mubr.bf16.mxu0 0
      %6298 = vmatmul.mubr.bf16.gmra.mxu0 %v6179
      %v6299 = vpop.f32.mrf.mxu0
      %v6300 = vadd.f32 %v5993, %v6299
      %v6301 = vpop.f32.mrf.mxu0
      %v6302 = vpop.f32.mrf.mxu0
      %v6303 = vadd.f32 %v5995, %v6302
      %v6304 = vpop.f32.mrf.mxu0
      %6305 = vmatprep.mubr.bf16.mxu0 0
      %6306 = vmatmul.mubr.bf16.gmra.mxu0 %v6181
      %v6307 = vpop.f32.mrf.mxu0
      %v6308 = vadd.f32 %v5997, %v6307
      %v6309 = vpop.f32.mrf.mxu0
      %v6310 = vpop.f32.mrf.mxu0
      %v6311 = vadd.f32 %v5999, %v6310
      %v6312 = vpop.f32.mrf.mxu0
      %6313 = vmatprep.mubr.bf16.mxu0 0
      %6314 = vmatmul.mubr.bf16.gmra.mxu0 %v6183
      %v6315 = vpop.f32.mrf.mxu0
      %v6316 = vadd.f32 %v6001, %v6315
      %v6317 = vpop.f32.mrf.mxu0
      %v6318 = vpop.f32.mrf.mxu0
      %v6319 = vadd.f32 %v6003, %v6318
      %v6320 = vpop.f32.mrf.mxu0
      %6321 = vmatprep.mubr.bf16.mxu0 0
      %6322 = vmatmul.mubr.bf16.gmra.mxu0 %v6185
      %v6323 = vpop.f32.mrf.mxu0
      %v6324 = vadd.f32 %v6005, %v6323
      %v6325 = vpop.f32.mrf.mxu0
      %v6326 = vpop.f32.mrf.mxu0
      %v6327 = vadd.f32 %v6007, %v6326
      %v6328 = vpop.f32.mrf.mxu0
      %6329 = vmatprep.mubr.bf16.mxu0 0
      %6330 = vmatmul.mubr.bf16.gmra.mxu0 %v6187
      %v6331 = vpop.f32.mrf.mxu0
      %v6332 = vadd.f32 %v6009, %v6331
      %v6333 = vpop.f32.mrf.mxu0
      %v6334 = vpop.f32.mrf.mxu0
      %v6335 = vadd.f32 %v6011, %v6334
      %v6336 = vpop.f32.mrf.mxu0
      %6337 = vmatprep.mubr.bf16.mxu0 0
      %6338 = vmatmul.mubr.bf16.gmra.mxu0 %v6189
      %v6339 = vpop.f32.mrf.mxu0
      %v6340 = vadd.f32 %v6013, %v6339
      %v6341 = vpop.f32.mrf.mxu0
      %v6342 = vpop.f32.mrf.mxu0
      %v6343 = vadd.f32 %v6015, %v6342
      %v6344 = vpop.f32.mrf.mxu0
      %6345 = vmatprep.mubr.bf16.mxu0 0
      %6346 = vmatmul.mubr.bf16.gmra.mxu0 %v6191
      %v6347 = vpop.f32.mrf.mxu0
      %v6348 = vadd.f32 %v6017, %v6347
      %v6349 = vpop.f32.mrf.mxu0
      %v6350 = vpop.f32.mrf.mxu0
      %v6351 = vadd.f32 %v6019, %v6350
      %v6352 = vpop.f32.mrf.mxu0
      %6353 = vmatprep.mubr.bf16.mxu0 0
      %6354 = vmatmul.mubr.bf16.gmra.mxu0 %v6193
      %v6355 = vpop.f32.mrf.mxu0
      %v6356 = vadd.f32 %v6021, %v6355
      %v6357 = vpop.f32.mrf.mxu0
      %v6358 = vpop.f32.mrf.mxu0
      %v6359 = vadd.f32 %v6023, %v6358
      %v6360 = vpop.f32.mrf.mxu0
      %6361 = vmatprep.mubr.bf16.mxu0 0
      %6362 = vmatmul.mubr.bf16.gmra.mxu0 %v6195
      %v6363 = vpop.f32.mrf.mxu0
      %v6364 = vadd.f32 %v6025, %v6363
      %v6365 = vpop.f32.mrf.mxu0
      %v6366 = vpop.f32.mrf.mxu0
      %v6367 = vadd.f32 %v6027, %v6366
      %v6368 = vpop.f32.mrf.mxu0
      %6369 = vmatprep.mubr.bf16.mxu0 0
      %6370 = vmatmul.mubr.bf16.gmra.mxu0 %v6197
      %v6371 = vpop.f32.mrf.mxu0
      %v6372 = vadd.f32 %v6029, %v6371
      %v6373 = vpop.f32.mrf.mxu0
      %v6374 = vpop.f32.mrf.mxu0
      %v6375 = vadd.f32 %v6031, %v6374
      %v6376 = vpop.f32.mrf.mxu0
      %6377 = vmatprep.mubr.bf16.mxu0 0
      %6378 = vmatmul.mubr.bf16.gmra.mxu0 %v6199
      %v6379 = vpop.f32.mrf.mxu0
      %v6380 = vadd.f32 %v6033, %v6379
      %v6381 = vpop.f32.mrf.mxu0
      %v6382 = vpop.f32.mrf.mxu0
      %v6383 = vadd.f32 %v6035, %v6382
      %v6384 = vpop.f32.mrf.mxu0
      %6385 = vmatprep.mubr.bf16.mxu0 0
      %6386 = vmatmul.mubr.bf16.gmra.mxu0 %v6201
      %v6387 = vpop.f32.mrf.mxu0
      %v6388 = vadd.f32 %v6037, %v6387
      %v6389 = vpop.f32.mrf.mxu0
      %v6390 = vpop.f32.mrf.mxu0
      %v6391 = vadd.f32 %v6039, %v6390
      %v6392 = vpop.f32.mrf.mxu0
      %6393 = vmatprep.mubr.bf16.mxu0 0
      %6394 = vmatmul.mubr.bf16.gmra.mxu0 %v6203
      %v6395 = vpop.f32.mrf.mxu0
      %v6396 = vadd.f32 %v6041, %v6395
      %v6397 = vpop.f32.mrf.mxu0
      %v6398 = vpop.f32.mrf.mxu0
      %v6399 = vadd.f32 %v6043, %v6398
      %v6400 = vpop.f32.mrf.mxu0
      %6401 = vmatprep.mubr.bf16.mxu0 0
      %6402 = vmatmul.mubr.bf16.gmra.mxu0 %v6205
      %v6403 = vpop.f32.mrf.mxu0
      %v6404 = vadd.f32 %v6045, %v6403
      %v6405 = vpop.f32.mrf.mxu0
      %v6406 = vpop.f32.mrf.mxu0
      %v6407 = vadd.f32 %v6047, %v6406
      %v6408 = vpop.f32.mrf.mxu0
      %6409 = vmatprep.mubr.bf16.mxu0 0
      %6410 = vmatmul.mubr.bf16.gmra.mxu0 %v6207
      %v6411 = vpop.f32.mrf.mxu0
      %v6412 = vadd.f32 %v6049, %v6411
      %v6413 = vpop.f32.mrf.mxu0
      %v6414 = vpop.f32.mrf.mxu0
      %v6415 = vadd.f32 %v6051, %v6414
      %v6416 = vpop.f32.mrf.mxu0
      %6417 = vmatprep.mubr.bf16.mxu0 0
      %6418 = vmatmul.mubr.bf16.gmra.mxu0 %v6209
      %v6419 = vpop.f32.mrf.mxu0
      %v6420 = vadd.f32 %v6053, %v6419
      %v6421 = vpop.f32.mrf.mxu0
      %v6422 = vpop.f32.mrf.mxu0
      %v6423 = vadd.f32 %v6055, %v6422
      %v6424 = vpop.f32.mrf.mxu0
      %6425 = vmatprep.mubr.bf16.mxu0 0
      %6426 = vmatmul.mubr.bf16.gmra.mxu0 %v6211
      %v6427 = vpop.f32.mrf.mxu0
      %v6428 = vadd.f32 %v6057, %v6427
      %v6429 = vpop.f32.mrf.mxu0
      %v6430 = vpop.f32.mrf.mxu0
      %v6431 = vadd.f32 %v6059, %v6430
      %v6432 = vpop.f32.mrf.mxu0
      %6433 = vmatprep.mubr.bf16.mxu0 0
      %6434 = vmatmul.mubr.bf16.gmra.mxu0 %v6213
      %v6435 = vpop.f32.mrf.mxu0
      %v6436 = vadd.f32 %v6061, %v6435
      %v6437 = vpop.f32.mrf.mxu0
      %v6438 = vpop.f32.mrf.mxu0
      %v6439 = vadd.f32 %v6063, %v6438
      %v6440 = vpop.f32.mrf.mxu0
      %6441 = vmatprep.mubr.bf16.mxu0 0
      %6442 = vmatmul.mubr.bf16.gmra.mxu0 %v6215
      %v6443 = vpop.f32.mrf.mxu0
      %v6444 = vadd.f32 %v6065, %v6443
      %v6445 = vpop.f32.mrf.mxu0
      %v6446 = vpop.f32.mrf.mxu0
      %v6447 = vadd.f32 %v6067, %v6446
      %v6448 = vpop.f32.mrf.mxu0
      %6449 = vmatprep.mubr.bf16.mxu0 0
      %6450 = vmatmul.mubr.bf16.gmra.mxu0 %v6217
      %v6451 = vpop.f32.mrf.mxu0
      %v6452 = vadd.f32 %v6069, %v6451
      %v6453 = vpop.f32.mrf.mxu0
      %v6454 = vpop.f32.mrf.mxu0
      %v6455 = vadd.f32 %v6071, %v6454
      %v6456 = vpop.f32.mrf.mxu0
      %6457 = vmatprep.mubr.bf16.mxu0 0
      %6458 = vmatmul.mubr.bf16.gmra.mxu0 %v6219
      %v6459 = vpop.f32.mrf.mxu0
      %v6460 = vadd.f32 %v6073, %v6459
      %v6461 = vpop.f32.mrf.mxu0
      %v6462 = vpop.f32.mrf.mxu0
      %v6463 = vadd.f32 %v6075, %v6462
      %v6464 = vpop.f32.mrf.mxu0
      %6465 = vmatprep.mubr.bf16.mxu0 0
      %6466 = vmatmul.mubr.bf16.gmra.mxu0 %v6221
      %v6467 = vpop.f32.mrf.mxu0
      %v6468 = vadd.f32 %v6077, %v6467
      %v6469 = vpop.f32.mrf.mxu0
      %v6470 = vpop.f32.mrf.mxu0
      %v6471 = vadd.f32 %v6079, %v6470
      %v6472 = vpop.f32.mrf.mxu0
      %6473 = vmatprep.mubr.bf16.mxu0 0
      %6474 = vmatmul.mubr.bf16.gmra.mxu0 %v6223
      %v6475 = vpop.f32.mrf.mxu0
      %v6476 = vadd.f32 %v6081, %v6475
      %v6477 = vpop.f32.mrf.mxu0
      %v6478 = vpop.f32.mrf.mxu0
      %v6479 = vadd.f32 %v6083, %v6478
      %v6480 = vpop.f32.mrf.mxu0
      %6481 = vmatprep.mubr.bf16.mxu0 0
      %6482 = vmatmul.mubr.bf16.gmra.mxu0 %v6225
      %v6483 = vpop.f32.mrf.mxu0
      %v6484 = vadd.f32 %v6085, %v6483
      %v6485 = vpop.f32.mrf.mxu0
      %v6486 = vpop.f32.mrf.mxu0
      %v6487 = vadd.f32 %v6087, %v6486
      %v6488 = vpop.f32.mrf.mxu0
      %6489 = vmatprep.mubr.bf16.mxu0 0
      %6490 = vmatmul.mubr.bf16.gmra.mxu0 %v6227
      %v6491 = vpop.f32.mrf.mxu0
      %v6492 = vadd.f32 %v6089, %v6491
      %v6493 = vpop.f32.mrf.mxu0
      %v6494 = vpop.f32.mrf.mxu0
      %v6495 = vadd.f32 %v6091, %v6494
      %v6496 = vpop.f32.mrf.mxu0
      %6497 = vmatprep.mubr.bf16.mxu0 0
      %6498 = vmatmul.mubr.bf16.gmra.mxu0 %v6229
      %v6499 = vpop.f32.mrf.mxu0
      %v6500 = vadd.f32 %v6093, %v6499
      %v6501 = vpop.f32.mrf.mxu0
      %v6502 = vpop.f32.mrf.mxu0
      %v6503 = vadd.f32 %v6095, %v6502
      %v6504 = vpop.f32.mrf.mxu0
      %6505 = vmatprep.mubr.bf16.mxu0 0
      %6506 = vmatmul.mubr.bf16.gmra.mxu0 %v6231
      %v6507 = vpop.f32.mrf.mxu0
      %v6508 = vadd.f32 %v6097, %v6507
      %v6509 = vpop.f32.mrf.mxu0
      %v6510 = vpop.f32.mrf.mxu0
      %v6511 = vadd.f32 %v6099, %v6510
      %v6512 = vpop.f32.mrf.mxu0
      %6513 = vmatprep.mubr.bf16.mxu0 0
      %6514 = vmatmul.mubr.bf16.gmra.mxu0 %v6233
      %v6515 = vpop.f32.mrf.mxu0
      %v6516 = vadd.f32 %v6101, %v6515
      %v6517 = vpop.f32.mrf.mxu0
      %v6518 = vpop.f32.mrf.mxu0
      %v6519 = vadd.f32 %v6103, %v6518
      %v6520 = vpop.f32.mrf.mxu0
      %6521 = vmatprep.mubr.bf16.mxu0 0
      %6522 = vmatmul.mubr.bf16.gmra.mxu0 %v6235
      %v6523 = vpop.f32.mrf.mxu0
      %v6524 = vadd.f32 %v6105, %v6523
      %v6525 = vpop.f32.mrf.mxu0
      %v6526 = vpop.f32.mrf.mxu0
      %v6527 = vadd.f32 %v6107, %v6526
      %v6528 = vpop.f32.mrf.mxu0
      %6529 = vdwg.mxu0
      %v6530 = vld [vmem:[%s4] sm:$0x1]
      %v6532 = vlaneseq
      %v6533 = vshrl.u32 %v6532, 7
      %v6534 = vsub.s32 0, %v6533
      %v6535 = vrot.slane %v6530, %v6534
      %v6537 = vadd.f32 %v6276, %v6535
      %v6538 = vadd.f32 %v6279, %v6535
      %v6539 = vadd.f32 %v6284, %v6535
      %v6540 = vadd.f32 %v6287, %v6535
      %v6541 = vadd.f32 %v6292, %v6535
      %v6542 = vadd.f32 %v6295, %v6535
      %v6543 = vadd.f32 %v6300, %v6535
      %v6544 = vadd.f32 %v6303, %v6535
      %v6545 = vadd.f32 %v6308, %v6535
      %v6546 = vadd.f32 %v6311, %v6535
      %v6547 = vadd.f32 %v6316, %v6535
      %v6548 = vadd.f32 %v6319, %v6535
      %v6549 = vadd.f32 %v6324, %v6535
      %v6550 = vadd.f32 %v6327, %v6535
      %v6551 = vadd.f32 %v6332, %v6535
      %v6552 = vadd.f32 %v6335, %v6535
      %v6553 = vadd.f32 %v6340, %v6535
      %v6554 = vadd.f32 %v6343, %v6535
      %v6555 = vadd.f32 %v6348, %v6535
      %v6556 = vadd.f32 %v6351, %v6535
      %v6557 = vadd.f32 %v6356, %v6535
      %v6558 = vadd.f32 %v6359, %v6535
      %v6559 = vadd.f32 %v6364, %v6535
      %v6560 = vadd.f32 %v6367, %v6535
      %v6561 = vadd.f32 %v6372, %v6535
      %v6562 = vadd.f32 %v6375, %v6535
      %v6563 = vadd.f32 %v6380, %v6535
      %v6564 = vadd.f32 %v6383, %v6535
      %v6565 = vadd.f32 %v6388, %v6535
      %v6566 = vadd.f32 %v6391, %v6535
      %v6567 = vadd.f32 %v6396, %v6535
      %v6568 = vadd.f32 %v6399, %v6535
      %v6569 = vadd.f32 %v6404, %v6535
      %v6570 = vadd.f32 %v6407, %v6535
      %v6571 = vadd.f32 %v6412, %v6535
      %v6572 = vadd.f32 %v6415, %v6535
      %v6573 = vadd.f32 %v6420, %v6535
      %v6574 = vadd.f32 %v6423, %v6535
      %v6575 = vadd.f32 %v6428, %v6535
      %v6576 = vadd.f32 %v6431, %v6535
      %v6577 = vadd.f32 %v6436, %v6535
      %v6578 = vadd.f32 %v6439, %v6535
      %v6579 = vadd.f32 %v6444, %v6535
      %v6580 = vadd.f32 %v6447, %v6535
      %v6581 = vadd.f32 %v6452, %v6535
      %v6582 = vadd.f32 %v6455, %v6535
      %v6583 = vadd.f32 %v6460, %v6535
      %v6584 = vadd.f32 %v6463, %v6535
      %v6585 = vadd.f32 %v6468, %v6535
      %v6586 = vadd.f32 %v6471, %v6535
      %v6587 = vadd.f32 %v6476, %v6535
      %v6588 = vadd.f32 %v6479, %v6535
      %v6589 = vadd.f32 %v6484, %v6535
      %v6590 = vadd.f32 %v6487, %v6535
      %v6591 = vadd.f32 %v6492, %v6535
      %v6592 = vadd.f32 %v6495, %v6535
      %v6593 = vadd.f32 %v6500, %v6535
      %v6594 = vadd.f32 %v6503, %v6535
      %v6595 = vadd.f32 %v6508, %v6535
      %v6596 = vadd.f32 %v6511, %v6535
      %v6597 = vadd.f32 %v6516, %v6535
      %v6598 = vadd.f32 %v6519, %v6535
      %v6599 = vadd.f32 %v6524, %v6535
      %v6600 = vadd.f32 %v6527, %v6535
      %v6601 = vmax.f32 %v6537, 0.0
      %v6602 = vmax.f32 %v6538, 0.0
      %v6603 = vmax.f32 %v6539, 0.0
      %v6604 = vmax.f32 %v6540, 0.0
      %v6605 = vmax.f32 %v6541, 0.0
      %v6606 = vmax.f32 %v6542, 0.0
      %v6607 = vmax.f32 %v6543, 0.0
      %v6608 = vmax.f32 %v6544, 0.0
      %v6609 = vmax.f32 %v6545, 0.0
      %v6610 = vmax.f32 %v6546, 0.0
      %v6611 = vmax.f32 %v6547, 0.0
      %v6612 = vmax.f32 %v6548, 0.0
      %v6613 = vmax.f32 %v6549, 0.0
      %v6614 = vmax.f32 %v6550, 0.0
      %v6615 = vmax.f32 %v6551, 0.0
      %v6616 = vmax.f32 %v6552, 0.0
      %v6617 = vmax.f32 %v6553, 0.0
      %v6618 = vmax.f32 %v6554, 0.0
      %v6619 = vmax.f32 %v6555, 0.0
      %v6620 = vmax.f32 %v6556, 0.0
      %v6621 = vmax.f32 %v6557, 0.0
      %v6622 = vmax.f32 %v6558, 0.0
      %v6623 = vmax.f32 %v6559, 0.0
      %v6624 = vmax.f32 %v6560, 0.0
      %v6625 = vmax.f32 %v6561, 0.0
      %v6626 = vmax.f32 %v6562, 0.0
      %v6627 = vmax.f32 %v6563, 0.0
      %v6628 = vmax.f32 %v6564, 0.0
      %v6629 = vmax.f32 %v6565, 0.0
      %v6630 = vmax.f32 %v6566, 0.0
      %v6631 = vmax.f32 %v6567, 0.0
      %v6632 = vmax.f32 %v6568, 0.0
      %v6633 = vmax.f32 %v6569, 0.0
      %v6634 = vmax.f32 %v6570, 0.0
      %v6635 = vmax.f32 %v6571, 0.0
      %v6636 = vmax.f32 %v6572, 0.0
      %v6637 = vmax.f32 %v6573, 0.0
      %v6638 = vmax.f32 %v6574, 0.0
      %v6639 = vmax.f32 %v6575, 0.0
      %v6640 = vmax.f32 %v6576, 0.0
      %v6641 = vmax.f32 %v6577, 0.0
      %v6642 = vmax.f32 %v6578, 0.0
      %v6643 = vmax.f32 %v6579, 0.0
      %v6644 = vmax.f32 %v6580, 0.0
      %v6645 = vmax.f32 %v6581, 0.0
      %v6646 = vmax.f32 %v6582, 0.0
      %v6647 = vmax.f32 %v6583, 0.0
      %v6648 = vmax.f32 %v6584, 0.0
      %v6649 = vmax.f32 %v6585, 0.0
      %v6650 = vmax.f32 %v6586, 0.0
      %v6651 = vmax.f32 %v6587, 0.0
      %v6652 = vmax.f32 %v6588, 0.0
      %v6653 = vmax.f32 %v6589, 0.0
      %v6654 = vmax.f32 %v6590, 0.0
      %v6655 = vmax.f32 %v6591, 0.0
      %v6656 = vmax.f32 %v6592, 0.0
      %v6657 = vmax.f32 %v6593, 0.0
      %v6658 = vmax.f32 %v6594, 0.0
      %v6659 = vmax.f32 %v6595, 0.0
      %v6660 = vmax.f32 %v6596, 0.0
      %v6661 = vmax.f32 %v6597, 0.0
      %v6662 = vmax.f32 %v6598, 0.0
      %v6663 = vmax.f32 %v6599, 0.0
      %v6664 = vmax.f32 %v6600, 0.0
      %v6665 = vadd.f32 %v6601, %v6605
      %v6666 = vadd.f32 %v6602, %v6606
      %v6667 = vadd.f32 %v6603, %v6607
      %v6668 = vadd.f32 %v6604, %v6608
      %v6669 = vadd.f32 %v6609, %v6613
      %v6670 = vadd.f32 %v6610, %v6614
      %v6671 = vadd.f32 %v6611, %v6615
      %v6672 = vadd.f32 %v6612, %v6616
      %v6673 = vadd.f32 %v6617, %v6621
      %v6674 = vadd.f32 %v6618, %v6622
      %v6675 = vadd.f32 %v6619, %v6623
      %v6676 = vadd.f32 %v6620, %v6624
      %v6677 = vadd.f32 %v6625, %v6629
      %v6678 = vadd.f32 %v6626, %v6630
      %v6679 = vadd.f32 %v6627, %v6631
      %v6680 = vadd.f32 %v6628, %v6632
      %v6681 = vadd.f32 %v6633, %v6637
      %v6682 = vadd.f32 %v6634, %v6638
      %v6683 = vadd.f32 %v6635, %v6639
      %v6684 = vadd.f32 %v6636, %v6640
      %v6685 = vadd.f32 %v6641, %v6645
      %v6686 = vadd.f32 %v6642, %v6646
      %v6687 = vadd.f32 %v6643, %v6647
      %v6688 = vadd.f32 %v6644, %v6648
      %v6689 = vadd.f32 %v6649, %v6653
      %v6690 = vadd.f32 %v6650, %v6654
      %v6691 = vadd.f32 %v6651, %v6655
      %v6692 = vadd.f32 %v6652, %v6656
      %v6693 = vadd.f32 %v6657, %v6661
      %v6694 = vadd.f32 %v6658, %v6662
      %v6695 = vadd.f32 %v6659, %v6663
      %v6696 = vadd.f32 %v6660, %v6664
      %6697 = vst.msk [vmem:[#allocation3] sm:$0xff] %vm1761, %v6665
      %6698 = vst.msk [vmem:[#allocation3 + $0x8] sm:$0xff] %vm1761, %v6666
      %6699 = vst.msk [vmem:[#allocation3 + $0x10] sm:$0xff] %vm1761, %v6667
      %6700 = vst.msk [vmem:[#allocation3 + $0x18] sm:$0xff] %vm1761, %v6668
      %6701 = vst.msk [vmem:[#allocation3 + $0x20] sm:$0xff] %vm1761, %v6669
      %6702 = vst.msk [vmem:[#allocation3 + $0x28] sm:$0xff] %vm1761, %v6670
      %6703 = vst.msk [vmem:[#allocation3 + $0x30] sm:$0xff] %vm1761, %v6671
      %6704 = vst.msk [vmem:[#allocation3 + $0x38] sm:$0xff] %vm1761, %v6672
      %6705 = vst.msk [vmem:[#allocation3 + $0x40] sm:$0xff] %vm1761, %v6673
      %6706 = vst.msk [vmem:[#allocation3 + $0x48] sm:$0xff] %vm1761, %v6674
      %6707 = vst.msk [vmem:[#allocation3 + $0x50] sm:$0xff] %vm1761, %v6675
      %6708 = vst.msk [vmem:[#allocation3 + $0x58] sm:$0xff] %vm1761, %v6676
      %6709 = vst.msk [vmem:[#allocation3 + $0x60] sm:$0xff] %vm1761, %v6677
      %6710 = vst.msk [vmem:[#allocation3 + $0x68] sm:$0xff] %vm1761, %v6678
      %6711 = vst.msk [vmem:[#allocation3 + $0x70] sm:$0xff] %vm1761, %v6679
      %6712 = vst.msk [vmem:[#allocation3 + $0x78] sm:$0xff] %vm1761, %v6680
      %6713 = vst.msk [vmem:[#allocation3 + $0x80] sm:$0xff] %vm1761, %v6681
      %6714 = vst.msk [vmem:[#allocation3 + $0x88] sm:$0xff] %vm1761, %v6682
      %6715 = vst.msk [vmem:[#allocation3 + $0x90] sm:$0xff] %vm1761, %v6683
      %6716 = vst.msk [vmem:[#allocation3 + $0x98] sm:$0xff] %vm1761, %v6684
      %6717 = vst.msk [vmem:[#allocation3 + $0xa0] sm:$0xff] %vm1761, %v6685
      %6718 = vst.msk [vmem:[#allocation3 + $0xa8] sm:$0xff] %vm1761, %v6686
      %6719 = vst.msk [vmem:[#allocation3 + $0xb0] sm:$0xff] %vm1761, %v6687
      %6720 = vst.msk [vmem:[#allocation3 + $0xb8] sm:$0xff] %vm1761, %v6688
      %6721 = vst.msk [vmem:[#allocation3 + $0xc0] sm:$0xff] %vm1761, %v6689
      %6722 = vst.msk [vmem:[#allocation3 + $0xc8] sm:$0xff] %vm1761, %v6690
      %6723 = vst.msk [vmem:[#allocation3 + $0xd0] sm:$0xff] %vm1761, %v6691
      %6724 = vst.msk [vmem:[#allocation3 + $0xd8] sm:$0xff] %vm1761, %v6692
      %6725 = vst.msk [vmem:[#allocation3 + $0xe0] sm:$0xff] %vm1761, %v6693
      %6726 = vst.msk [vmem:[#allocation3 + $0xe8] sm:$0xff] %vm1761, %v6694
      %6727 = vst.msk [vmem:[#allocation3 + $0xf0] sm:$0xff] %vm1761, %v6695
      %6728 = vst.msk [vmem:[#allocation3 + $0xf8] sm:$0xff] %vm1761, %v6696
      %v6729 = vld [vmem:[#allocation3] ss:$2 sm:$0xff]
      %s6730 = scalar_lea.vmem [#allocation3], 16
      %v6731 = vld [vmem:[%s6730] ss:$2 sm:$0xff]
      %s6732 = scalar_lea.vmem [#allocation3], 32
      %v6733 = vld [vmem:[%s6732] ss:$2 sm:$0xff]
      %s6734 = scalar_lea.vmem [#allocation3], 48
      %v6735 = vld [vmem:[%s6734] ss:$2 sm:$0xff]
      %s6736 = scalar_lea.vmem [#allocation3], 64
      %v6737 = vld [vmem:[%s6736] ss:$2 sm:$0xff]
      %s6738 = scalar_lea.vmem [#allocation3], 80
      %v6739 = vld [vmem:[%s6738] ss:$2 sm:$0xff]
      %s6740 = scalar_lea.vmem [#allocation3], 96
      %v6741 = vld [vmem:[%s6740] ss:$2 sm:$0xff]
      %s6742 = scalar_lea.vmem [#allocation3], 112
      %v6743 = vld [vmem:[%s6742] ss:$2 sm:$0xff]
      %s6744 = scalar_lea.vmem [#allocation3], 128
      %v6745 = vld [vmem:[%s6744] ss:$2 sm:$0xff]
      %s6746 = scalar_lea.vmem [#allocation3], 144
      %v6747 = vld [vmem:[%s6746] ss:$2 sm:$0xff]
      %s6748 = scalar_lea.vmem [#allocation3], 160
      %v6749 = vld [vmem:[%s6748] ss:$2 sm:$0xff]
      %s6750 = scalar_lea.vmem [#allocation3], 176
      %v6751 = vld [vmem:[%s6750] ss:$2 sm:$0xff]
      %s6752 = scalar_lea.vmem [#allocation3], 192
      %v6753 = vld [vmem:[%s6752] ss:$2 sm:$0xff]
      %s6754 = scalar_lea.vmem [#allocation3], 208
      %v6755 = vld [vmem:[%s6754] ss:$2 sm:$0xff]
      %s6756 = scalar_lea.vmem [#allocation3], 224
      %v6757 = vld [vmem:[%s6756] ss:$2 sm:$0xff]
      %s6758 = scalar_lea.vmem [#allocation3], 240
      %v6759 = vld [vmem:[%s6758] ss:$2 sm:$0xff]
      %s6760 = scalar_lea.vmem [#allocation3], 1
      %v6761 = vld [vmem:[%s6760] ss:$2 sm:$0xff]
      %s6762 = scalar_lea.vmem [#allocation3], 17
      %v6763 = vld [vmem:[%s6762] ss:$2 sm:$0xff]
      %s6764 = scalar_lea.vmem [#allocation3], 33
      %v6765 = vld [vmem:[%s6764] ss:$2 sm:$0xff]
      %s6766 = scalar_lea.vmem [#allocation3], 49
      %v6767 = vld [vmem:[%s6766] ss:$2 sm:$0xff]
      %s6768 = scalar_lea.vmem [#allocation3], 65
      %v6769 = vld [vmem:[%s6768] ss:$2 sm:$0xff]
      %s6770 = scalar_lea.vmem [#allocation3], 81
      %v6771 = vld [vmem:[%s6770] ss:$2 sm:$0xff]
      %s6772 = scalar_lea.vmem [#allocation3], 97
      %v6773 = vld [vmem:[%s6772] ss:$2 sm:$0xff]
      %s6774 = scalar_lea.vmem [#allocation3], 113
      %v6775 = vld [vmem:[%s6774] ss:$2 sm:$0xff]
      %s6776 = scalar_lea.vmem [#allocation3], 129
      %v6777 = vld [vmem:[%s6776] ss:$2 sm:$0xff]
      %s6778 = scalar_lea.vmem [#allocation3], 145
      %v6779 = vld [vmem:[%s6778] ss:$2 sm:$0xff]
      %s6780 = scalar_lea.vmem [#allocation3], 161
      %v6781 = vld [vmem:[%s6780] ss:$2 sm:$0xff]
      %s6782 = scalar_lea.vmem [#allocation3], 177
      %v6783 = vld [vmem:[%s6782] ss:$2 sm:$0xff]
      %s6784 = scalar_lea.vmem [#allocation3], 193
      %v6785 = vld [vmem:[%s6784] ss:$2 sm:$0xff]
      %s6786 = scalar_lea.vmem [#allocation3], 209
      %v6787 = vld [vmem:[%s6786] ss:$2 sm:$0xff]
      %s6788 = scalar_lea.vmem [#allocation3], 225
      %v6789 = vld [vmem:[%s6788] ss:$2 sm:$0xff]
      %s6790 = scalar_lea.vmem [#allocation3], 241
      %v6791 = vld [vmem:[%s6790] ss:$2 sm:$0xff]
      %v6792 = vadd.f32 %v6729, %v6761
      %v6793 = vadd.f32 %v6731, %v6763
      %v6794 = vadd.f32 %v6733, %v6765
      %v6795 = vadd.f32 %v6735, %v6767
      %v6796 = vadd.f32 %v6737, %v6769
      %v6797 = vadd.f32 %v6739, %v6771
      %v6798 = vadd.f32 %v6741, %v6773
      %v6799 = vadd.f32 %v6743, %v6775
      %v6800 = vadd.f32 %v6745, %v6777
      %v6801 = vadd.f32 %v6747, %v6779
      %v6802 = vadd.f32 %v6749, %v6781
      %v6803 = vadd.f32 %v6751, %v6783
      %v6804 = vadd.f32 %v6753, %v6785
      %v6805 = vadd.f32 %v6755, %v6787
      %v6806 = vadd.f32 %v6757, %v6789
      %v6807 = vadd.f32 %v6759, %v6791
      %v6808 = vmul.f32 %v6792, 0.25
      %v6809 = vmul.f32 %v6793, 0.25
      %v6810 = vmul.f32 %v6794, 0.25
      %v6811 = vmul.f32 %v6795, 0.25
      %v6812 = vmul.f32 %v6796, 0.25
      %v6813 = vmul.f32 %v6797, 0.25
      %v6814 = vmul.f32 %v6798, 0.25
      %v6815 = vmul.f32 %v6799, 0.25
      %v6816 = vmul.f32 %v6800, 0.25
      %v6817 = vmul.f32 %v6801, 0.25
      %v6818 = vmul.f32 %v6802, 0.25
      %v6819 = vmul.f32 %v6803, 0.25
      %v6820 = vmul.f32 %v6804, 0.25
      %v6821 = vmul.f32 %v6805, 0.25
      %v6822 = vmul.f32 %v6806, 0.25
      %v6823 = vmul.f32 %v6807, 0.25
      %v6824 = vcombine.low %v6808, %v6812
      %v6825 = vcombine.high %v6808, %v6812
      %v6827 = vunpack.c.l.s4 1983009808
      %v6828 = vunpack.c.0.s8 %v6827
      %v6829 = vlaneseq
      %v6830 = vshrl.u32 %v6829, 7
      %v6831 = vsub.s32 %v6828, %v6830
      %v6832 = vrot.slane %v6824, %v6831
      %v6834 = vunpack.c.l.s4 1983009808
      %v6835 = vunpack.c.0.s8 %v6834
      %v6836 = vlaneseq
      %v6837 = vshrl.u32 %v6836, 7
      %v6838 = vsub.s32 %v6835, %v6837
      %v6839 = vrot.slane %v6825, %v6838
      %v6840 = vcombine.low %v6810, %v6814
      %v6841 = vcombine.high %v6810, %v6814
      %v6843 = vunpack.c.l.s4 1983009808
      %v6844 = vunpack.c.0.s8 %v6843
      %v6845 = vlaneseq
      %v6846 = vshrl.u32 %v6845, 7
      %v6847 = vsub.s32 %v6844, %v6846
      %v6848 = vrot.slane %v6840, %v6847
      %v6850 = vunpack.c.l.s4 1983009808
      %v6851 = vunpack.c.0.s8 %v6850
      %v6852 = vlaneseq
      %v6853 = vshrl.u32 %v6852, 7
      %v6854 = vsub.s32 %v6851, %v6853
      %v6855 = vrot.slane %v6841, %v6854
      %v6856 = vcombine.low %v6816, %v6820
      %v6857 = vcombine.high %v6816, %v6820
      %v6859 = vunpack.c.l.s4 1983009808
      %v6860 = vunpack.c.0.s8 %v6859
      %v6861 = vlaneseq
      %v6862 = vshrl.u32 %v6861, 7
      %v6863 = vsub.s32 %v6860, %v6862
      %v6864 = vrot.slane %v6856, %v6863
      %v6866 = vunpack.c.l.s4 1983009808
      %v6867 = vunpack.c.0.s8 %v6866
      %v6868 = vlaneseq
      %v6869 = vshrl.u32 %v6868, 7
      %v6870 = vsub.s32 %v6867, %v6869
      %v6871 = vrot.slane %v6857, %v6870
      %v6872 = vcombine.low %v6818, %v6822
      %v6873 = vcombine.high %v6818, %v6822
      %v6875 = vunpack.c.l.s4 1983009808
      %v6876 = vunpack.c.0.s8 %v6875
      %v6877 = vlaneseq
      %v6878 = vshrl.u32 %v6877, 7
      %v6879 = vsub.s32 %v6876, %v6878
      %v6880 = vrot.slane %v6872, %v6879
      %v6882 = vunpack.c.l.s4 1983009808
      %v6883 = vunpack.c.0.s8 %v6882
      %v6884 = vlaneseq
      %v6885 = vshrl.u32 %v6884, 7
      %v6886 = vsub.s32 %v6883, %v6885
      %v6887 = vrot.slane %v6873, %v6886
      %v6888 = vcombine.low %v6832, %v6848
      %v6889 = vcombine.high %v6832, %v6848
      %v6891 = vunpack.c.l.s4 1934713408
      %v6892 = vunpack.c.0.s8 %v6891
      %v6893 = vlaneseq
      %v6894 = vshrl.u32 %v6893, 7
      %v6895 = vsub.s32 %v6892, %v6894
      %v6896 = vrot.slane %v6888, %v6895
      %v6898 = vunpack.c.l.s4 1934713408
      %v6899 = vunpack.c.0.s8 %v6898
      %v6900 = vlaneseq
      %v6901 = vshrl.u32 %v6900, 7
      %v6902 = vsub.s32 %v6899, %v6901
      %v6903 = vrot.slane %v6889, %v6902
      %v6904 = vcombine.low %v6839, %v6855
      %v6905 = vcombine.high %v6839, %v6855
      %v6907 = vunpack.c.l.s4 1934713408
      %v6908 = vunpack.c.0.s8 %v6907
      %v6909 = vlaneseq
      %v6910 = vshrl.u32 %v6909, 7
      %v6911 = vsub.s32 %v6908, %v6910
      %v6912 = vrot.slane %v6904, %v6911
      %v6914 = vunpack.c.l.s4 1934713408
      %v6915 = vunpack.c.0.s8 %v6914
      %v6916 = vlaneseq
      %v6917 = vshrl.u32 %v6916, 7
      %v6918 = vsub.s32 %v6915, %v6917
      %v6919 = vrot.slane %v6905, %v6918
      %v6920 = vcombine.low %v6864, %v6880
      %v6921 = vcombine.high %v6864, %v6880
      %v6923 = vunpack.c.l.s4 1934713408
      %v6924 = vunpack.c.0.s8 %v6923
      %v6925 = vlaneseq
      %v6926 = vshrl.u32 %v6925, 7
      %v6927 = vsub.s32 %v6924, %v6926
      %v6928 = vrot.slane %v6920, %v6927
      %v6930 = vunpack.c.l.s4 1934713408
      %v6931 = vunpack.c.0.s8 %v6930
      %v6932 = vlaneseq
      %v6933 = vshrl.u32 %v6932, 7
      %v6934 = vsub.s32 %v6931, %v6933
      %v6935 = vrot.slane %v6921, %v6934
      %v6936 = vcombine.low %v6871, %v6887
      %v6937 = vcombine.high %v6871, %v6887
      %v6939 = vunpack.c.l.s4 1934713408
      %v6940 = vunpack.c.0.s8 %v6939
      %v6941 = vlaneseq
      %v6942 = vshrl.u32 %v6941, 7
      %v6943 = vsub.s32 %v6940, %v6942
      %v6944 = vrot.slane %v6936, %v6943
      %v6946 = vunpack.c.l.s4 1934713408
      %v6947 = vunpack.c.0.s8 %v6946
      %v6948 = vlaneseq
      %v6949 = vshrl.u32 %v6948, 7
      %v6950 = vsub.s32 %v6947, %v6949
      %v6951 = vrot.slane %v6937, %v6950
      %v6952 = vcombine.low %v6896, %v6928
      %v6953 = vcombine.high %v6896, %v6928
      %v6954 = vcombine.low %v6903, %v6935
      %v6955 = vcombine.high %v6903, %v6935
      %v6956 = vcombine.low %v6912, %v6944
      %v6957 = vcombine.high %v6912, %v6944
      %v6958 = vcombine.low %v6919, %v6951
      %v6959 = vcombine.high %v6919, %v6951
      %v6960 = vcombine.low %v6809, %v6813
      %v6961 = vcombine.high %v6809, %v6813
      %v6963 = vunpack.c.l.s4 1983009808
      %v6964 = vunpack.c.0.s8 %v6963
      %v6965 = vlaneseq
      %v6966 = vshrl.u32 %v6965, 7
      %v6967 = vsub.s32 %v6964, %v6966
      %v6968 = vrot.slane %v6960, %v6967
      %v6970 = vunpack.c.l.s4 1983009808
      %v6971 = vunpack.c.0.s8 %v6970
      %v6972 = vlaneseq
      %v6973 = vshrl.u32 %v6972, 7
      %v6974 = vsub.s32 %v6971, %v6973
      %v6975 = vrot.slane %v6961, %v6974
      %v6976 = vcombine.low %v6811, %v6815
      %v6977 = vcombine.high %v6811, %v6815
      %v6979 = vunpack.c.l.s4 1983009808
      %v6980 = vunpack.c.0.s8 %v6979
      %v6981 = vlaneseq
      %v6982 = vshrl.u32 %v6981, 7
      %v6983 = vsub.s32 %v6980, %v6982
      %v6984 = vrot.slane %v6976, %v6983
      %v6986 = vunpack.c.l.s4 1983009808
      %v6987 = vunpack.c.0.s8 %v6986
      %v6988 = vlaneseq
      %v6989 = vshrl.u32 %v6988, 7
      %v6990 = vsub.s32 %v6987, %v6989
      %v6991 = vrot.slane %v6977, %v6990
      %v6992 = vcombine.low %v6817, %v6821
      %v6993 = vcombine.high %v6817, %v6821
      %v6995 = vunpack.c.l.s4 1983009808
      %v6996 = vunpack.c.0.s8 %v6995
      %v6997 = vlaneseq
      %v6998 = vshrl.u32 %v6997, 7
      %v6999 = vsub.s32 %v6996, %v6998
      %v7000 = vrot.slane %v6992, %v6999
      %v7002 = vunpack.c.l.s4 1983009808
      %v7003 = vunpack.c.0.s8 %v7002
      %v7004 = vlaneseq
      %v7005 = vshrl.u32 %v7004, 7
      %v7006 = vsub.s32 %v7003, %v7005
      %v7007 = vrot.slane %v6993, %v7006
      %v7008 = vcombine.low %v6819, %v6823
      %v7009 = vcombine.high %v6819, %v6823
      %v7011 = vunpack.c.l.s4 1983009808
      %v7012 = vunpack.c.0.s8 %v7011
      %v7013 = vlaneseq
      %v7014 = vshrl.u32 %v7013, 7
      %v7015 = vsub.s32 %v7012, %v7014
      %v7016 = vrot.slane %v7008, %v7015
      %v7018 = vunpack.c.l.s4 1983009808
      %v7019 = vunpack.c.0.s8 %v7018
      %v7020 = vlaneseq
      %v7021 = vshrl.u32 %v7020, 7
      %v7022 = vsub.s32 %v7019, %v7021
      %v7023 = vrot.slane %v7009, %v7022
      %v7024 = vcombine.low %v6968, %v6984
      %v7025 = vcombine.high %v6968, %v6984
      %v7027 = vunpack.c.l.s4 1934713408
      %v7028 = vunpack.c.0.s8 %v7027
      %v7029 = vlaneseq
      %v7030 = vshrl.u32 %v7029, 7
      %v7031 = vsub.s32 %v7028, %v7030
      %v7032 = vrot.slane %v7024, %v7031
      %v7034 = vunpack.c.l.s4 1934713408
      %v7035 = vunpack.c.0.s8 %v7034
      %v7036 = vlaneseq
      %v7037 = vshrl.u32 %v7036, 7
      %v7038 = vsub.s32 %v7035, %v7037
      %v7039 = vrot.slane %v7025, %v7038
      %v7040 = vcombine.low %v6975, %v6991
      %v7041 = vcombine.high %v6975, %v6991
      %v7043 = vunpack.c.l.s4 1934713408
      %v7044 = vunpack.c.0.s8 %v7043
      %v7045 = vlaneseq
      %v7046 = vshrl.u32 %v7045, 7
      %v7047 = vsub.s32 %v7044, %v7046
      %v7048 = vrot.slane %v7040, %v7047
      %v7050 = vunpack.c.l.s4 1934713408
      %v7051 = vunpack.c.0.s8 %v7050
      %v7052 = vlaneseq
      %v7053 = vshrl.u32 %v7052, 7
      %v7054 = vsub.s32 %v7051, %v7053
      %v7055 = vrot.slane %v7041, %v7054
      %v7056 = vcombine.low %v7000, %v7016
      %v7057 = vcombine.high %v7000, %v7016
      %v7059 = vunpack.c.l.s4 1934713408
      %v7060 = vunpack.c.0.s8 %v7059
      %v7061 = vlaneseq
      %v7062 = vshrl.u32 %v7061, 7
      %v7063 = vsub.s32 %v7060, %v7062
      %v7064 = vrot.slane %v7056, %v7063
      %v7066 = vunpack.c.l.s4 1934713408
      %v7067 = vunpack.c.0.s8 %v7066
      %v7068 = vlaneseq
      %v7069 = vshrl.u32 %v7068, 7
      %v7070 = vsub.s32 %v7067, %v7069
      %v7071 = vrot.slane %v7057, %v7070
      %v7072 = vcombine.low %v7007, %v7023
      %v7073 = vcombine.high %v7007, %v7023
      %v7075 = vunpack.c.l.s4 1934713408
      %v7076 = vunpack.c.0.s8 %v7075
      %v7077 = vlaneseq
      %v7078 = vshrl.u32 %v7077, 7
      %v7079 = vsub.s32 %v7076, %v7078
      %v7080 = vrot.slane %v7072, %v7079
      %v7082 = vunpack.c.l.s4 1934713408
      %v7083 = vunpack.c.0.s8 %v7082
      %v7084 = vlaneseq
      %v7085 = vshrl.u32 %v7084, 7
      %v7086 = vsub.s32 %v7083, %v7085
      %v7087 = vrot.slane %v7073, %v7086
      %v7088 = vcombine.low %v7032, %v7064
      %v7089 = vcombine.high %v7032, %v7064
      %v7090 = vcombine.low %v7039, %v7071
      %v7091 = vcombine.high %v7039, %v7071
      %v7092 = vcombine.low %v7048, %v7080
      %v7093 = vcombine.high %v7048, %v7080
      %v7094 = vcombine.low %v7055, %v7087
      %v7095 = vcombine.high %v7055, %v7087
      %7097 = vrot.lane.b32.xlu0 %v6953, 8
      %v7098 = vpop.permute.xlu0 %7097
      %7101 = vrot.lane.b32.xlu0 %v6954, 16
      %v7102 = vpop.permute.xlu0 %7101
      %7105 = vrot.lane.b32.xlu0 %v6955, 24
      %v7106 = vpop.permute.xlu0 %7105
      %7109 = vrot.lane.b32.xlu0 %v6956, 32
      %v7110 = vpop.permute.xlu0 %7109
      %7113 = vrot.lane.b32.xlu0 %v6957, 40
      %v7114 = vpop.permute.xlu0 %7113
      %7117 = vrot.lane.b32.xlu0 %v6958, 48
      %v7118 = vpop.permute.xlu0 %7117
      %7121 = vrot.lane.b32.xlu0 %v6959, 56
      %v7122 = vpop.permute.xlu0 %7121
      %7125 = vrot.lane.b32.xlu0 %v7088, 64
      %v7126 = vpop.permute.xlu0 %7125
      %7129 = vrot.lane.b32.xlu0 %v7089, 72
      %v7130 = vpop.permute.xlu0 %7129
      %7133 = vrot.lane.b32.xlu0 %v7090, 80
      %v7134 = vpop.permute.xlu0 %7133
      %7137 = vrot.lane.b32.xlu0 %v7091, 88
      %v7138 = vpop.permute.xlu0 %7137
      %7141 = vrot.lane.b32.xlu0 %v7092, 96
      %v7142 = vpop.permute.xlu0 %7141
      %7145 = vrot.lane.b32.xlu0 %v7093, 104
      %v7146 = vpop.permute.xlu0 %7145
      %7149 = vrot.lane.b32.xlu0 %v7094, 112
      %v7150 = vpop.permute.xlu0 %7149
      %7153 = vrot.lane.b32.xlu0 %v7095, 120
      %v7154 = vpop.permute.xlu0 %7153
      %v7156 = vsel %vm1761, %v6952, %v7098
      %v7157 = vsel %vm1907, %v7156, %v7102
      %v7158 = vsel %vm2053, %v7157, %v7106
      %v7159 = vsel %vm2199, %v7158, %v7110
      %v7160 = vsel %vm5620, %v7159, %v7114
      %v7161 = vsel %vm5685, %v7160, %v7118
      %v7162 = vsel %vm5750, %v7161, %v7122
      %v7163 = vsel %vm5815, %v7162, %v7126
      %v7164 = vsel %vm6172, %v7163, %v7130
      %vm7165 = vcmask 654336
      %v7166 = vsel %vm7165, %v7164, %v7134
      %vm7167 = vcmask 719872
      %v7168 = vsel %vm7167, %v7166, %v7138
      %vm7169 = vcmask 785408
      %v7170 = vsel %vm7169, %v7168, %v7142
      %vm7171 = vcmask 850944
      %v7172 = vsel %vm7171, %v7170, %v7146
      %vm7173 = vcmask 916480
      %v7174 = vsel %vm7173, %v7172, %v7150
      %vm7175 = vcmask 982016
      %v7176 = vsel %vm7175, %v7174, %v7154
      %7177 = vst [vmem:[%s244] sm:$0xff] %v7176
      %p7178 = scmp.lt.s32.totalorder %s20, 1
      %s7179 = scalar_select %p7178, %s20, 1
      %p7180 = scmp.lt.s32.totalorder %s21, 1
      %s7181 = scalar_select %p7180, %s21, 1
      %s7182 = smul.addr %s7179, 2
      %s7183 = sadd.s32 %s7181, %s7182
      %s7184 = smul.addr %s7183, 8
      %s7185 = scalar_lea.vmem %s5, %s7184
      // Predicated region
      $region49: #{residual_block_forward.1} parent=39 // pred_check
        %p7186 = pneg %p158
      $region50: #{residual_block_forward.1} parent=39 // pred_check_branch
        %7188 = sbr.rel (%p7186) target = $region52
      $region51: #{residual_block_forward.1} parent=39 // pred_region
        _
      $region52: #{residual_block_forward.1} parent=39 // pred_fallthru
        _
    $region40: #{residual_block_forward.1} parent=5 // pred_fallthru
      _
    %p7189 = scmp.le.s32.totalorder 2, %s11
    // Predicated region
    $region53: #{residual_block_forward.1} parent=5 // pred_check
      %p7190 = pneg %p7189
    $region54: #{residual_block_forward.1} parent=5 // pred_check_branch
      %7192 = sbr.rel (%p7190) target = $region56
    $region55: #{residual_block_forward.1} parent=5 // pred_region
      %s7193 = ssub.s32 %s11, 2
      // Predicated region
      $region57: #{residual_block_forward.1} parent=55 // pred_check
        %p7194 = pneg %p164
      $region58: #{residual_block_forward.1} parent=55 // pred_check_branch
        %7196 = sbr.rel (%p7194) target = $region60
      $region59: #{residual_block_forward.1} parent=55 // pred_region
        %p7197 = scmp.lt.s32.totalorder %s22, 1
        %s7198 = scalar_select %p7197, %s22, 1
        %p7199 = scmp.lt.s32.totalorder %s23, 1
        %s7200 = scalar_select %p7199, %s23, 1
        %s7201 = smul.addr %s7198, 2
        %s7202 = sadd.s32 %s7200, %s7201
        %s7203 = smul.addr %s7202, 8
        %s7204 = scalar_lea.vmem %s5, %s7203
      $region60: #{residual_block_forward.1} parent=55 // pred_fallthru
        _
    $region56: #{residual_block_forward.1} parent=5 // pred_fallthru
      _
  $region6: #{residual_block_forward.1} parent=0 // loop_footer
    %s15 = sadd.s32 1, %s11
  $region7: #{residual_block_forward.1} parent=0 // loop_footer_branch
    %10 = sbr.rel target = $region3
  $region8: #{residual_block_forward.1} parent=0 // loop_exit
    _

</llo_original>
